<compile_context>
chip_gen: v7x
topology: tpu7x:2x2x1
jax: 0.10.0
libtpu: 0.0.40
codegen_flags: <defaults>
</compile_context>

<pallas_src>
import functools

import jax
import jax.numpy as jnp
from jax import lax
from jax.experimental import pallas as pl
from jax.experimental.pallas import tpu as pltpu


# ----------------------------------------------------------------------------
# The single fused decoder kernel (phase-split activations, all in VMEM/vregs)
# ----------------------------------------------------------------------------
def _decoder_kernel(cfg, h_ref, vec_ref, *refs):
    B = cfg["B"]
    init_z, latent_z = cfg["init_z"], cfg["latent_z"]
    depth, r = cfg["depth"], cfg["r"]
    init_n, last_dim = cfg["init_n"], cfg["last_dim"]

    o_ref = refs[-1]
    w_refs = refs[:-1]

    N = init_n
    M = B * N                                   # lane width of every phase slab

    vecs = vec_ref[...]                         # (Cmax, n_vec) f32 — single DMA

    # Hoisted batch-boundary masks (the slab width M = B*N never changes).
    col = lax.broadcasted_iota(jnp.int32, (1, M), 1)
    mask_prev = (col % N) != 0                  # n == 0 has no predecessor
    mask_next = (col % N) != (N - 1)            # n == N-1 has no successor

    def shift_prev(v):                          # v[:, i] <- v[:, i-1], masked
        s = jnp.concatenate(
            [jnp.zeros((v.shape[0], 1), v.dtype), v[:, :M - 1]], axis=1)
        return jnp.where(mask_prev, s, 0.0)

    def shift_next(v):                          # v[:, i] <- v[:, i+1], masked
        s = jnp.concatenate(
            [v[:, 1:], jnp.zeros((v.shape[0], 1), v.dtype)], axis=1)
        return jnp.where(mask_next, s, 0.0)

    w_it = iter(w_refs)

    def next_w():                               # one VMEM load per conv layer
        return next(w_it)[...]

    _vc = [0]

    def next_vec(c):                            # next per-channel column
        i = _vc[0]
        _vc[0] += 1
        return vecs[:c, i:i + 1]                # (c, 1)

    def mm(w, p):                               # one stacked-tap MXU push
        return jnp.dot(w, p.astype(jnp.bfloat16),
                       preferred_element_type=jnp.float32)

    # --- ConvTranspose1d(k=4, s=2, p=1): P phases -> 2P phases, same M -----
    # out[2l]   = V1 x[l] + V3 x[l-1]   /   out[2l+1] = V2 x[l] + V0 x[l+1]
    def conv_transpose(phases, w, cout):
        P = len(phases)
        Y = [mm(w, p) for p in phases]          # each (4*cout, M)

        def tap(y, k):
            return y[k * cout:(k + 1) * cout, :]

        out = []
        for f in range(P):
            prev3 = tap(Y[f - 1], 3) if f > 0 else shift_prev(tap(Y[P - 1], 3))
            nxt0 = tap(Y[f + 1], 0) if f < P - 1 else shift_next(tap(Y[0], 0))
            out.append(tap(Y[f], 1) + prev3)    # output phase 2f
            out.append(tap(Y[f], 2) + nxt0)     # output phase 2f + 1
        return out

    # --- Conv1d(k=3, s=1, p=1, bias=False): P phases -> P phases -----------
    # out[l] = W0 x[l-1] + W1 x[l] + W2 x[l+1]
    def conv3(phases, w, c):
        P = len(phases)
        Z = [mm(w, p) for p in phases]          # each (3*c, M)

        def tap(z, k):
            return z[k * c:(k + 1) * c, :]

        out = []
        for f in range(P):
            left = tap(Z[f - 1], 0) if f > 0 else shift_prev(tap(Z[P - 1], 0))
            right = tap(Z[f + 1], 2) if f < P - 1 else shift_next(tap(Z[0], 2))
            out.append(left + tap(Z[f], 1) + right)
        return out

    # --- training-mode BatchNorm1d (+ReLU, +residual), one-pass stats ------
    def bn_relu(phases, g, b, residual=None):
        s1 = phases[0]
        s2 = phases[0] * phases[0]
        for p in phases[1:]:
            s1 = s1 + p
            s2 = s2 + p * p
        inv_cnt = 1.0 / float(len(phases) * M)
        mean = jnp.sum(s1, axis=1, keepdims=True) * inv_cnt
        ex2 = jnp.sum(s2, axis=1, keepdims=True) * inv_cnt
        var = jnp.maximum(ex2 - mean * mean, 0.0)
        scale = lax.rsqrt(var + 1e-5) * g
        shift = b - mean * scale
        if residual is None:
            return [jnp.maximum(p * scale + shift, 0.0) for p in phases]
        return [res + jnp.maximum(p * scale + shift, 0.0)
                for res, p in zip(residual, phases)]

    def ch(i):
        return int(init_z * 2 ** i)

    # single phase at latent channels, laid out by the wrapper
    phases = [h_ref[...]]                       # (latent_z, B*N)

    # (depth+1) x [ConvTranspose -> BN -> ReLU -> r residual blocks]
    for s in range(depth + 1):
        cout = ch(depth - s)
        phases = conv_transpose(phases, next_w(), cout)
        g, b = next_vec(cout), next_vec(cout)
        phases = bn_relu(phases, g, b)
        for _ in range(r):
            y = conv3(phases, next_w(), cout)
            gg, bb = next_vec(cout), next_vec(cout)
            phases = bn_relu(y, gg, bb, residual=phases)

    # final ConvTranspose1d(init_z -> 3, bias=True), then r residual blocks
    phases = conv_transpose(phases, next_w(), last_dim)
    bias = next_vec(last_dim)
    phases = [p + bias for p in phases]
    for _ in range(r):
        y = conv3(phases, next_w(), last_dim)
        gg, bb = next_vec(last_dim), next_vec(last_dim)
        phases = bn_relu(y, gg, bb, residual=phases)

    # lane-dense output slab, lanes ordered (phase, b, n)
    o_ref[...] = jnp.concatenate(phases, axis=1)


def decoder_forward(packed, x, *, cfg):
    """x: (B, latent_z, 1) -> (B, last_dim, init_n * 2**(depth+2))."""
    B = x.shape[0]
    latent_z, init_n = cfg["latent_z"], cfg["init_n"]
    depth, last_dim = cfg["depth"], cfg["last_dim"]
    N = init_n
    P_out = 2 ** (depth + 2)

    # FromLatentDimensions (tiny Linear) + phase-slab layout: wrapper plumbing.
    x2 = x.reshape(B, latent_z).astype(jnp.float32)
    y = jnp.dot(x2, packed["lin_wT"]) + packed["lin_b"]          # (B, latent_z*N)
    h0 = jnp.transpose(y.reshape(B, latent_z, N), (1, 0, 2)).reshape(latent_z, B * N)

    kernel = functools.partial(_decoder_kernel, dict(cfg, B=B))
    out2d = pl.pallas_call(
        kernel,
        out_shape=jax.ShapeDtypeStruct((last_dim, P_out * B * N), jnp.float32),
        compiler_params=pltpu.CompilerParams(
            vmem_limit_bytes=32 * 1024 * 1024),
    )(h0, packed["vecs"], *packed["weights"])

    # De-interleave ONCE, outside the kernel:
    # out2d[c, phi*B*N + b*N + n]  ->  out[b, c, n*P + phi]
    out = jnp.transpose(out2d.reshape(last_dim, P_out, B, N), (2, 0, 3, 1))
    return out.reshape(B, last_dim, N * P_out)


# ----------------------------------------------------------------------------
# Parameters: PyTorch-layout raw weights + one-time repack into kernel layout
# ----------------------------------------------------------------------------
def init_raw_params(key, *, init_z, latent_z, depth, r, init_n, last_dim):
    params = {}
    keys = iter(jax.random.split(key, 128))

    def nrm(shape, scale=0.1):
        return scale * jax.random.normal(next(keys), shape, jnp.float32)

    def ch(i):
        return int(init_z * 2 ** i)

    params["lin_w"] = nrm((latent_z * init_n, latent_z))
    params["lin_b"] = nrm((latent_z * init_n,))
    params["ct0_w"] = nrm((latent_z, ch(depth), 4))
    params["bn0_g"] = jnp.ones((ch(depth),), jnp.float32)
    params["bn0_b"] = jnp.zeros((ch(depth),), jnp.float32)
    for j in range(r):
        params[f"res0_{j}_w"] = nrm((ch(depth), ch(depth), 3))
        params[f"res0_{j}_g"] = jnp.ones((ch(depth),), jnp.float32)
        params[f"res0_{j}_b"] = jnp.zeros((ch(depth),), jnp.float32)
    for idx, i in enumerate(reversed(range(depth))):
        params[f"ct{idx + 1}_w"] = nrm((ch(i + 1), ch(i), 4))
        params[f"bn{idx + 1}_g"] = jnp.ones((ch(i),), jnp.float32)
        params[f"bn{idx + 1}_b"] = jnp.zeros((ch(i),), jnp.float32)
        for j in range(r):
            params[f"res{idx + 1}_{j}_w"] = nrm((ch(i), ch(i), 3))
            params[f"res{idx + 1}_{j}_g"] = jnp.ones((ch(i),), jnp.float32)
            params[f"res{idx + 1}_{j}_b"] = jnp.zeros((ch(i),), jnp.float32)
    params["ct_last_w"] = nrm((ch(0), last_dim, 4))       # bias=True layer
    params["ct_last_b"] = nrm((last_dim,))
    for j in range(r):
        params[f"resL_{j}_w"] = nrm((last_dim, last_dim, 3))
        params[f"resL_{j}_g"] = jnp.ones((last_dim,), jnp.float32)
        params[f"resL_{j}_b"] = jnp.zeros((last_dim,), jnp.float32)
    return params


def pack_params(raw, *, init_z, latent_z, depth, r, init_n, last_dim):
    """One-time repack of PyTorch-layout weights into kernel matmul layouts."""

    def ct_cat(w):      # ConvTranspose1d weight (Cin, Cout, 4) -> [V0;V1;V2;V3]
        return jnp.concatenate([jnp.transpose(w[:, :, k]) for k in range(4)],
                               axis=0).astype(jnp.bfloat16)

    def c3_cat(w):      # Conv1d weight (Cout, Cin, 3) -> [W0;W1;W2]
        return jnp.concatenate([w[:, :, k] for k in range(3)],
                               axis=0).astype(jnp.bfloat16)

    weights, vec_cols = [], []
    for s in range(depth + 1):
        weights.append(ct_cat(raw[f"ct{s}_w"]))
        vec_cols += [raw[f"bn{s}_g"], raw[f"bn{s}_b"]]
        for j in range(r):
            weights.append(c3_cat(raw[f"res{s}_{j}_w"]))
            vec_cols += [raw[f"res{s}_{j}_g"], raw[f"res{s}_{j}_b"]]
    weights.append(ct_cat(raw["ct_last_w"]))
    vec_cols.append(raw["ct_last_b"])
    for j in range(r):
        weights.append(c3_cat(raw[f"resL_{j}_w"]))
        vec_cols += [raw[f"resL_{j}_g"], raw[f"resL_{j}_b"]]

    cmax = max(max(int(v.shape[0]) for v in vec_cols), 8)
    vecs = jnp.stack(
        [jnp.pad(v.astype(jnp.float32), (0, cmax - v.shape[0]))
         for v in vec_cols], axis=1)            # (Cmax, n_vec), one DMA

    return dict(lin_wT=jnp.transpose(raw["lin_w"]).astype(jnp.float32),
                lin_b=raw["lin_b"].astype(jnp.float32),
                vecs=vecs, weights=weights)


# ----------------------------------------------------------------------------
# Pure-JAX reference (PyTorch semantics, NCL layout) for a correctness check
# ----------------------------------------------------------------------------
def _ref_conv3(x, w):
    B, Cin, L = x.shape
    xp = jnp.pad(x, ((0, 0), (0, 0), (1, 1)))
    cols = jnp.stack([xp[:, :, k:k + L] for k in range(3)], axis=-1)
    a = jnp.transpose(cols, (0, 2, 1, 3)).reshape(B * L, Cin * 3)
    wm = jnp.transpose(w, (1, 2, 0)).reshape(Cin * 3, w.shape[0])
    y = jnp.dot(a, wm)
    return jnp.transpose(y.reshape(B, L, w.shape[0]), (0, 2, 1))


def _ref_convT(x, w, bias=None):
    B, Cin, L = x.shape
    Cout = w.shape[1]
    a = jnp.transpose(x, (0, 2, 1)).reshape(B * L, Cin)
    p = jnp.dot(a, w.reshape(Cin, Cout * 4)).reshape(B, L, Cout, 4)
    z = jnp.zeros((B, 1, Cout), jnp.float32)
    even = (jnp.concatenate([p[:, :, :, 0], z], axis=1)
            + jnp.concatenate([z, p[:, :, :, 2]], axis=1))
    odd = (jnp.concatenate([p[:, :, :, 1], z], axis=1)
           + jnp.concatenate([z, p[:, :, :, 3]], axis=1))
    full = jnp.stack([even, odd], axis=2).reshape(B, 2 * (L + 1), Cout)
    out = jnp.transpose(full[:, 1:2 * L + 1, :], (0, 2, 1))
    if bias is not None:
        out = out + bias.reshape(1, Cout, 1)
    return out


def _ref_bn_relu(x, g, b, residual=None):
    mean = jnp.mean(x, axis=(0, 2), keepdims=True)
    var = jnp.mean(jnp.square(x - mean), axis=(0, 2), keepdims=True)
    y = jnp.maximum((x - mean) * lax.rsqrt(var + 1e-5)
                    * g.reshape(1, -1, 1) + b.reshape(1, -1, 1), 0.0)
    return y if residual is None else residual + y


def reference_forward(raw, x, *, latent_z, init_n, depth, r):
    B = x.shape[0]
    h = jnp.dot(x.reshape(B, latent_z), raw["lin_w"].T) + raw["lin_b"]
    h = h.reshape(B, latent_z, init_n)
    for s in range(depth + 1):
        h = _ref_convT(h, raw[f"ct{s}_w"])
        h = _ref_bn_relu(h, raw[f"bn{s}_g"], raw[f"bn{s}_b"])
        for j in range(r):
            h = _ref_bn_relu(_ref_conv3(h, raw[f"res{s}_{j}_w"]),
                             raw[f"res{s}_{j}_g"], raw[f"res{s}_{j}_b"],
                             residual=h)
    h = _ref_convT(h, raw["ct_last_w"], raw["ct_last_b"])
    for j in range(r):
        h = _ref_bn_relu(_ref_conv3(h, raw[f"resL_{j}_w"]),
                         raw[f"resL_{j}_g"], raw[f"resL_{j}_b"], residual=h)
    return h


# ----------------------------------------------------------------------------
if __name__ == "__main__":
    cfg = dict(init_z=8, latent_z=2, depth=2, r=1, init_n=8, last_dim=3)
    B = 2

    key = jax.random.PRNGKey(0)
    kp, kx = jax.random.split(key)
    raw = init_raw_params(kp, **cfg)
    packed = pack_params(raw, **cfg)
    x = jax.random.normal(kx, (B, cfg["latent_z"], 1), jnp.float32)

    fwd = jax.jit(functools.partial(decoder_forward, cfg=cfg))
    y = fwd(packed, x)
    jax.block_until_ready(y)

    L_out = cfg["init_n"] * 2 ** (cfg["depth"] + 2)
    assert y.shape == (B, cfg["last_dim"], L_out), y.shape
    assert bool(jnp.all(jnp.isfinite(y)))

    # Structural correctness check against a pure-JAX reference (loose
    # tolerance to allow for TPU default / bf16 matmul precision).
    y_ref = reference_forward(raw, x, latent_z=cfg["latent_z"],
                              init_n=cfg["init_n"], depth=cfg["depth"],
                              r=cfg["r"])
    err = float(jnp.max(jnp.abs(y - y_ref)))
    assert err < 1e-1, f"mismatch vs pure-JAX reference: max abs err {err}"

    print("KERNEL_OK")
</pallas_src>

<mosaic_0001>
module attributes {stable_mosaic.version = 11 : i64} {
  func.func @_decoder_kernel(%arg0: memref<2x16xf32, #tpu.memory_space<vmem>>, %arg1: memref<32x15xf32, #tpu.memory_space<vmem>>, %arg2: memref<128x2xbf16, #tpu.memory_space<vmem>>, %arg3: memref<96x32xbf16, #tpu.memory_space<vmem>>, %arg4: memref<64x32xbf16, #tpu.memory_space<vmem>>, %arg5: memref<48x16xbf16, #tpu.memory_space<vmem>>, %arg6: memref<32x16xbf16, #tpu.memory_space<vmem>>, %arg7: memref<24x8xbf16, #tpu.memory_space<vmem>>, %arg8: memref<12x8xbf16, #tpu.memory_space<vmem>>, %arg9: memref<9x3xbf16, #tpu.memory_space<vmem>>, %arg10: memref<3x256xf32, #tpu.memory_space<vmem>>) attributes {dimension_semantics = [], scalar_prefetch = 0 : i64, scratch_operands = 0 : i64, tpu.core_type = #tpu.core_type<tc>} {
    %c0 = arith.constant 0 : index
    %c0_0 = arith.constant 0 : index
    %0 = vector.load %arg1[%c0, %c0_0] : memref<32x15xf32, #tpu.memory_space<vmem>>, vector<32x15xf32>
    %1 = tpu.iota {dimensions = array<i32: 1>} : vector<1x16xi32>
    %c8_i32 = arith.constant 8 : i32
    %c0_i32 = arith.constant 0 : i32
    %2 = arith.cmpi eq, %c8_i32, %c0_i32 : i32
    %c1_i32 = arith.constant 1 : i32
    %3 = arith.select %2, %c1_i32, %c8_i32 : i32
    %4 = vector.broadcast %3 : i32 to vector<1x16xi32>
    %5 = arith.remsi %1, %4 : vector<1x16xi32>
    %c0_i32_1 = arith.constant 0 : i32
    %6 = vector.broadcast %c0_i32_1 : i32 to vector<1x16xi32>
    %7 = arith.cmpi ne, %5, %6 : vector<1x16xi32>
    %c0_i32_2 = arith.constant 0 : i32
    %8 = vector.broadcast %c0_i32_2 : i32 to vector<1x16xi32>
    %9 = arith.cmpi slt, %5, %8 : vector<1x16xi32>
    %c0_i32_3 = arith.constant 0 : i32
    %10 = arith.cmpi slt, %3, %c0_i32_3 : i32
    %11 = vector.broadcast %10 : i1 to vector<1x16xi1>
    %12 = vector.broadcast %11 : vector<1x16xi1> to vector<1x16xi1>
    %13 = arith.xori %9, %12 : vector<1x16xi1>
    %14 = arith.andi %13, %7 : vector<1x16xi1>
    %15 = vector.broadcast %3 : i32 to vector<1x16xi32>
    %16 = arith.addi %5, %15 : vector<1x16xi32>
    %17 = arith.select %14, %16, %5 : vector<1x16xi1>, vector<1x16xi32>
    %c0_i32_4 = arith.constant 0 : i32
    %18 = vector.broadcast %c0_i32_4 : i32 to vector<1x16xi32>
    %19 = arith.cmpi ne, %17, %18 : vector<1x16xi32>
    %c8_i32_5 = arith.constant 8 : i32
    %c0_i32_6 = arith.constant 0 : i32
    %20 = arith.cmpi eq, %c8_i32_5, %c0_i32_6 : i32
    %c1_i32_7 = arith.constant 1 : i32
    %21 = arith.select %20, %c1_i32_7, %c8_i32_5 : i32
    %22 = vector.broadcast %21 : i32 to vector<1x16xi32>
    %23 = arith.remsi %1, %22 : vector<1x16xi32>
    %c0_i32_8 = arith.constant 0 : i32
    %24 = vector.broadcast %c0_i32_8 : i32 to vector<1x16xi32>
    %25 = arith.cmpi ne, %23, %24 : vector<1x16xi32>
    %c0_i32_9 = arith.constant 0 : i32
    %26 = vector.broadcast %c0_i32_9 : i32 to vector<1x16xi32>
    %27 = arith.cmpi slt, %23, %26 : vector<1x16xi32>
    %c0_i32_10 = arith.constant 0 : i32
    %28 = arith.cmpi slt, %21, %c0_i32_10 : i32
    %29 = vector.broadcast %28 : i1 to vector<1x16xi1>
    %30 = vector.broadcast %29 : vector<1x16xi1> to vector<1x16xi1>
    %31 = arith.xori %27, %30 : vector<1x16xi1>
    %32 = arith.andi %31, %25 : vector<1x16xi1>
    %33 = vector.broadcast %21 : i32 to vector<1x16xi32>
    %34 = arith.addi %23, %33 : vector<1x16xi32>
    %35 = arith.select %32, %34, %23 : vector<1x16xi1>, vector<1x16xi32>
    %c7_i32 = arith.constant 7 : i32
    %36 = vector.broadcast %c7_i32 : i32 to vector<1x16xi32>
    %37 = arith.cmpi ne, %35, %36 : vector<1x16xi32>
    %c0_11 = arith.constant 0 : index
    %c0_12 = arith.constant 0 : index
    %38 = vector.load %arg0[%c0_11, %c0_12] : memref<2x16xf32, #tpu.memory_space<vmem>>, vector<2x16xf32>
    %c0_13 = arith.constant 0 : index
    %c0_14 = arith.constant 0 : index
    %39 = vector.load %arg2[%c0_13, %c0_14] : memref<128x2xbf16, #tpu.memory_space<vmem>>, vector<128x2xbf16>
    %40 = arith.truncf %38 : vector<2x16xf32> to vector<2x16xbf16>
    %cst = arith.constant dense<0.000000e+00> : vector<128x16xf32>
    %41 = tpu.matmul %39, %40, %cst {dimension_numbers = #tpu.dot_dimension_numbers<[1], [0], [0], [1], [0, 0, 1, 1], [], []>} : vector<128x2xbf16>, vector<2x16xbf16>, vector<128x16xf32> -> vector<128x16xf32>
    %42 = vector.extract_strided_slice %41 {offsets = [96, 0], sizes = [32, 16], strides = [1, 1]} : vector<128x16xf32> to vector<32x16xf32>
    %cst_15 = arith.constant 0.000000e+00 : f32
    %43 = vector.broadcast %cst_15 : f32 to vector<32x1xf32>
    %44 = vector.extract_strided_slice %42 {offsets = [0, 0], sizes = [32, 15], strides = [1, 1]} : vector<32x16xf32> to vector<32x15xf32>
    %45 = tpu.concatenate %43, %44 in 1 : vector<32x1xf32>, vector<32x15xf32> -> vector<32x16xf32>
    %cst_16 = arith.constant 0.000000e+00 : f32
    %46 = vector.shape_cast %19 : vector<1x16xi1> to vector<1x16xi1>
    %47 = vector.broadcast %46 : vector<1x16xi1> to vector<32x16xi1>
    %48 = vector.broadcast %cst_16 : f32 to vector<32x16xf32>
    %49 = arith.select %47, %45, %48 : vector<32x16xi1>, vector<32x16xf32>
    %50 = vector.extract_strided_slice %41 {offsets = [0, 0], sizes = [32, 16], strides = [1, 1]} : vector<128x16xf32> to vector<32x16xf32>
    %51 = vector.extract_strided_slice %50 {offsets = [0, 1], sizes = [32, 15], strides = [1, 1]} : vector<32x16xf32> to vector<32x15xf32>
    %cst_17 = arith.constant 0.000000e+00 : f32
    %52 = vector.broadcast %cst_17 : f32 to vector<32x1xf32>
    %53 = tpu.concatenate %51, %52 in 1 : vector<32x15xf32>, vector<32x1xf32> -> vector<32x16xf32>
    %cst_18 = arith.constant 0.000000e+00 : f32
    %54 = vector.shape_cast %37 : vector<1x16xi1> to vector<1x16xi1>
    %55 = vector.broadcast %54 : vector<1x16xi1> to vector<32x16xi1>
    %56 = vector.broadcast %cst_18 : f32 to vector<32x16xf32>
    %57 = arith.select %55, %53, %56 : vector<32x16xi1>, vector<32x16xf32>
    %58 = vector.extract_strided_slice %41 {offsets = [32, 0], sizes = [32, 16], strides = [1, 1]} : vector<128x16xf32> to vector<32x16xf32>
    %59 = arith.addf %58, %49 : vector<32x16xf32>
    %60 = vector.extract_strided_slice %41 {offsets = [64, 0], sizes = [32, 16], strides = [1, 1]} : vector<128x16xf32> to vector<32x16xf32>
    %61 = arith.addf %60, %57 : vector<32x16xf32>
    %62 = vector.extract_strided_slice %0 {offsets = [0, 0], sizes = [32, 1], strides = [1, 1]} : vector<32x15xf32> to vector<32x1xf32>
    %63 = vector.extract_strided_slice %0 {offsets = [0, 1], sizes = [32, 1], strides = [1, 1]} : vector<32x15xf32> to vector<32x1xf32>
    %64 = arith.mulf %59, %59 : vector<32x16xf32>
    %65 = arith.addf %59, %61 : vector<32x16xf32>
    %66 = arith.mulf %61, %61 : vector<32x16xf32>
    %67 = arith.addf %64, %66 : vector<32x16xf32>
    %cst_19 = arith.constant dense<0.000000e+00> : vector<32xf32>
    %68 = vector.multi_reduction <add>, %65, %cst_19 [1] : vector<32x16xf32> to vector<32xf32>
    %69 = vector.shape_cast %68 : vector<32xf32> to vector<32x1xf32>
    %cst_20 = arith.constant 3.125000e-02 : f32
    %70 = vector.broadcast %cst_20 : f32 to vector<32x1xf32>
    %71 = arith.mulf %69, %70 : vector<32x1xf32>
    %cst_21 = arith.constant dense<0.000000e+00> : vector<32xf32>
    %72 = vector.multi_reduction <add>, %67, %cst_21 [1] : vector<32x16xf32> to vector<32xf32>
    %73 = vector.shape_cast %72 : vector<32xf32> to vector<32x1xf32>
    %cst_22 = arith.constant 3.125000e-02 : f32
    %74 = vector.broadcast %cst_22 : f32 to vector<32x1xf32>
    %75 = arith.mulf %73, %74 : vector<32x1xf32>
    %76 = arith.mulf %71, %71 : vector<32x1xf32>
    %77 = arith.subf %75, %76 : vector<32x1xf32>
    %cst_23 = arith.constant 0.000000e+00 : f32
    %78 = vector.broadcast %cst_23 : f32 to vector<32x1xf32>
    %79 = arith.maximumf %77, %78 : vector<32x1xf32>
    %cst_24 = arith.constant 9.99999974E-6 : f32
    %80 = vector.broadcast %cst_24 : f32 to vector<32x1xf32>
    %81 = arith.addf %79, %80 : vector<32x1xf32>
    %82 = math.rsqrt %81 : vector<32x1xf32>
    %83 = arith.mulf %82, %62 : vector<32x1xf32>
    %84 = arith.mulf %71, %83 : vector<32x1xf32>
    %85 = arith.subf %63, %84 : vector<32x1xf32>
    %86 = vector.broadcast %83 : vector<32x1xf32> to vector<32x16xf32>
    %87 = arith.mulf %59, %86 : vector<32x16xf32>
    %88 = vector.broadcast %85 : vector<32x1xf32> to vector<32x16xf32>
    %89 = arith.addf %87, %88 : vector<32x16xf32>
    %cst_25 = arith.constant 0.000000e+00 : f32
    %90 = vector.broadcast %cst_25 : f32 to vector<32x16xf32>
    %91 = arith.maximumf %89, %90 : vector<32x16xf32>
    %92 = vector.broadcast %83 : vector<32x1xf32> to vector<32x16xf32>
    %93 = arith.mulf %61, %92 : vector<32x16xf32>
    %94 = vector.broadcast %85 : vector<32x1xf32> to vector<32x16xf32>
    %95 = arith.addf %93, %94 : vector<32x16xf32>
    %cst_26 = arith.constant 0.000000e+00 : f32
    %96 = vector.broadcast %cst_26 : f32 to vector<32x16xf32>
    %97 = arith.maximumf %95, %96 : vector<32x16xf32>
    %c0_27 = arith.constant 0 : index
    %c0_28 = arith.constant 0 : index
    %98 = vector.load %arg3[%c0_27, %c0_28] : memref<96x32xbf16, #tpu.memory_space<vmem>>, vector<96x32xbf16>
    %99 = arith.truncf %91 : vector<32x16xf32> to vector<32x16xbf16>
    %cst_29 = arith.constant dense<0.000000e+00> : vector<96x16xf32>
    %100 = tpu.matmul %98, %99, %cst_29 {dimension_numbers = #tpu.dot_dimension_numbers<[1], [0], [0], [1], [0, 0, 1, 1], [], []>} : vector<96x32xbf16>, vector<32x16xbf16>, vector<96x16xf32> -> vector<96x16xf32>
    %101 = arith.truncf %97 : vector<32x16xf32> to vector<32x16xbf16>
    %cst_30 = arith.constant dense<0.000000e+00> : vector<96x16xf32>
    %102 = tpu.matmul %98, %101, %cst_30 {dimension_numbers = #tpu.dot_dimension_numbers<[1], [0], [0], [1], [0, 0, 1, 1], [], []>} : vector<96x32xbf16>, vector<32x16xbf16>, vector<96x16xf32> -> vector<96x16xf32>
    %103 = vector.extract_strided_slice %102 {offsets = [0, 0], sizes = [32, 16], strides = [1, 1]} : vector<96x16xf32> to vector<32x16xf32>
    %cst_31 = arith.constant 0.000000e+00 : f32
    %104 = vector.broadcast %cst_31 : f32 to vector<32x1xf32>
    %105 = vector.extract_strided_slice %103 {offsets = [0, 0], sizes = [32, 15], strides = [1, 1]} : vector<32x16xf32> to vector<32x15xf32>
    %106 = tpu.concatenate %104, %105 in 1 : vector<32x1xf32>, vector<32x15xf32> -> vector<32x16xf32>
    %cst_32 = arith.constant 0.000000e+00 : f32
    %107 = vector.shape_cast %19 : vector<1x16xi1> to vector<1x16xi1>
    %108 = vector.broadcast %107 : vector<1x16xi1> to vector<32x16xi1>
    %109 = vector.broadcast %cst_32 : f32 to vector<32x16xf32>
    %110 = arith.select %108, %106, %109 : vector<32x16xi1>, vector<32x16xf32>
    %111 = vector.extract_strided_slice %102 {offsets = [64, 0], sizes = [32, 16], strides = [1, 1]} : vector<96x16xf32> to vector<32x16xf32>
    %112 = vector.extract_strided_slice %100 {offsets = [32, 0], sizes = [32, 16], strides = [1, 1]} : vector<96x16xf32> to vector<32x16xf32>
    %113 = arith.addf %110, %112 : vector<32x16xf32>
    %114 = arith.addf %113, %111 : vector<32x16xf32>
    %115 = vector.extract_strided_slice %100 {offsets = [0, 0], sizes = [32, 16], strides = [1, 1]} : vector<96x16xf32> to vector<32x16xf32>
    %116 = vector.extract_strided_slice %100 {offsets = [64, 0], sizes = [32, 16], strides = [1, 1]} : vector<96x16xf32> to vector<32x16xf32>
    %117 = vector.extract_strided_slice %116 {offsets = [0, 1], sizes = [32, 15], strides = [1, 1]} : vector<32x16xf32> to vector<32x15xf32>
    %cst_33 = arith.constant 0.000000e+00 : f32
    %118 = vector.broadcast %cst_33 : f32 to vector<32x1xf32>
    %119 = tpu.concatenate %117, %118 in 1 : vector<32x15xf32>, vector<32x1xf32> -> vector<32x16xf32>
    %cst_34 = arith.constant 0.000000e+00 : f32
    %120 = vector.shape_cast %37 : vector<1x16xi1> to vector<1x16xi1>
    %121 = vector.broadcast %120 : vector<1x16xi1> to vector<32x16xi1>
    %122 = vector.broadcast %cst_34 : f32 to vector<32x16xf32>
    %123 = arith.select %121, %119, %122 : vector<32x16xi1>, vector<32x16xf32>
    %124 = vector.extract_strided_slice %102 {offsets = [32, 0], sizes = [32, 16], strides = [1, 1]} : vector<96x16xf32> to vector<32x16xf32>
    %125 = arith.addf %115, %124 : vector<32x16xf32>
    %126 = arith.addf %125, %123 : vector<32x16xf32>
    %127 = vector.extract_strided_slice %0 {offsets = [0, 2], sizes = [32, 1], strides = [1, 1]} : vector<32x15xf32> to vector<32x1xf32>
    %128 = vector.extract_strided_slice %0 {offsets = [0, 3], sizes = [32, 1], strides = [1, 1]} : vector<32x15xf32> to vector<32x1xf32>
    %129 = arith.mulf %114, %114 : vector<32x16xf32>
    %130 = arith.addf %114, %126 : vector<32x16xf32>
    %131 = arith.mulf %126, %126 : vector<32x16xf32>
    %132 = arith.addf %129, %131 : vector<32x16xf32>
    %cst_35 = arith.constant dense<0.000000e+00> : vector<32xf32>
    %133 = vector.multi_reduction <add>, %130, %cst_35 [1] : vector<32x16xf32> to vector<32xf32>
    %134 = vector.shape_cast %133 : vector<32xf32> to vector<32x1xf32>
    %cst_36 = arith.constant 3.125000e-02 : f32
    %135 = vector.broadcast %cst_36 : f32 to vector<32x1xf32>
    %136 = arith.mulf %134, %135 : vector<32x1xf32>
    %cst_37 = arith.constant dense<0.000000e+00> : vector<32xf32>
    %137 = vector.multi_reduction <add>, %132, %cst_37 [1] : vector<32x16xf32> to vector<32xf32>
    %138 = vector.shape_cast %137 : vector<32xf32> to vector<32x1xf32>
    %cst_38 = arith.constant 3.125000e-02 : f32
    %139 = vector.broadcast %cst_38 : f32 to vector<32x1xf32>
    %140 = arith.mulf %138, %139 : vector<32x1xf32>
    %141 = arith.mulf %136, %136 : vector<32x1xf32>
    %142 = arith.subf %140, %141 : vector<32x1xf32>
    %cst_39 = arith.constant 0.000000e+00 : f32
    %143 = vector.broadcast %cst_39 : f32 to vector<32x1xf32>
    %144 = arith.maximumf %142, %143 : vector<32x1xf32>
    %cst_40 = arith.constant 9.99999974E-6 : f32
    %145 = vector.broadcast %cst_40 : f32 to vector<32x1xf32>
    %146 = arith.addf %144, %145 : vector<32x1xf32>
    %147 = math.rsqrt %146 : vector<32x1xf32>
    %148 = arith.mulf %147, %127 : vector<32x1xf32>
    %149 = arith.mulf %136, %148 : vector<32x1xf32>
    %150 = arith.subf %128, %149 : vector<32x1xf32>
    %151 = vector.broadcast %148 : vector<32x1xf32> to vector<32x16xf32>
    %152 = arith.mulf %114, %151 : vector<32x16xf32>
    %153 = vector.broadcast %150 : vector<32x1xf32> to vector<32x16xf32>
    %154 = arith.addf %152, %153 : vector<32x16xf32>
    %cst_41 = arith.constant 0.000000e+00 : f32
    %155 = vector.broadcast %cst_41 : f32 to vector<32x16xf32>
    %156 = arith.maximumf %154, %155 : vector<32x16xf32>
    %157 = arith.addf %91, %156 : vector<32x16xf32>
    %158 = vector.broadcast %148 : vector<32x1xf32> to vector<32x16xf32>
    %159 = arith.mulf %126, %158 : vector<32x16xf32>
    %160 = vector.broadcast %150 : vector<32x1xf32> to vector<32x16xf32>
    %161 = arith.addf %159, %160 : vector<32x16xf32>
    %cst_42 = arith.constant 0.000000e+00 : f32
    %162 = vector.broadcast %cst_42 : f32 to vector<32x16xf32>
    %163 = arith.maximumf %161, %162 : vector<32x16xf32>
    %164 = arith.addf %97, %163 : vector<32x16xf32>
    %c0_43 = arith.constant 0 : index
    %c0_44 = arith.constant 0 : index
    %165 = vector.load %arg4[%c0_43, %c0_44] : memref<64x32xbf16, #tpu.memory_space<vmem>>, vector<64x32xbf16>
    %166 = arith.truncf %157 : vector<32x16xf32> to vector<32x16xbf16>
    %cst_45 = arith.constant dense<0.000000e+00> : vector<64x16xf32>
    %167 = tpu.matmul %165, %166, %cst_45 {dimension_numbers = #tpu.dot_dimension_numbers<[1], [0], [0], [1], [0, 0, 1, 1], [], []>} : vector<64x32xbf16>, vector<32x16xbf16>, vector<64x16xf32> -> vector<64x16xf32>
    %168 = arith.truncf %164 : vector<32x16xf32> to vector<32x16xbf16>
    %cst_46 = arith.constant dense<0.000000e+00> : vector<64x16xf32>
    %169 = tpu.matmul %165, %168, %cst_46 {dimension_numbers = #tpu.dot_dimension_numbers<[1], [0], [0], [1], [0, 0, 1, 1], [], []>} : vector<64x32xbf16>, vector<32x16xbf16>, vector<64x16xf32> -> vector<64x16xf32>
    %170 = vector.extract_strided_slice %169 {offsets = [48, 0], sizes = [16, 16], strides = [1, 1]} : vector<64x16xf32> to vector<16x16xf32>
    %cst_47 = arith.constant 0.000000e+00 : f32
    %171 = vector.broadcast %cst_47 : f32 to vector<16x1xf32>
    %172 = vector.extract_strided_slice %170 {offsets = [0, 0], sizes = [16, 15], strides = [1, 1]} : vector<16x16xf32> to vector<16x15xf32>
    %173 = tpu.concatenate %171, %172 in 1 : vector<16x1xf32>, vector<16x15xf32> -> vector<16x16xf32>
    %cst_48 = arith.constant 0.000000e+00 : f32
    %174 = vector.shape_cast %19 : vector<1x16xi1> to vector<1x16xi1>
    %175 = vector.broadcast %174 : vector<1x16xi1> to vector<16x16xi1>
    %176 = vector.broadcast %cst_48 : f32 to vector<16x16xf32>
    %177 = arith.select %175, %173, %176 : vector<16x16xi1>, vector<16x16xf32>
    %178 = vector.extract_strided_slice %169 {offsets = [0, 0], sizes = [16, 16], strides = [1, 1]} : vector<64x16xf32> to vector<16x16xf32>
    %179 = vector.extract_strided_slice %167 {offsets = [16, 0], sizes = [16, 16], strides = [1, 1]} : vector<64x16xf32> to vector<16x16xf32>
    %180 = arith.addf %179, %177 : vector<16x16xf32>
    %181 = vector.extract_strided_slice %167 {offsets = [32, 0], sizes = [16, 16], strides = [1, 1]} : vector<64x16xf32> to vector<16x16xf32>
    %182 = arith.addf %181, %178 : vector<16x16xf32>
    %183 = vector.extract_strided_slice %167 {offsets = [48, 0], sizes = [16, 16], strides = [1, 1]} : vector<64x16xf32> to vector<16x16xf32>
    %184 = vector.extract_strided_slice %167 {offsets = [0, 0], sizes = [16, 16], strides = [1, 1]} : vector<64x16xf32> to vector<16x16xf32>
    %185 = vector.extract_strided_slice %184 {offsets = [0, 1], sizes = [16, 15], strides = [1, 1]} : vector<16x16xf32> to vector<16x15xf32>
    %cst_49 = arith.constant 0.000000e+00 : f32
    %186 = vector.broadcast %cst_49 : f32 to vector<16x1xf32>
    %187 = tpu.concatenate %185, %186 in 1 : vector<16x15xf32>, vector<16x1xf32> -> vector<16x16xf32>
    %cst_50 = arith.constant 0.000000e+00 : f32
    %188 = vector.shape_cast %37 : vector<1x16xi1> to vector<1x16xi1>
    %189 = vector.broadcast %188 : vector<1x16xi1> to vector<16x16xi1>
    %190 = vector.broadcast %cst_50 : f32 to vector<16x16xf32>
    %191 = arith.select %189, %187, %190 : vector<16x16xi1>, vector<16x16xf32>
    %192 = vector.extract_strided_slice %169 {offsets = [16, 0], sizes = [16, 16], strides = [1, 1]} : vector<64x16xf32> to vector<16x16xf32>
    %193 = arith.addf %192, %183 : vector<16x16xf32>
    %194 = vector.extract_strided_slice %169 {offsets = [32, 0], sizes = [16, 16], strides = [1, 1]} : vector<64x16xf32> to vector<16x16xf32>
    %195 = arith.addf %194, %191 : vector<16x16xf32>
    %196 = vector.extract_strided_slice %0 {offsets = [0, 4], sizes = [16, 1], strides = [1, 1]} : vector<32x15xf32> to vector<16x1xf32>
    %197 = vector.extract_strided_slice %0 {offsets = [0, 5], sizes = [16, 1], strides = [1, 1]} : vector<32x15xf32> to vector<16x1xf32>
    %198 = arith.mulf %180, %180 : vector<16x16xf32>
    %199 = arith.addf %180, %182 : vector<16x16xf32>
    %200 = arith.mulf %182, %182 : vector<16x16xf32>
    %201 = arith.addf %198, %200 : vector<16x16xf32>
    %202 = arith.addf %199, %193 : vector<16x16xf32>
    %203 = arith.mulf %193, %193 : vector<16x16xf32>
    %204 = arith.addf %201, %203 : vector<16x16xf32>
    %205 = arith.addf %202, %195 : vector<16x16xf32>
    %206 = arith.mulf %195, %195 : vector<16x16xf32>
    %207 = arith.addf %204, %206 : vector<16x16xf32>
    %cst_51 = arith.constant dense<0.000000e+00> : vector<16xf32>
    %208 = vector.multi_reduction <add>, %205, %cst_51 [1] : vector<16x16xf32> to vector<16xf32>
    %209 = vector.shape_cast %208 : vector<16xf32> to vector<16x1xf32>
    %cst_52 = arith.constant 1.562500e-02 : f32
    %210 = vector.broadcast %cst_52 : f32 to vector<16x1xf32>
    %211 = arith.mulf %209, %210 : vector<16x1xf32>
    %cst_53 = arith.constant dense<0.000000e+00> : vector<16xf32>
    %212 = vector.multi_reduction <add>, %207, %cst_53 [1] : vector<16x16xf32> to vector<16xf32>
    %213 = vector.shape_cast %212 : vector<16xf32> to vector<16x1xf32>
    %cst_54 = arith.constant 1.562500e-02 : f32
    %214 = vector.broadcast %cst_54 : f32 to vector<16x1xf32>
    %215 = arith.mulf %213, %214 : vector<16x1xf32>
    %216 = arith.mulf %211, %211 : vector<16x1xf32>
    %217 = arith.subf %215, %216 : vector<16x1xf32>
    %cst_55 = arith.constant 0.000000e+00 : f32
    %218 = vector.broadcast %cst_55 : f32 to vector<16x1xf32>
    %219 = arith.maximumf %217, %218 : vector<16x1xf32>
    %cst_56 = arith.constant 9.99999974E-6 : f32
    %220 = vector.broadcast %cst_56 : f32 to vector<16x1xf32>
    %221 = arith.addf %219, %220 : vector<16x1xf32>
    %222 = math.rsqrt %221 : vector<16x1xf32>
    %223 = arith.mulf %222, %196 : vector<16x1xf32>
    %224 = arith.mulf %211, %223 : vector<16x1xf32>
    %225 = arith.subf %197, %224 : vector<16x1xf32>
    %226 = vector.broadcast %223 : vector<16x1xf32> to vector<16x16xf32>
    %227 = arith.mulf %180, %226 : vector<16x16xf32>
    %228 = vector.broadcast %225 : vector<16x1xf32> to vector<16x16xf32>
    %229 = arith.addf %227, %228 : vector<16x16xf32>
    %cst_57 = arith.constant 0.000000e+00 : f32
    %230 = vector.broadcast %cst_57 : f32 to vector<16x16xf32>
    %231 = arith.maximumf %229, %230 : vector<16x16xf32>
    %232 = vector.broadcast %223 : vector<16x1xf32> to vector<16x16xf32>
    %233 = arith.mulf %182, %232 : vector<16x16xf32>
    %234 = vector.broadcast %225 : vector<16x1xf32> to vector<16x16xf32>
    %235 = arith.addf %233, %234 : vector<16x16xf32>
    %cst_58 = arith.constant 0.000000e+00 : f32
    %236 = vector.broadcast %cst_58 : f32 to vector<16x16xf32>
    %237 = arith.maximumf %235, %236 : vector<16x16xf32>
    %238 = vector.broadcast %223 : vector<16x1xf32> to vector<16x16xf32>
    %239 = arith.mulf %193, %238 : vector<16x16xf32>
    %240 = vector.broadcast %225 : vector<16x1xf32> to vector<16x16xf32>
    %241 = arith.addf %239, %240 : vector<16x16xf32>
    %cst_59 = arith.constant 0.000000e+00 : f32
    %242 = vector.broadcast %cst_59 : f32 to vector<16x16xf32>
    %243 = arith.maximumf %241, %242 : vector<16x16xf32>
    %244 = vector.broadcast %223 : vector<16x1xf32> to vector<16x16xf32>
    %245 = arith.mulf %195, %244 : vector<16x16xf32>
    %246 = vector.broadcast %225 : vector<16x1xf32> to vector<16x16xf32>
    %247 = arith.addf %245, %246 : vector<16x16xf32>
    %cst_60 = arith.constant 0.000000e+00 : f32
    %248 = vector.broadcast %cst_60 : f32 to vector<16x16xf32>
    %249 = arith.maximumf %247, %248 : vector<16x16xf32>
    %c0_61 = arith.constant 0 : index
    %c0_62 = arith.constant 0 : index
    %250 = vector.load %arg5[%c0_61, %c0_62] : memref<48x16xbf16, #tpu.memory_space<vmem>>, vector<48x16xbf16>
    %251 = arith.truncf %231 : vector<16x16xf32> to vector<16x16xbf16>
    %cst_63 = arith.constant dense<0.000000e+00> : vector<48x16xf32>
    %252 = tpu.matmul %250, %251, %cst_63 {dimension_numbers = #tpu.dot_dimension_numbers<[1], [0], [0], [1], [0, 0, 1, 1], [], []>} : vector<48x16xbf16>, vector<16x16xbf16>, vector<48x16xf32> -> vector<48x16xf32>
    %253 = arith.truncf %237 : vector<16x16xf32> to vector<16x16xbf16>
    %cst_64 = arith.constant dense<0.000000e+00> : vector<48x16xf32>
    %254 = tpu.matmul %250, %253, %cst_64 {dimension_numbers = #tpu.dot_dimension_numbers<[1], [0], [0], [1], [0, 0, 1, 1], [], []>} : vector<48x16xbf16>, vector<16x16xbf16>, vector<48x16xf32> -> vector<48x16xf32>
    %255 = arith.truncf %243 : vector<16x16xf32> to vector<16x16xbf16>
    %cst_65 = arith.constant dense<0.000000e+00> : vector<48x16xf32>
    %256 = tpu.matmul %250, %255, %cst_65 {dimension_numbers = #tpu.dot_dimension_numbers<[1], [0], [0], [1], [0, 0, 1, 1], [], []>} : vector<48x16xbf16>, vector<16x16xbf16>, vector<48x16xf32> -> vector<48x16xf32>
    %257 = arith.truncf %249 : vector<16x16xf32> to vector<16x16xbf16>
    %cst_66 = arith.constant dense<0.000000e+00> : vector<48x16xf32>
    %258 = tpu.matmul %250, %257, %cst_66 {dimension_numbers = #tpu.dot_dimension_numbers<[1], [0], [0], [1], [0, 0, 1, 1], [], []>} : vector<48x16xbf16>, vector<16x16xbf16>, vector<48x16xf32> -> vector<48x16xf32>
    %259 = vector.extract_strided_slice %258 {offsets = [0, 0], sizes = [16, 16], strides = [1, 1]} : vector<48x16xf32> to vector<16x16xf32>
    %cst_67 = arith.constant 0.000000e+00 : f32
    %260 = vector.broadcast %cst_67 : f32 to vector<16x1xf32>
    %261 = vector.extract_strided_slice %259 {offsets = [0, 0], sizes = [16, 15], strides = [1, 1]} : vector<16x16xf32> to vector<16x15xf32>
    %262 = tpu.concatenate %260, %261 in 1 : vector<16x1xf32>, vector<16x15xf32> -> vector<16x16xf32>
    %cst_68 = arith.constant 0.000000e+00 : f32
    %263 = vector.shape_cast %19 : vector<1x16xi1> to vector<1x16xi1>
    %264 = vector.broadcast %263 : vector<1x16xi1> to vector<16x16xi1>
    %265 = vector.broadcast %cst_68 : f32 to vector<16x16xf32>
    %266 = arith.select %264, %262, %265 : vector<16x16xi1>, vector<16x16xf32>
    %267 = vector.extract_strided_slice %254 {offsets = [32, 0], sizes = [16, 16], strides = [1, 1]} : vector<48x16xf32> to vector<16x16xf32>
    %268 = vector.extract_strided_slice %252 {offsets = [16, 0], sizes = [16, 16], strides = [1, 1]} : vector<48x16xf32> to vector<16x16xf32>
    %269 = arith.addf %266, %268 : vector<16x16xf32>
    %270 = arith.addf %269, %267 : vector<16x16xf32>
    %271 = vector.extract_strided_slice %252 {offsets = [0, 0], sizes = [16, 16], strides = [1, 1]} : vector<48x16xf32> to vector<16x16xf32>
    %272 = vector.extract_strided_slice %256 {offsets = [32, 0], sizes = [16, 16], strides = [1, 1]} : vector<48x16xf32> to vector<16x16xf32>
    %273 = vector.extract_strided_slice %254 {offsets = [16, 0], sizes = [16, 16], strides = [1, 1]} : vector<48x16xf32> to vector<16x16xf32>
    %274 = arith.addf %271, %273 : vector<16x16xf32>
    %275 = arith.addf %274, %272 : vector<16x16xf32>
    %276 = vector.extract_strided_slice %254 {offsets = [0, 0], sizes = [16, 16], strides = [1, 1]} : vector<48x16xf32> to vector<16x16xf32>
    %277 = vector.extract_strided_slice %258 {offsets = [32, 0], sizes = [16, 16], strides = [1, 1]} : vector<48x16xf32> to vector<16x16xf32>
    %278 = vector.extract_strided_slice %256 {offsets = [16, 0], sizes = [16, 16], strides = [1, 1]} : vector<48x16xf32> to vector<16x16xf32>
    %279 = arith.addf %276, %278 : vector<16x16xf32>
    %280 = arith.addf %279, %277 : vector<16x16xf32>
    %281 = vector.extract_strided_slice %256 {offsets = [0, 0], sizes = [16, 16], strides = [1, 1]} : vector<48x16xf32> to vector<16x16xf32>
    %282 = vector.extract_strided_slice %252 {offsets = [32, 0], sizes = [16, 16], strides = [1, 1]} : vector<48x16xf32> to vector<16x16xf32>
    %283 = vector.extract_strided_slice %282 {offsets = [0, 1], sizes = [16, 15], strides = [1, 1]} : vector<16x16xf32> to vector<16x15xf32>
    %cst_69 = arith.constant 0.000000e+00 : f32
    %284 = vector.broadcast %cst_69 : f32 to vector<16x1xf32>
    %285 = tpu.concatenate %283, %284 in 1 : vector<16x15xf32>, vector<16x1xf32> -> vector<16x16xf32>
    %cst_70 = arith.constant 0.000000e+00 : f32
    %286 = vector.shape_cast %37 : vector<1x16xi1> to vector<1x16xi1>
    %287 = vector.broadcast %286 : vector<1x16xi1> to vector<16x16xi1>
    %288 = vector.broadcast %cst_70 : f32 to vector<16x16xf32>
    %289 = arith.select %287, %285, %288 : vector<16x16xi1>, vector<16x16xf32>
    %290 = vector.extract_strided_slice %258 {offsets = [16, 0], sizes = [16, 16], strides = [1, 1]} : vector<48x16xf32> to vector<16x16xf32>
    %291 = arith.addf %281, %290 : vector<16x16xf32>
    %292 = arith.addf %291, %289 : vector<16x16xf32>
    %293 = vector.extract_strided_slice %0 {offsets = [0, 6], sizes = [16, 1], strides = [1, 1]} : vector<32x15xf32> to vector<16x1xf32>
    %294 = vector.extract_strided_slice %0 {offsets = [0, 7], sizes = [16, 1], strides = [1, 1]} : vector<32x15xf32> to vector<16x1xf32>
    %295 = arith.mulf %270, %270 : vector<16x16xf32>
    %296 = arith.addf %270, %275 : vector<16x16xf32>
    %297 = arith.mulf %275, %275 : vector<16x16xf32>
    %298 = arith.addf %295, %297 : vector<16x16xf32>
    %299 = arith.addf %296, %280 : vector<16x16xf32>
    %300 = arith.mulf %280, %280 : vector<16x16xf32>
    %301 = arith.addf %298, %300 : vector<16x16xf32>
    %302 = arith.addf %299, %292 : vector<16x16xf32>
    %303 = arith.mulf %292, %292 : vector<16x16xf32>
    %304 = arith.addf %301, %303 : vector<16x16xf32>
    %cst_71 = arith.constant dense<0.000000e+00> : vector<16xf32>
    %305 = vector.multi_reduction <add>, %302, %cst_71 [1] : vector<16x16xf32> to vector<16xf32>
    %306 = vector.shape_cast %305 : vector<16xf32> to vector<16x1xf32>
    %cst_72 = arith.constant 1.562500e-02 : f32
    %307 = vector.broadcast %cst_72 : f32 to vector<16x1xf32>
    %308 = arith.mulf %306, %307 : vector<16x1xf32>
    %cst_73 = arith.constant dense<0.000000e+00> : vector<16xf32>
    %309 = vector.multi_reduction <add>, %304, %cst_73 [1] : vector<16x16xf32> to vector<16xf32>
    %310 = vector.shape_cast %309 : vector<16xf32> to vector<16x1xf32>
    %cst_74 = arith.constant 1.562500e-02 : f32
    %311 = vector.broadcast %cst_74 : f32 to vector<16x1xf32>
    %312 = arith.mulf %310, %311 : vector<16x1xf32>
    %313 = arith.mulf %308, %308 : vector<16x1xf32>
    %314 = arith.subf %312, %313 : vector<16x1xf32>
    %cst_75 = arith.constant 0.000000e+00 : f32
    %315 = vector.broadcast %cst_75 : f32 to vector<16x1xf32>
    %316 = arith.maximumf %314, %315 : vector<16x1xf32>
    %cst_76 = arith.constant 9.99999974E-6 : f32
    %317 = vector.broadcast %cst_76 : f32 to vector<16x1xf32>
    %318 = arith.addf %316, %317 : vector<16x1xf32>
    %319 = math.rsqrt %318 : vector<16x1xf32>
    %320 = arith.mulf %319, %293 : vector<16x1xf32>
    %321 = arith.mulf %308, %320 : vector<16x1xf32>
    %322 = arith.subf %294, %321 : vector<16x1xf32>
    %323 = vector.broadcast %320 : vector<16x1xf32> to vector<16x16xf32>
    %324 = arith.mulf %270, %323 : vector<16x16xf32>
    %325 = vector.broadcast %322 : vector<16x1xf32> to vector<16x16xf32>
    %326 = arith.addf %324, %325 : vector<16x16xf32>
    %cst_77 = arith.constant 0.000000e+00 : f32
    %327 = vector.broadcast %cst_77 : f32 to vector<16x16xf32>
    %328 = arith.maximumf %326, %327 : vector<16x16xf32>
    %329 = arith.addf %231, %328 : vector<16x16xf32>
    %330 = vector.broadcast %320 : vector<16x1xf32> to vector<16x16xf32>
    %331 = arith.mulf %275, %330 : vector<16x16xf32>
    %332 = vector.broadcast %322 : vector<16x1xf32> to vector<16x16xf32>
    %333 = arith.addf %331, %332 : vector<16x16xf32>
    %cst_78 = arith.constant 0.000000e+00 : f32
    %334 = vector.broadcast %cst_78 : f32 to vector<16x16xf32>
    %335 = arith.maximumf %333, %334 : vector<16x16xf32>
    %336 = arith.addf %237, %335 : vector<16x16xf32>
    %337 = vector.broadcast %320 : vector<16x1xf32> to vector<16x16xf32>
    %338 = arith.mulf %280, %337 : vector<16x16xf32>
    %339 = vector.broadcast %322 : vector<16x1xf32> to vector<16x16xf32>
    %340 = arith.addf %338, %339 : vector<16x16xf32>
    %cst_79 = arith.constant 0.000000e+00 : f32
    %341 = vector.broadcast %cst_79 : f32 to vector<16x16xf32>
    %342 = arith.maximumf %340, %341 : vector<16x16xf32>
    %343 = arith.addf %243, %342 : vector<16x16xf32>
    %344 = vector.broadcast %320 : vector<16x1xf32> to vector<16x16xf32>
    %345 = arith.mulf %292, %344 : vector<16x16xf32>
    %346 = vector.broadcast %322 : vector<16x1xf32> to vector<16x16xf32>
    %347 = arith.addf %345, %346 : vector<16x16xf32>
    %cst_80 = arith.constant 0.000000e+00 : f32
    %348 = vector.broadcast %cst_80 : f32 to vector<16x16xf32>
    %349 = arith.maximumf %347, %348 : vector<16x16xf32>
    %350 = arith.addf %249, %349 : vector<16x16xf32>
    %c0_81 = arith.constant 0 : index
    %c0_82 = arith.constant 0 : index
    %351 = vector.load %arg6[%c0_81, %c0_82] : memref<32x16xbf16, #tpu.memory_space<vmem>>, vector<32x16xbf16>
    %352 = arith.truncf %329 : vector<16x16xf32> to vector<16x16xbf16>
    %cst_83 = arith.constant dense<0.000000e+00> : vector<32x16xf32>
    %353 = tpu.matmul %351, %352, %cst_83 {dimension_numbers = #tpu.dot_dimension_numbers<[1], [0], [0], [1], [0, 0, 1, 1], [], []>} : vector<32x16xbf16>, vector<16x16xbf16>, vector<32x16xf32> -> vector<32x16xf32>
    %354 = arith.truncf %336 : vector<16x16xf32> to vector<16x16xbf16>
    %cst_84 = arith.constant dense<0.000000e+00> : vector<32x16xf32>
    %355 = tpu.matmul %351, %354, %cst_84 {dimension_numbers = #tpu.dot_dimension_numbers<[1], [0], [0], [1], [0, 0, 1, 1], [], []>} : vector<32x16xbf16>, vector<16x16xbf16>, vector<32x16xf32> -> vector<32x16xf32>
    %356 = arith.truncf %343 : vector<16x16xf32> to vector<16x16xbf16>
    %cst_85 = arith.constant dense<0.000000e+00> : vector<32x16xf32>
    %357 = tpu.matmul %351, %356, %cst_85 {dimension_numbers = #tpu.dot_dimension_numbers<[1], [0], [0], [1], [0, 0, 1, 1], [], []>} : vector<32x16xbf16>, vector<16x16xbf16>, vector<32x16xf32> -> vector<32x16xf32>
    %358 = arith.truncf %350 : vector<16x16xf32> to vector<16x16xbf16>
    %cst_86 = arith.constant dense<0.000000e+00> : vector<32x16xf32>
    %359 = tpu.matmul %351, %358, %cst_86 {dimension_numbers = #tpu.dot_dimension_numbers<[1], [0], [0], [1], [0, 0, 1, 1], [], []>} : vector<32x16xbf16>, vector<16x16xbf16>, vector<32x16xf32> -> vector<32x16xf32>
    %360 = vector.extract_strided_slice %359 {offsets = [24, 0], sizes = [8, 16], strides = [1, 1]} : vector<32x16xf32> to vector<8x16xf32>
    %cst_87 = arith.constant 0.000000e+00 : f32
    %361 = vector.broadcast %cst_87 : f32 to vector<8x1xf32>
    %362 = vector.extract_strided_slice %360 {offsets = [0, 0], sizes = [8, 15], strides = [1, 1]} : vector<8x16xf32> to vector<8x15xf32>
    %363 = tpu.concatenate %361, %362 in 1 : vector<8x1xf32>, vector<8x15xf32> -> vector<8x16xf32>
    %cst_88 = arith.constant 0.000000e+00 : f32
    %364 = vector.shape_cast %19 : vector<1x16xi1> to vector<1x16xi1>
    %365 = vector.broadcast %364 : vector<1x16xi1> to vector<8x16xi1>
    %366 = vector.broadcast %cst_88 : f32 to vector<8x16xf32>
    %367 = arith.select %365, %363, %366 : vector<8x16xi1>, vector<8x16xf32>
    %368 = vector.extract_strided_slice %355 {offsets = [0, 0], sizes = [8, 16], strides = [1, 1]} : vector<32x16xf32> to vector<8x16xf32>
    %369 = vector.extract_strided_slice %353 {offsets = [8, 0], sizes = [8, 16], strides = [1, 1]} : vector<32x16xf32> to vector<8x16xf32>
    %370 = arith.addf %369, %367 : vector<8x16xf32>
    %371 = vector.extract_strided_slice %353 {offsets = [16, 0], sizes = [8, 16], strides = [1, 1]} : vector<32x16xf32> to vector<8x16xf32>
    %372 = arith.addf %371, %368 : vector<8x16xf32>
    %373 = vector.extract_strided_slice %353 {offsets = [24, 0], sizes = [8, 16], strides = [1, 1]} : vector<32x16xf32> to vector<8x16xf32>
    %374 = vector.extract_strided_slice %357 {offsets = [0, 0], sizes = [8, 16], strides = [1, 1]} : vector<32x16xf32> to vector<8x16xf32>
    %375 = vector.extract_strided_slice %355 {offsets = [8, 0], sizes = [8, 16], strides = [1, 1]} : vector<32x16xf32> to vector<8x16xf32>
    %376 = arith.addf %375, %373 : vector<8x16xf32>
    %377 = vector.extract_strided_slice %355 {offsets = [16, 0], sizes = [8, 16], strides = [1, 1]} : vector<32x16xf32> to vector<8x16xf32>
    %378 = arith.addf %377, %374 : vector<8x16xf32>
    %379 = vector.extract_strided_slice %355 {offsets = [24, 0], sizes = [8, 16], strides = [1, 1]} : vector<32x16xf32> to vector<8x16xf32>
    %380 = vector.extract_strided_slice %359 {offsets = [0, 0], sizes = [8, 16], strides = [1, 1]} : vector<32x16xf32> to vector<8x16xf32>
    %381 = vector.extract_strided_slice %357 {offsets = [8, 0], sizes = [8, 16], strides = [1, 1]} : vector<32x16xf32> to vector<8x16xf32>
    %382 = arith.addf %381, %379 : vector<8x16xf32>
    %383 = vector.extract_strided_slice %357 {offsets = [16, 0], sizes = [8, 16], strides = [1, 1]} : vector<32x16xf32> to vector<8x16xf32>
    %384 = arith.addf %383, %380 : vector<8x16xf32>
    %385 = vector.extract_strided_slice %357 {offsets = [24, 0], sizes = [8, 16], strides = [1, 1]} : vector<32x16xf32> to vector<8x16xf32>
    %386 = vector.extract_strided_slice %353 {offsets = [0, 0], sizes = [8, 16], strides = [1, 1]} : vector<32x16xf32> to vector<8x16xf32>
    %387 = vector.extract_strided_slice %386 {offsets = [0, 1], sizes = [8, 15], strides = [1, 1]} : vector<8x16xf32> to vector<8x15xf32>
    %cst_89 = arith.constant 0.000000e+00 : f32
    %388 = vector.broadcast %cst_89 : f32 to vector<8x1xf32>
    %389 = tpu.concatenate %387, %388 in 1 : vector<8x15xf32>, vector<8x1xf32> -> vector<8x16xf32>
    %cst_90 = arith.constant 0.000000e+00 : f32
    %390 = vector.shape_cast %37 : vector<1x16xi1> to vector<1x16xi1>
    %391 = vector.broadcast %390 : vector<1x16xi1> to vector<8x16xi1>
    %392 = vector.broadcast %cst_90 : f32 to vector<8x16xf32>
    %393 = arith.select %391, %389, %392 : vector<8x16xi1>, vector<8x16xf32>
    %394 = vector.extract_strided_slice %359 {offsets = [8, 0], sizes = [8, 16], strides = [1, 1]} : vector<32x16xf32> to vector<8x16xf32>
    %395 = arith.addf %394, %385 : vector<8x16xf32>
    %396 = vector.extract_strided_slice %359 {offsets = [16, 0], sizes = [8, 16], strides = [1, 1]} : vector<32x16xf32> to vector<8x16xf32>
    %397 = arith.addf %396, %393 : vector<8x16xf32>
    %398 = vector.extract_strided_slice %0 {offsets = [0, 8], sizes = [8, 1], strides = [1, 1]} : vector<32x15xf32> to vector<8x1xf32>
    %399 = vector.extract_strided_slice %0 {offsets = [0, 9], sizes = [8, 1], strides = [1, 1]} : vector<32x15xf32> to vector<8x1xf32>
    %400 = arith.mulf %370, %370 : vector<8x16xf32>
    %401 = arith.addf %370, %372 : vector<8x16xf32>
    %402 = arith.mulf %372, %372 : vector<8x16xf32>
    %403 = arith.addf %400, %402 : vector<8x16xf32>
    %404 = arith.addf %401, %376 : vector<8x16xf32>
    %405 = arith.mulf %376, %376 : vector<8x16xf32>
    %406 = arith.addf %403, %405 : vector<8x16xf32>
    %407 = arith.addf %404, %378 : vector<8x16xf32>
    %408 = arith.mulf %378, %378 : vector<8x16xf32>
    %409 = arith.addf %406, %408 : vector<8x16xf32>
    %410 = arith.addf %407, %382 : vector<8x16xf32>
    %411 = arith.mulf %382, %382 : vector<8x16xf32>
    %412 = arith.addf %409, %411 : vector<8x16xf32>
    %413 = arith.addf %410, %384 : vector<8x16xf32>
    %414 = arith.mulf %384, %384 : vector<8x16xf32>
    %415 = arith.addf %412, %414 : vector<8x16xf32>
    %416 = arith.addf %413, %395 : vector<8x16xf32>
    %417 = arith.mulf %395, %395 : vector<8x16xf32>
    %418 = arith.addf %415, %417 : vector<8x16xf32>
    %419 = arith.addf %416, %397 : vector<8x16xf32>
    %420 = arith.mulf %397, %397 : vector<8x16xf32>
    %421 = arith.addf %418, %420 : vector<8x16xf32>
    %cst_91 = arith.constant dense<0.000000e+00> : vector<8xf32>
    %422 = vector.multi_reduction <add>, %419, %cst_91 [1] : vector<8x16xf32> to vector<8xf32>
    %423 = vector.shape_cast %422 : vector<8xf32> to vector<8x1xf32>
    %cst_92 = arith.constant 7.812500e-03 : f32
    %424 = vector.broadcast %cst_92 : f32 to vector<8x1xf32>
    %425 = arith.mulf %423, %424 : vector<8x1xf32>
    %cst_93 = arith.constant dense<0.000000e+00> : vector<8xf32>
    %426 = vector.multi_reduction <add>, %421, %cst_93 [1] : vector<8x16xf32> to vector<8xf32>
    %427 = vector.shape_cast %426 : vector<8xf32> to vector<8x1xf32>
    %cst_94 = arith.constant 7.812500e-03 : f32
    %428 = vector.broadcast %cst_94 : f32 to vector<8x1xf32>
    %429 = arith.mulf %427, %428 : vector<8x1xf32>
    %430 = arith.mulf %425, %425 : vector<8x1xf32>
    %431 = arith.subf %429, %430 : vector<8x1xf32>
    %cst_95 = arith.constant 0.000000e+00 : f32
    %432 = vector.broadcast %cst_95 : f32 to vector<8x1xf32>
    %433 = arith.maximumf %431, %432 : vector<8x1xf32>
    %cst_96 = arith.constant 9.99999974E-6 : f32
    %434 = vector.broadcast %cst_96 : f32 to vector<8x1xf32>
    %435 = arith.addf %433, %434 : vector<8x1xf32>
    %436 = math.rsqrt %435 : vector<8x1xf32>
    %437 = arith.mulf %436, %398 : vector<8x1xf32>
    %438 = arith.mulf %425, %437 : vector<8x1xf32>
    %439 = arith.subf %399, %438 : vector<8x1xf32>
    %440 = vector.broadcast %437 : vector<8x1xf32> to vector<8x16xf32>
    %441 = arith.mulf %370, %440 : vector<8x16xf32>
    %442 = vector.broadcast %439 : vector<8x1xf32> to vector<8x16xf32>
    %443 = arith.addf %441, %442 : vector<8x16xf32>
    %cst_97 = arith.constant 0.000000e+00 : f32
    %444 = vector.broadcast %cst_97 : f32 to vector<8x16xf32>
    %445 = arith.maximumf %443, %444 : vector<8x16xf32>
    %446 = vector.broadcast %437 : vector<8x1xf32> to vector<8x16xf32>
    %447 = arith.mulf %372, %446 : vector<8x16xf32>
    %448 = vector.broadcast %439 : vector<8x1xf32> to vector<8x16xf32>
    %449 = arith.addf %447, %448 : vector<8x16xf32>
    %cst_98 = arith.constant 0.000000e+00 : f32
    %450 = vector.broadcast %cst_98 : f32 to vector<8x16xf32>
    %451 = arith.maximumf %449, %450 : vector<8x16xf32>
    %452 = vector.broadcast %437 : vector<8x1xf32> to vector<8x16xf32>
    %453 = arith.mulf %376, %452 : vector<8x16xf32>
    %454 = vector.broadcast %439 : vector<8x1xf32> to vector<8x16xf32>
    %455 = arith.addf %453, %454 : vector<8x16xf32>
    %cst_99 = arith.constant 0.000000e+00 : f32
    %456 = vector.broadcast %cst_99 : f32 to vector<8x16xf32>
    %457 = arith.maximumf %455, %456 : vector<8x16xf32>
    %458 = vector.broadcast %437 : vector<8x1xf32> to vector<8x16xf32>
    %459 = arith.mulf %378, %458 : vector<8x16xf32>
    %460 = vector.broadcast %439 : vector<8x1xf32> to vector<8x16xf32>
    %461 = arith.addf %459, %460 : vector<8x16xf32>
    %cst_100 = arith.constant 0.000000e+00 : f32
    %462 = vector.broadcast %cst_100 : f32 to vector<8x16xf32>
    %463 = arith.maximumf %461, %462 : vector<8x16xf32>
    %464 = vector.broadcast %437 : vector<8x1xf32> to vector<8x16xf32>
    %465 = arith.mulf %382, %464 : vector<8x16xf32>
    %466 = vector.broadcast %439 : vector<8x1xf32> to vector<8x16xf32>
    %467 = arith.addf %465, %466 : vector<8x16xf32>
    %cst_101 = arith.constant 0.000000e+00 : f32
    %468 = vector.broadcast %cst_101 : f32 to vector<8x16xf32>
    %469 = arith.maximumf %467, %468 : vector<8x16xf32>
    %470 = vector.broadcast %437 : vector<8x1xf32> to vector<8x16xf32>
    %471 = arith.mulf %384, %470 : vector<8x16xf32>
    %472 = vector.broadcast %439 : vector<8x1xf32> to vector<8x16xf32>
    %473 = arith.addf %471, %472 : vector<8x16xf32>
    %cst_102 = arith.constant 0.000000e+00 : f32
    %474 = vector.broadcast %cst_102 : f32 to vector<8x16xf32>
    %475 = arith.maximumf %473, %474 : vector<8x16xf32>
    %476 = vector.broadcast %437 : vector<8x1xf32> to vector<8x16xf32>
    %477 = arith.mulf %395, %476 : vector<8x16xf32>
    %478 = vector.broadcast %439 : vector<8x1xf32> to vector<8x16xf32>
    %479 = arith.addf %477, %478 : vector<8x16xf32>
    %cst_103 = arith.constant 0.000000e+00 : f32
    %480 = vector.broadcast %cst_103 : f32 to vector<8x16xf32>
    %481 = arith.maximumf %479, %480 : vector<8x16xf32>
    %482 = vector.broadcast %437 : vector<8x1xf32> to vector<8x16xf32>
    %483 = arith.mulf %397, %482 : vector<8x16xf32>
    %484 = vector.broadcast %439 : vector<8x1xf32> to vector<8x16xf32>
    %485 = arith.addf %483, %484 : vector<8x16xf32>
    %cst_104 = arith.constant 0.000000e+00 : f32
    %486 = vector.broadcast %cst_104 : f32 to vector<8x16xf32>
    %487 = arith.maximumf %485, %486 : vector<8x16xf32>
    %c0_105 = arith.constant 0 : index
    %c0_106 = arith.constant 0 : index
    %488 = vector.load %arg7[%c0_105, %c0_106] : memref<24x8xbf16, #tpu.memory_space<vmem>>, vector<24x8xbf16>
    %489 = arith.truncf %445 : vector<8x16xf32> to vector<8x16xbf16>
    %cst_107 = arith.constant dense<0.000000e+00> : vector<24x16xf32>
    %490 = tpu.matmul %488, %489, %cst_107 {dimension_numbers = #tpu.dot_dimension_numbers<[1], [0], [0], [1], [0, 0, 1, 1], [], []>} : vector<24x8xbf16>, vector<8x16xbf16>, vector<24x16xf32> -> vector<24x16xf32>
    %491 = arith.truncf %451 : vector<8x16xf32> to vector<8x16xbf16>
    %cst_108 = arith.constant dense<0.000000e+00> : vector<24x16xf32>
    %492 = tpu.matmul %488, %491, %cst_108 {dimension_numbers = #tpu.dot_dimension_numbers<[1], [0], [0], [1], [0, 0, 1, 1], [], []>} : vector<24x8xbf16>, vector<8x16xbf16>, vector<24x16xf32> -> vector<24x16xf32>
    %493 = arith.truncf %457 : vector<8x16xf32> to vector<8x16xbf16>
    %cst_109 = arith.constant dense<0.000000e+00> : vector<24x16xf32>
    %494 = tpu.matmul %488, %493, %cst_109 {dimension_numbers = #tpu.dot_dimension_numbers<[1], [0], [0], [1], [0, 0, 1, 1], [], []>} : vector<24x8xbf16>, vector<8x16xbf16>, vector<24x16xf32> -> vector<24x16xf32>
    %495 = arith.truncf %463 : vector<8x16xf32> to vector<8x16xbf16>
    %cst_110 = arith.constant dense<0.000000e+00> : vector<24x16xf32>
    %496 = tpu.matmul %488, %495, %cst_110 {dimension_numbers = #tpu.dot_dimension_numbers<[1], [0], [0], [1], [0, 0, 1, 1], [], []>} : vector<24x8xbf16>, vector<8x16xbf16>, vector<24x16xf32> -> vector<24x16xf32>
    %497 = arith.truncf %469 : vector<8x16xf32> to vector<8x16xbf16>
    %cst_111 = arith.constant dense<0.000000e+00> : vector<24x16xf32>
    %498 = tpu.matmul %488, %497, %cst_111 {dimension_numbers = #tpu.dot_dimension_numbers<[1], [0], [0], [1], [0, 0, 1, 1], [], []>} : vector<24x8xbf16>, vector<8x16xbf16>, vector<24x16xf32> -> vector<24x16xf32>
    %499 = arith.truncf %475 : vector<8x16xf32> to vector<8x16xbf16>
    %cst_112 = arith.constant dense<0.000000e+00> : vector<24x16xf32>
    %500 = tpu.matmul %488, %499, %cst_112 {dimension_numbers = #tpu.dot_dimension_numbers<[1], [0], [0], [1], [0, 0, 1, 1], [], []>} : vector<24x8xbf16>, vector<8x16xbf16>, vector<24x16xf32> -> vector<24x16xf32>
    %501 = arith.truncf %481 : vector<8x16xf32> to vector<8x16xbf16>
    %cst_113 = arith.constant dense<0.000000e+00> : vector<24x16xf32>
    %502 = tpu.matmul %488, %501, %cst_113 {dimension_numbers = #tpu.dot_dimension_numbers<[1], [0], [0], [1], [0, 0, 1, 1], [], []>} : vector<24x8xbf16>, vector<8x16xbf16>, vector<24x16xf32> -> vector<24x16xf32>
    %503 = arith.truncf %487 : vector<8x16xf32> to vector<8x16xbf16>
    %cst_114 = arith.constant dense<0.000000e+00> : vector<24x16xf32>
    %504 = tpu.matmul %488, %503, %cst_114 {dimension_numbers = #tpu.dot_dimension_numbers<[1], [0], [0], [1], [0, 0, 1, 1], [], []>} : vector<24x8xbf16>, vector<8x16xbf16>, vector<24x16xf32> -> vector<24x16xf32>
    %505 = vector.extract_strided_slice %504 {offsets = [0, 0], sizes = [8, 16], strides = [1, 1]} : vector<24x16xf32> to vector<8x16xf32>
    %cst_115 = arith.constant 0.000000e+00 : f32
    %506 = vector.broadcast %cst_115 : f32 to vector<8x1xf32>
    %507 = vector.extract_strided_slice %505 {offsets = [0, 0], sizes = [8, 15], strides = [1, 1]} : vector<8x16xf32> to vector<8x15xf32>
    %508 = tpu.concatenate %506, %507 in 1 : vector<8x1xf32>, vector<8x15xf32> -> vector<8x16xf32>
    %cst_116 = arith.constant 0.000000e+00 : f32
    %509 = vector.shape_cast %19 : vector<1x16xi1> to vector<1x16xi1>
    %510 = vector.broadcast %509 : vector<1x16xi1> to vector<8x16xi1>
    %511 = vector.broadcast %cst_116 : f32 to vector<8x16xf32>
    %512 = arith.select %510, %508, %511 : vector<8x16xi1>, vector<8x16xf32>
    %513 = vector.extract_strided_slice %492 {offsets = [16, 0], sizes = [8, 16], strides = [1, 1]} : vector<24x16xf32> to vector<8x16xf32>
    %514 = vector.extract_strided_slice %490 {offsets = [8, 0], sizes = [8, 16], strides = [1, 1]} : vector<24x16xf32> to vector<8x16xf32>
    %515 = arith.addf %512, %514 : vector<8x16xf32>
    %516 = arith.addf %515, %513 : vector<8x16xf32>
    %517 = vector.extract_strided_slice %490 {offsets = [0, 0], sizes = [8, 16], strides = [1, 1]} : vector<24x16xf32> to vector<8x16xf32>
    %518 = vector.extract_strided_slice %494 {offsets = [16, 0], sizes = [8, 16], strides = [1, 1]} : vector<24x16xf32> to vector<8x16xf32>
    %519 = vector.extract_strided_slice %492 {offsets = [8, 0], sizes = [8, 16], strides = [1, 1]} : vector<24x16xf32> to vector<8x16xf32>
    %520 = arith.addf %517, %519 : vector<8x16xf32>
    %521 = arith.addf %520, %518 : vector<8x16xf32>
    %522 = vector.extract_strided_slice %492 {offsets = [0, 0], sizes = [8, 16], strides = [1, 1]} : vector<24x16xf32> to vector<8x16xf32>
    %523 = vector.extract_strided_slice %496 {offsets = [16, 0], sizes = [8, 16], strides = [1, 1]} : vector<24x16xf32> to vector<8x16xf32>
    %524 = vector.extract_strided_slice %494 {offsets = [8, 0], sizes = [8, 16], strides = [1, 1]} : vector<24x16xf32> to vector<8x16xf32>
    %525 = arith.addf %522, %524 : vector<8x16xf32>
    %526 = arith.addf %525, %523 : vector<8x16xf32>
    %527 = vector.extract_strided_slice %494 {offsets = [0, 0], sizes = [8, 16], strides = [1, 1]} : vector<24x16xf32> to vector<8x16xf32>
    %528 = vector.extract_strided_slice %498 {offsets = [16, 0], sizes = [8, 16], strides = [1, 1]} : vector<24x16xf32> to vector<8x16xf32>
    %529 = vector.extract_strided_slice %496 {offsets = [8, 0], sizes = [8, 16], strides = [1, 1]} : vector<24x16xf32> to vector<8x16xf32>
    %530 = arith.addf %527, %529 : vector<8x16xf32>
    %531 = arith.addf %530, %528 : vector<8x16xf32>
    %532 = vector.extract_strided_slice %496 {offsets = [0, 0], sizes = [8, 16], strides = [1, 1]} : vector<24x16xf32> to vector<8x16xf32>
    %533 = vector.extract_strided_slice %500 {offsets = [16, 0], sizes = [8, 16], strides = [1, 1]} : vector<24x16xf32> to vector<8x16xf32>
    %534 = vector.extract_strided_slice %498 {offsets = [8, 0], sizes = [8, 16], strides = [1, 1]} : vector<24x16xf32> to vector<8x16xf32>
    %535 = arith.addf %532, %534 : vector<8x16xf32>
    %536 = arith.addf %535, %533 : vector<8x16xf32>
    %537 = vector.extract_strided_slice %498 {offsets = [0, 0], sizes = [8, 16], strides = [1, 1]} : vector<24x16xf32> to vector<8x16xf32>
    %538 = vector.extract_strided_slice %502 {offsets = [16, 0], sizes = [8, 16], strides = [1, 1]} : vector<24x16xf32> to vector<8x16xf32>
    %539 = vector.extract_strided_slice %500 {offsets = [8, 0], sizes = [8, 16], strides = [1, 1]} : vector<24x16xf32> to vector<8x16xf32>
    %540 = arith.addf %537, %539 : vector<8x16xf32>
    %541 = arith.addf %540, %538 : vector<8x16xf32>
    %542 = vector.extract_strided_slice %500 {offsets = [0, 0], sizes = [8, 16], strides = [1, 1]} : vector<24x16xf32> to vector<8x16xf32>
    %543 = vector.extract_strided_slice %504 {offsets = [16, 0], sizes = [8, 16], strides = [1, 1]} : vector<24x16xf32> to vector<8x16xf32>
    %544 = vector.extract_strided_slice %502 {offsets = [8, 0], sizes = [8, 16], strides = [1, 1]} : vector<24x16xf32> to vector<8x16xf32>
    %545 = arith.addf %542, %544 : vector<8x16xf32>
    %546 = arith.addf %545, %543 : vector<8x16xf32>
    %547 = vector.extract_strided_slice %502 {offsets = [0, 0], sizes = [8, 16], strides = [1, 1]} : vector<24x16xf32> to vector<8x16xf32>
    %548 = vector.extract_strided_slice %490 {offsets = [16, 0], sizes = [8, 16], strides = [1, 1]} : vector<24x16xf32> to vector<8x16xf32>
    %549 = vector.extract_strided_slice %548 {offsets = [0, 1], sizes = [8, 15], strides = [1, 1]} : vector<8x16xf32> to vector<8x15xf32>
    %cst_117 = arith.constant 0.000000e+00 : f32
    %550 = vector.broadcast %cst_117 : f32 to vector<8x1xf32>
    %551 = tpu.concatenate %549, %550 in 1 : vector<8x15xf32>, vector<8x1xf32> -> vector<8x16xf32>
    %cst_118 = arith.constant 0.000000e+00 : f32
    %552 = vector.shape_cast %37 : vector<1x16xi1> to vector<1x16xi1>
    %553 = vector.broadcast %552 : vector<1x16xi1> to vector<8x16xi1>
    %554 = vector.broadcast %cst_118 : f32 to vector<8x16xf32>
    %555 = arith.select %553, %551, %554 : vector<8x16xi1>, vector<8x16xf32>
    %556 = vector.extract_strided_slice %504 {offsets = [8, 0], sizes = [8, 16], strides = [1, 1]} : vector<24x16xf32> to vector<8x16xf32>
    %557 = arith.addf %547, %556 : vector<8x16xf32>
    %558 = arith.addf %557, %555 : vector<8x16xf32>
    %559 = vector.extract_strided_slice %0 {offsets = [0, 10], sizes = [8, 1], strides = [1, 1]} : vector<32x15xf32> to vector<8x1xf32>
    %560 = vector.extract_strided_slice %0 {offsets = [0, 11], sizes = [8, 1], strides = [1, 1]} : vector<32x15xf32> to vector<8x1xf32>
    %561 = arith.mulf %516, %516 : vector<8x16xf32>
    %562 = arith.addf %516, %521 : vector<8x16xf32>
    %563 = arith.mulf %521, %521 : vector<8x16xf32>
    %564 = arith.addf %561, %563 : vector<8x16xf32>
    %565 = arith.addf %562, %526 : vector<8x16xf32>
    %566 = arith.mulf %526, %526 : vector<8x16xf32>
    %567 = arith.addf %564, %566 : vector<8x16xf32>
    %568 = arith.addf %565, %531 : vector<8x16xf32>
    %569 = arith.mulf %531, %531 : vector<8x16xf32>
    %570 = arith.addf %567, %569 : vector<8x16xf32>
    %571 = arith.addf %568, %536 : vector<8x16xf32>
    %572 = arith.mulf %536, %536 : vector<8x16xf32>
    %573 = arith.addf %570, %572 : vector<8x16xf32>
    %574 = arith.addf %571, %541 : vector<8x16xf32>
    %575 = arith.mulf %541, %541 : vector<8x16xf32>
    %576 = arith.addf %573, %575 : vector<8x16xf32>
    %577 = arith.addf %574, %546 : vector<8x16xf32>
    %578 = arith.mulf %546, %546 : vector<8x16xf32>
    %579 = arith.addf %576, %578 : vector<8x16xf32>
    %580 = arith.addf %577, %558 : vector<8x16xf32>
    %581 = arith.mulf %558, %558 : vector<8x16xf32>
    %582 = arith.addf %579, %581 : vector<8x16xf32>
    %cst_119 = arith.constant dense<0.000000e+00> : vector<8xf32>
    %583 = vector.multi_reduction <add>, %580, %cst_119 [1] : vector<8x16xf32> to vector<8xf32>
    %584 = vector.shape_cast %583 : vector<8xf32> to vector<8x1xf32>
    %cst_120 = arith.constant 7.812500e-03 : f32
    %585 = vector.broadcast %cst_120 : f32 to vector<8x1xf32>
    %586 = arith.mulf %584, %585 : vector<8x1xf32>
    %cst_121 = arith.constant dense<0.000000e+00> : vector<8xf32>
    %587 = vector.multi_reduction <add>, %582, %cst_121 [1] : vector<8x16xf32> to vector<8xf32>
    %588 = vector.shape_cast %587 : vector<8xf32> to vector<8x1xf32>
    %cst_122 = arith.constant 7.812500e-03 : f32
    %589 = vector.broadcast %cst_122 : f32 to vector<8x1xf32>
    %590 = arith.mulf %588, %589 : vector<8x1xf32>
    %591 = arith.mulf %586, %586 : vector<8x1xf32>
    %592 = arith.subf %590, %591 : vector<8x1xf32>
    %cst_123 = arith.constant 0.000000e+00 : f32
    %593 = vector.broadcast %cst_123 : f32 to vector<8x1xf32>
    %594 = arith.maximumf %592, %593 : vector<8x1xf32>
    %cst_124 = arith.constant 9.99999974E-6 : f32
    %595 = vector.broadcast %cst_124 : f32 to vector<8x1xf32>
    %596 = arith.addf %594, %595 : vector<8x1xf32>
    %597 = math.rsqrt %596 : vector<8x1xf32>
    %598 = arith.mulf %597, %559 : vector<8x1xf32>
    %599 = arith.mulf %586, %598 : vector<8x1xf32>
    %600 = arith.subf %560, %599 : vector<8x1xf32>
    %601 = vector.broadcast %598 : vector<8x1xf32> to vector<8x16xf32>
    %602 = arith.mulf %516, %601 : vector<8x16xf32>
    %603 = vector.broadcast %600 : vector<8x1xf32> to vector<8x16xf32>
    %604 = arith.addf %602, %603 : vector<8x16xf32>
    %cst_125 = arith.constant 0.000000e+00 : f32
    %605 = vector.broadcast %cst_125 : f32 to vector<8x16xf32>
    %606 = arith.maximumf %604, %605 : vector<8x16xf32>
    %607 = arith.addf %445, %606 : vector<8x16xf32>
    %608 = vector.broadcast %598 : vector<8x1xf32> to vector<8x16xf32>
    %609 = arith.mulf %521, %608 : vector<8x16xf32>
    %610 = vector.broadcast %600 : vector<8x1xf32> to vector<8x16xf32>
    %611 = arith.addf %609, %610 : vector<8x16xf32>
    %cst_126 = arith.constant 0.000000e+00 : f32
    %612 = vector.broadcast %cst_126 : f32 to vector<8x16xf32>
    %613 = arith.maximumf %611, %612 : vector<8x16xf32>
    %614 = arith.addf %451, %613 : vector<8x16xf32>
    %615 = vector.broadcast %598 : vector<8x1xf32> to vector<8x16xf32>
    %616 = arith.mulf %526, %615 : vector<8x16xf32>
    %617 = vector.broadcast %600 : vector<8x1xf32> to vector<8x16xf32>
    %618 = arith.addf %616, %617 : vector<8x16xf32>
    %cst_127 = arith.constant 0.000000e+00 : f32
    %619 = vector.broadcast %cst_127 : f32 to vector<8x16xf32>
    %620 = arith.maximumf %618, %619 : vector<8x16xf32>
    %621 = arith.addf %457, %620 : vector<8x16xf32>
    %622 = vector.broadcast %598 : vector<8x1xf32> to vector<8x16xf32>
    %623 = arith.mulf %531, %622 : vector<8x16xf32>
    %624 = vector.broadcast %600 : vector<8x1xf32> to vector<8x16xf32>
    %625 = arith.addf %623, %624 : vector<8x16xf32>
    %cst_128 = arith.constant 0.000000e+00 : f32
    %626 = vector.broadcast %cst_128 : f32 to vector<8x16xf32>
    %627 = arith.maximumf %625, %626 : vector<8x16xf32>
    %628 = arith.addf %463, %627 : vector<8x16xf32>
    %629 = vector.broadcast %598 : vector<8x1xf32> to vector<8x16xf32>
    %630 = arith.mulf %536, %629 : vector<8x16xf32>
    %631 = vector.broadcast %600 : vector<8x1xf32> to vector<8x16xf32>
    %632 = arith.addf %630, %631 : vector<8x16xf32>
    %cst_129 = arith.constant 0.000000e+00 : f32
    %633 = vector.broadcast %cst_129 : f32 to vector<8x16xf32>
    %634 = arith.maximumf %632, %633 : vector<8x16xf32>
    %635 = arith.addf %469, %634 : vector<8x16xf32>
    %636 = vector.broadcast %598 : vector<8x1xf32> to vector<8x16xf32>
    %637 = arith.mulf %541, %636 : vector<8x16xf32>
    %638 = vector.broadcast %600 : vector<8x1xf32> to vector<8x16xf32>
    %639 = arith.addf %637, %638 : vector<8x16xf32>
    %cst_130 = arith.constant 0.000000e+00 : f32
    %640 = vector.broadcast %cst_130 : f32 to vector<8x16xf32>
    %641 = arith.maximumf %639, %640 : vector<8x16xf32>
    %642 = arith.addf %475, %641 : vector<8x16xf32>
    %643 = vector.broadcast %598 : vector<8x1xf32> to vector<8x16xf32>
    %644 = arith.mulf %546, %643 : vector<8x16xf32>
    %645 = vector.broadcast %600 : vector<8x1xf32> to vector<8x16xf32>
    %646 = arith.addf %644, %645 : vector<8x16xf32>
    %cst_131 = arith.constant 0.000000e+00 : f32
    %647 = vector.broadcast %cst_131 : f32 to vector<8x16xf32>
    %648 = arith.maximumf %646, %647 : vector<8x16xf32>
    %649 = arith.addf %481, %648 : vector<8x16xf32>
    %650 = vector.broadcast %598 : vector<8x1xf32> to vector<8x16xf32>
    %651 = arith.mulf %558, %650 : vector<8x16xf32>
    %652 = vector.broadcast %600 : vector<8x1xf32> to vector<8x16xf32>
    %653 = arith.addf %651, %652 : vector<8x16xf32>
    %cst_132 = arith.constant 0.000000e+00 : f32
    %654 = vector.broadcast %cst_132 : f32 to vector<8x16xf32>
    %655 = arith.maximumf %653, %654 : vector<8x16xf32>
    %656 = arith.addf %487, %655 : vector<8x16xf32>
    %c0_133 = arith.constant 0 : index
    %c0_134 = arith.constant 0 : index
    %657 = vector.load %arg8[%c0_133, %c0_134] : memref<12x8xbf16, #tpu.memory_space<vmem>>, vector<12x8xbf16>
    %658 = arith.truncf %607 : vector<8x16xf32> to vector<8x16xbf16>
    %cst_135 = arith.constant dense<0.000000e+00> : vector<12x16xf32>
    %659 = tpu.matmul %657, %658, %cst_135 {dimension_numbers = #tpu.dot_dimension_numbers<[1], [0], [0], [1], [0, 0, 1, 1], [], []>} : vector<12x8xbf16>, vector<8x16xbf16>, vector<12x16xf32> -> vector<12x16xf32>
    %660 = arith.truncf %614 : vector<8x16xf32> to vector<8x16xbf16>
    %cst_136 = arith.constant dense<0.000000e+00> : vector<12x16xf32>
    %661 = tpu.matmul %657, %660, %cst_136 {dimension_numbers = #tpu.dot_dimension_numbers<[1], [0], [0], [1], [0, 0, 1, 1], [], []>} : vector<12x8xbf16>, vector<8x16xbf16>, vector<12x16xf32> -> vector<12x16xf32>
    %662 = arith.truncf %621 : vector<8x16xf32> to vector<8x16xbf16>
    %cst_137 = arith.constant dense<0.000000e+00> : vector<12x16xf32>
    %663 = tpu.matmul %657, %662, %cst_137 {dimension_numbers = #tpu.dot_dimension_numbers<[1], [0], [0], [1], [0, 0, 1, 1], [], []>} : vector<12x8xbf16>, vector<8x16xbf16>, vector<12x16xf32> -> vector<12x16xf32>
    %664 = arith.truncf %628 : vector<8x16xf32> to vector<8x16xbf16>
    %cst_138 = arith.constant dense<0.000000e+00> : vector<12x16xf32>
    %665 = tpu.matmul %657, %664, %cst_138 {dimension_numbers = #tpu.dot_dimension_numbers<[1], [0], [0], [1], [0, 0, 1, 1], [], []>} : vector<12x8xbf16>, vector<8x16xbf16>, vector<12x16xf32> -> vector<12x16xf32>
    %666 = arith.truncf %635 : vector<8x16xf32> to vector<8x16xbf16>
    %cst_139 = arith.constant dense<0.000000e+00> : vector<12x16xf32>
    %667 = tpu.matmul %657, %666, %cst_139 {dimension_numbers = #tpu.dot_dimension_numbers<[1], [0], [0], [1], [0, 0, 1, 1], [], []>} : vector<12x8xbf16>, vector<8x16xbf16>, vector<12x16xf32> -> vector<12x16xf32>
    %668 = arith.truncf %642 : vector<8x16xf32> to vector<8x16xbf16>
    %cst_140 = arith.constant dense<0.000000e+00> : vector<12x16xf32>
    %669 = tpu.matmul %657, %668, %cst_140 {dimension_numbers = #tpu.dot_dimension_numbers<[1], [0], [0], [1], [0, 0, 1, 1], [], []>} : vector<12x8xbf16>, vector<8x16xbf16>, vector<12x16xf32> -> vector<12x16xf32>
    %670 = arith.truncf %649 : vector<8x16xf32> to vector<8x16xbf16>
    %cst_141 = arith.constant dense<0.000000e+00> : vector<12x16xf32>
    %671 = tpu.matmul %657, %670, %cst_141 {dimension_numbers = #tpu.dot_dimension_numbers<[1], [0], [0], [1], [0, 0, 1, 1], [], []>} : vector<12x8xbf16>, vector<8x16xbf16>, vector<12x16xf32> -> vector<12x16xf32>
    %672 = arith.truncf %656 : vector<8x16xf32> to vector<8x16xbf16>
    %cst_142 = arith.constant dense<0.000000e+00> : vector<12x16xf32>
    %673 = tpu.matmul %657, %672, %cst_142 {dimension_numbers = #tpu.dot_dimension_numbers<[1], [0], [0], [1], [0, 0, 1, 1], [], []>} : vector<12x8xbf16>, vector<8x16xbf16>, vector<12x16xf32> -> vector<12x16xf32>
    %674 = vector.extract_strided_slice %673 {offsets = [9, 0], sizes = [3, 16], strides = [1, 1]} : vector<12x16xf32> to vector<3x16xf32>
    %cst_143 = arith.constant 0.000000e+00 : f32
    %675 = vector.broadcast %cst_143 : f32 to vector<3x1xf32>
    %676 = vector.extract_strided_slice %674 {offsets = [0, 0], sizes = [3, 15], strides = [1, 1]} : vector<3x16xf32> to vector<3x15xf32>
    %677 = tpu.concatenate %675, %676 in 1 : vector<3x1xf32>, vector<3x15xf32> -> vector<3x16xf32>
    %cst_144 = arith.constant 0.000000e+00 : f32
    %678 = vector.shape_cast %19 : vector<1x16xi1> to vector<1x16xi1>
    %679 = vector.broadcast %678 : vector<1x16xi1> to vector<3x16xi1>
    %680 = vector.broadcast %cst_144 : f32 to vector<3x16xf32>
    %681 = arith.select %679, %677, %680 : vector<3x16xi1>, vector<3x16xf32>
    %682 = vector.extract_strided_slice %661 {offsets = [0, 0], sizes = [3, 16], strides = [1, 1]} : vector<12x16xf32> to vector<3x16xf32>
    %683 = vector.extract_strided_slice %659 {offsets = [3, 0], sizes = [3, 16], strides = [1, 1]} : vector<12x16xf32> to vector<3x16xf32>
    %684 = arith.addf %683, %681 : vector<3x16xf32>
    %685 = vector.extract_strided_slice %659 {offsets = [6, 0], sizes = [3, 16], strides = [1, 1]} : vector<12x16xf32> to vector<3x16xf32>
    %686 = arith.addf %685, %682 : vector<3x16xf32>
    %687 = vector.extract_strided_slice %659 {offsets = [9, 0], sizes = [3, 16], strides = [1, 1]} : vector<12x16xf32> to vector<3x16xf32>
    %688 = vector.extract_strided_slice %663 {offsets = [0, 0], sizes = [3, 16], strides = [1, 1]} : vector<12x16xf32> to vector<3x16xf32>
    %689 = vector.extract_strided_slice %661 {offsets = [3, 0], sizes = [3, 16], strides = [1, 1]} : vector<12x16xf32> to vector<3x16xf32>
    %690 = arith.addf %689, %687 : vector<3x16xf32>
    %691 = vector.extract_strided_slice %661 {offsets = [6, 0], sizes = [3, 16], strides = [1, 1]} : vector<12x16xf32> to vector<3x16xf32>
    %692 = arith.addf %691, %688 : vector<3x16xf32>
    %693 = vector.extract_strided_slice %661 {offsets = [9, 0], sizes = [3, 16], strides = [1, 1]} : vector<12x16xf32> to vector<3x16xf32>
    %694 = vector.extract_strided_slice %665 {offsets = [0, 0], sizes = [3, 16], strides = [1, 1]} : vector<12x16xf32> to vector<3x16xf32>
    %695 = vector.extract_strided_slice %663 {offsets = [3, 0], sizes = [3, 16], strides = [1, 1]} : vector<12x16xf32> to vector<3x16xf32>
    %696 = arith.addf %695, %693 : vector<3x16xf32>
    %697 = vector.extract_strided_slice %663 {offsets = [6, 0], sizes = [3, 16], strides = [1, 1]} : vector<12x16xf32> to vector<3x16xf32>
    %698 = arith.addf %697, %694 : vector<3x16xf32>
    %699 = vector.extract_strided_slice %663 {offsets = [9, 0], sizes = [3, 16], strides = [1, 1]} : vector<12x16xf32> to vector<3x16xf32>
    %700 = vector.extract_strided_slice %667 {offsets = [0, 0], sizes = [3, 16], strides = [1, 1]} : vector<12x16xf32> to vector<3x16xf32>
    %701 = vector.extract_strided_slice %665 {offsets = [3, 0], sizes = [3, 16], strides = [1, 1]} : vector<12x16xf32> to vector<3x16xf32>
    %702 = arith.addf %701, %699 : vector<3x16xf32>
    %703 = vector.extract_strided_slice %665 {offsets = [6, 0], sizes = [3, 16], strides = [1, 1]} : vector<12x16xf32> to vector<3x16xf32>
    %704 = arith.addf %703, %700 : vector<3x16xf32>
    %705 = vector.extract_strided_slice %665 {offsets = [9, 0], sizes = [3, 16], strides = [1, 1]} : vector<12x16xf32> to vector<3x16xf32>
    %706 = vector.extract_strided_slice %669 {offsets = [0, 0], sizes = [3, 16], strides = [1, 1]} : vector<12x16xf32> to vector<3x16xf32>
    %707 = vector.extract_strided_slice %667 {offsets = [3, 0], sizes = [3, 16], strides = [1, 1]} : vector<12x16xf32> to vector<3x16xf32>
    %708 = arith.addf %707, %705 : vector<3x16xf32>
    %709 = vector.extract_strided_slice %667 {offsets = [6, 0], sizes = [3, 16], strides = [1, 1]} : vector<12x16xf32> to vector<3x16xf32>
    %710 = arith.addf %709, %706 : vector<3x16xf32>
    %711 = vector.extract_strided_slice %667 {offsets = [9, 0], sizes = [3, 16], strides = [1, 1]} : vector<12x16xf32> to vector<3x16xf32>
    %712 = vector.extract_strided_slice %671 {offsets = [0, 0], sizes = [3, 16], strides = [1, 1]} : vector<12x16xf32> to vector<3x16xf32>
    %713 = vector.extract_strided_slice %669 {offsets = [3, 0], sizes = [3, 16], strides = [1, 1]} : vector<12x16xf32> to vector<3x16xf32>
    %714 = arith.addf %713, %711 : vector<3x16xf32>
    %715 = vector.extract_strided_slice %669 {offsets = [6, 0], sizes = [3, 16], strides = [1, 1]} : vector<12x16xf32> to vector<3x16xf32>
    %716 = arith.addf %715, %712 : vector<3x16xf32>
    %717 = vector.extract_strided_slice %669 {offsets = [9, 0], sizes = [3, 16], strides = [1, 1]} : vector<12x16xf32> to vector<3x16xf32>
    %718 = vector.extract_strided_slice %673 {offsets = [0, 0], sizes = [3, 16], strides = [1, 1]} : vector<12x16xf32> to vector<3x16xf32>
    %719 = vector.extract_strided_slice %671 {offsets = [3, 0], sizes = [3, 16], strides = [1, 1]} : vector<12x16xf32> to vector<3x16xf32>
    %720 = arith.addf %719, %717 : vector<3x16xf32>
    %721 = vector.extract_strided_slice %671 {offsets = [6, 0], sizes = [3, 16], strides = [1, 1]} : vector<12x16xf32> to vector<3x16xf32>
    %722 = arith.addf %721, %718 : vector<3x16xf32>
    %723 = vector.extract_strided_slice %671 {offsets = [9, 0], sizes = [3, 16], strides = [1, 1]} : vector<12x16xf32> to vector<3x16xf32>
    %724 = vector.extract_strided_slice %659 {offsets = [0, 0], sizes = [3, 16], strides = [1, 1]} : vector<12x16xf32> to vector<3x16xf32>
    %725 = vector.extract_strided_slice %724 {offsets = [0, 1], sizes = [3, 15], strides = [1, 1]} : vector<3x16xf32> to vector<3x15xf32>
    %cst_145 = arith.constant 0.000000e+00 : f32
    %726 = vector.broadcast %cst_145 : f32 to vector<3x1xf32>
    %727 = tpu.concatenate %725, %726 in 1 : vector<3x15xf32>, vector<3x1xf32> -> vector<3x16xf32>
    %cst_146 = arith.constant 0.000000e+00 : f32
    %728 = vector.shape_cast %37 : vector<1x16xi1> to vector<1x16xi1>
    %729 = vector.broadcast %728 : vector<1x16xi1> to vector<3x16xi1>
    %730 = vector.broadcast %cst_146 : f32 to vector<3x16xf32>
    %731 = arith.select %729, %727, %730 : vector<3x16xi1>, vector<3x16xf32>
    %732 = vector.extract_strided_slice %673 {offsets = [3, 0], sizes = [3, 16], strides = [1, 1]} : vector<12x16xf32> to vector<3x16xf32>
    %733 = arith.addf %732, %723 : vector<3x16xf32>
    %734 = vector.extract_strided_slice %673 {offsets = [6, 0], sizes = [3, 16], strides = [1, 1]} : vector<12x16xf32> to vector<3x16xf32>
    %735 = arith.addf %734, %731 : vector<3x16xf32>
    %736 = vector.extract_strided_slice %0 {offsets = [0, 12], sizes = [3, 1], strides = [1, 1]} : vector<32x15xf32> to vector<3x1xf32>
    %737 = vector.broadcast %736 : vector<3x1xf32> to vector<3x16xf32>
    %738 = arith.addf %684, %737 : vector<3x16xf32>
    %739 = vector.broadcast %736 : vector<3x1xf32> to vector<3x16xf32>
    %740 = arith.addf %686, %739 : vector<3x16xf32>
    %741 = vector.broadcast %736 : vector<3x1xf32> to vector<3x16xf32>
    %742 = arith.addf %690, %741 : vector<3x16xf32>
    %743 = vector.broadcast %736 : vector<3x1xf32> to vector<3x16xf32>
    %744 = arith.addf %692, %743 : vector<3x16xf32>
    %745 = vector.broadcast %736 : vector<3x1xf32> to vector<3x16xf32>
    %746 = arith.addf %696, %745 : vector<3x16xf32>
    %747 = vector.broadcast %736 : vector<3x1xf32> to vector<3x16xf32>
    %748 = arith.addf %698, %747 : vector<3x16xf32>
    %749 = vector.broadcast %736 : vector<3x1xf32> to vector<3x16xf32>
    %750 = arith.addf %702, %749 : vector<3x16xf32>
    %751 = vector.broadcast %736 : vector<3x1xf32> to vector<3x16xf32>
    %752 = arith.addf %704, %751 : vector<3x16xf32>
    %753 = vector.broadcast %736 : vector<3x1xf32> to vector<3x16xf32>
    %754 = arith.addf %708, %753 : vector<3x16xf32>
    %755 = vector.broadcast %736 : vector<3x1xf32> to vector<3x16xf32>
    %756 = arith.addf %710, %755 : vector<3x16xf32>
    %757 = vector.broadcast %736 : vector<3x1xf32> to vector<3x16xf32>
    %758 = arith.addf %714, %757 : vector<3x16xf32>
    %759 = vector.broadcast %736 : vector<3x1xf32> to vector<3x16xf32>
    %760 = arith.addf %716, %759 : vector<3x16xf32>
    %761 = vector.broadcast %736 : vector<3x1xf32> to vector<3x16xf32>
    %762 = arith.addf %720, %761 : vector<3x16xf32>
    %763 = vector.broadcast %736 : vector<3x1xf32> to vector<3x16xf32>
    %764 = arith.addf %722, %763 : vector<3x16xf32>
    %765 = vector.broadcast %736 : vector<3x1xf32> to vector<3x16xf32>
    %766 = arith.addf %733, %765 : vector<3x16xf32>
    %767 = vector.broadcast %736 : vector<3x1xf32> to vector<3x16xf32>
    %768 = arith.addf %735, %767 : vector<3x16xf32>
    %c0_147 = arith.constant 0 : index
    %c0_148 = arith.constant 0 : index
    %769 = vector.load %arg9[%c0_147, %c0_148] : memref<9x3xbf16, #tpu.memory_space<vmem>>, vector<9x3xbf16>
    %770 = arith.truncf %738 : vector<3x16xf32> to vector<3x16xbf16>
    %cst_149 = arith.constant dense<0.000000e+00> : vector<9x16xf32>
    %771 = tpu.matmul %769, %770, %cst_149 {dimension_numbers = #tpu.dot_dimension_numbers<[1], [0], [0], [1], [0, 0, 1, 1], [], []>} : vector<9x3xbf16>, vector<3x16xbf16>, vector<9x16xf32> -> vector<9x16xf32>
    %772 = arith.truncf %740 : vector<3x16xf32> to vector<3x16xbf16>
    %cst_150 = arith.constant dense<0.000000e+00> : vector<9x16xf32>
    %773 = tpu.matmul %769, %772, %cst_150 {dimension_numbers = #tpu.dot_dimension_numbers<[1], [0], [0], [1], [0, 0, 1, 1], [], []>} : vector<9x3xbf16>, vector<3x16xbf16>, vector<9x16xf32> -> vector<9x16xf32>
    %774 = arith.truncf %742 : vector<3x16xf32> to vector<3x16xbf16>
    %cst_151 = arith.constant dense<0.000000e+00> : vector<9x16xf32>
    %775 = tpu.matmul %769, %774, %cst_151 {dimension_numbers = #tpu.dot_dimension_numbers<[1], [0], [0], [1], [0, 0, 1, 1], [], []>} : vector<9x3xbf16>, vector<3x16xbf16>, vector<9x16xf32> -> vector<9x16xf32>
    %776 = arith.truncf %744 : vector<3x16xf32> to vector<3x16xbf16>
    %cst_152 = arith.constant dense<0.000000e+00> : vector<9x16xf32>
    %777 = tpu.matmul %769, %776, %cst_152 {dimension_numbers = #tpu.dot_dimension_numbers<[1], [0], [0], [1], [0, 0, 1, 1], [], []>} : vector<9x3xbf16>, vector<3x16xbf16>, vector<9x16xf32> -> vector<9x16xf32>
    %778 = arith.truncf %746 : vector<3x16xf32> to vector<3x16xbf16>
    %cst_153 = arith.constant dense<0.000000e+00> : vector<9x16xf32>
    %779 = tpu.matmul %769, %778, %cst_153 {dimension_numbers = #tpu.dot_dimension_numbers<[1], [0], [0], [1], [0, 0, 1, 1], [], []>} : vector<9x3xbf16>, vector<3x16xbf16>, vector<9x16xf32> -> vector<9x16xf32>
    %780 = arith.truncf %748 : vector<3x16xf32> to vector<3x16xbf16>
    %cst_154 = arith.constant dense<0.000000e+00> : vector<9x16xf32>
    %781 = tpu.matmul %769, %780, %cst_154 {dimension_numbers = #tpu.dot_dimension_numbers<[1], [0], [0], [1], [0, 0, 1, 1], [], []>} : vector<9x3xbf16>, vector<3x16xbf16>, vector<9x16xf32> -> vector<9x16xf32>
    %782 = arith.truncf %750 : vector<3x16xf32> to vector<3x16xbf16>
    %cst_155 = arith.constant dense<0.000000e+00> : vector<9x16xf32>
    %783 = tpu.matmul %769, %782, %cst_155 {dimension_numbers = #tpu.dot_dimension_numbers<[1], [0], [0], [1], [0, 0, 1, 1], [], []>} : vector<9x3xbf16>, vector<3x16xbf16>, vector<9x16xf32> -> vector<9x16xf32>
    %784 = arith.truncf %752 : vector<3x16xf32> to vector<3x16xbf16>
    %cst_156 = arith.constant dense<0.000000e+00> : vector<9x16xf32>
    %785 = tpu.matmul %769, %784, %cst_156 {dimension_numbers = #tpu.dot_dimension_numbers<[1], [0], [0], [1], [0, 0, 1, 1], [], []>} : vector<9x3xbf16>, vector<3x16xbf16>, vector<9x16xf32> -> vector<9x16xf32>
    %786 = arith.truncf %754 : vector<3x16xf32> to vector<3x16xbf16>
    %cst_157 = arith.constant dense<0.000000e+00> : vector<9x16xf32>
    %787 = tpu.matmul %769, %786, %cst_157 {dimension_numbers = #tpu.dot_dimension_numbers<[1], [0], [0], [1], [0, 0, 1, 1], [], []>} : vector<9x3xbf16>, vector<3x16xbf16>, vector<9x16xf32> -> vector<9x16xf32>
    %788 = arith.truncf %756 : vector<3x16xf32> to vector<3x16xbf16>
    %cst_158 = arith.constant dense<0.000000e+00> : vector<9x16xf32>
    %789 = tpu.matmul %769, %788, %cst_158 {dimension_numbers = #tpu.dot_dimension_numbers<[1], [0], [0], [1], [0, 0, 1, 1], [], []>} : vector<9x3xbf16>, vector<3x16xbf16>, vector<9x16xf32> -> vector<9x16xf32>
    %790 = arith.truncf %758 : vector<3x16xf32> to vector<3x16xbf16>
    %cst_159 = arith.constant dense<0.000000e+00> : vector<9x16xf32>
    %791 = tpu.matmul %769, %790, %cst_159 {dimension_numbers = #tpu.dot_dimension_numbers<[1], [0], [0], [1], [0, 0, 1, 1], [], []>} : vector<9x3xbf16>, vector<3x16xbf16>, vector<9x16xf32> -> vector<9x16xf32>
    %792 = arith.truncf %760 : vector<3x16xf32> to vector<3x16xbf16>
    %cst_160 = arith.constant dense<0.000000e+00> : vector<9x16xf32>
    %793 = tpu.matmul %769, %792, %cst_160 {dimension_numbers = #tpu.dot_dimension_numbers<[1], [0], [0], [1], [0, 0, 1, 1], [], []>} : vector<9x3xbf16>, vector<3x16xbf16>, vector<9x16xf32> -> vector<9x16xf32>
    %794 = arith.truncf %762 : vector<3x16xf32> to vector<3x16xbf16>
    %cst_161 = arith.constant dense<0.000000e+00> : vector<9x16xf32>
    %795 = tpu.matmul %769, %794, %cst_161 {dimension_numbers = #tpu.dot_dimension_numbers<[1], [0], [0], [1], [0, 0, 1, 1], [], []>} : vector<9x3xbf16>, vector<3x16xbf16>, vector<9x16xf32> -> vector<9x16xf32>
    %796 = arith.truncf %764 : vector<3x16xf32> to vector<3x16xbf16>
    %cst_162 = arith.constant dense<0.000000e+00> : vector<9x16xf32>
    %797 = tpu.matmul %769, %796, %cst_162 {dimension_numbers = #tpu.dot_dimension_numbers<[1], [0], [0], [1], [0, 0, 1, 1], [], []>} : vector<9x3xbf16>, vector<3x16xbf16>, vector<9x16xf32> -> vector<9x16xf32>
    %798 = arith.truncf %766 : vector<3x16xf32> to vector<3x16xbf16>
    %cst_163 = arith.constant dense<0.000000e+00> : vector<9x16xf32>
    %799 = tpu.matmul %769, %798, %cst_163 {dimension_numbers = #tpu.dot_dimension_numbers<[1], [0], [0], [1], [0, 0, 1, 1], [], []>} : vector<9x3xbf16>, vector<3x16xbf16>, vector<9x16xf32> -> vector<9x16xf32>
    %800 = arith.truncf %768 : vector<3x16xf32> to vector<3x16xbf16>
    %cst_164 = arith.constant dense<0.000000e+00> : vector<9x16xf32>
    %801 = tpu.matmul %769, %800, %cst_164 {dimension_numbers = #tpu.dot_dimension_numbers<[1], [0], [0], [1], [0, 0, 1, 1], [], []>} : vector<9x3xbf16>, vector<3x16xbf16>, vector<9x16xf32> -> vector<9x16xf32>
    %802 = vector.extract_strided_slice %801 {offsets = [0, 0], sizes = [3, 16], strides = [1, 1]} : vector<9x16xf32> to vector<3x16xf32>
    %cst_165 = arith.constant 0.000000e+00 : f32
    %803 = vector.broadcast %cst_165 : f32 to vector<3x1xf32>
    %804 = vector.extract_strided_slice %802 {offsets = [0, 0], sizes = [3, 15], strides = [1, 1]} : vector<3x16xf32> to vector<3x15xf32>
    %805 = tpu.concatenate %803, %804 in 1 : vector<3x1xf32>, vector<3x15xf32> -> vector<3x16xf32>
    %cst_166 = arith.constant 0.000000e+00 : f32
    %806 = vector.shape_cast %19 : vector<1x16xi1> to vector<1x16xi1>
    %807 = vector.broadcast %806 : vector<1x16xi1> to vector<3x16xi1>
    %808 = vector.broadcast %cst_166 : f32 to vector<3x16xf32>
    %809 = arith.select %807, %805, %808 : vector<3x16xi1>, vector<3x16xf32>
    %810 = vector.extract_strided_slice %773 {offsets = [6, 0], sizes = [3, 16], strides = [1, 1]} : vector<9x16xf32> to vector<3x16xf32>
    %811 = vector.extract_strided_slice %771 {offsets = [3, 0], sizes = [3, 16], strides = [1, 1]} : vector<9x16xf32> to vector<3x16xf32>
    %812 = arith.addf %809, %811 : vector<3x16xf32>
    %813 = arith.addf %812, %810 : vector<3x16xf32>
    %814 = vector.extract_strided_slice %771 {offsets = [0, 0], sizes = [3, 16], strides = [1, 1]} : vector<9x16xf32> to vector<3x16xf32>
    %815 = vector.extract_strided_slice %775 {offsets = [6, 0], sizes = [3, 16], strides = [1, 1]} : vector<9x16xf32> to vector<3x16xf32>
    %816 = vector.extract_strided_slice %773 {offsets = [3, 0], sizes = [3, 16], strides = [1, 1]} : vector<9x16xf32> to vector<3x16xf32>
    %817 = arith.addf %814, %816 : vector<3x16xf32>
    %818 = arith.addf %817, %815 : vector<3x16xf32>
    %819 = vector.extract_strided_slice %773 {offsets = [0, 0], sizes = [3, 16], strides = [1, 1]} : vector<9x16xf32> to vector<3x16xf32>
    %820 = vector.extract_strided_slice %777 {offsets = [6, 0], sizes = [3, 16], strides = [1, 1]} : vector<9x16xf32> to vector<3x16xf32>
    %821 = vector.extract_strided_slice %775 {offsets = [3, 0], sizes = [3, 16], strides = [1, 1]} : vector<9x16xf32> to vector<3x16xf32>
    %822 = arith.addf %819, %821 : vector<3x16xf32>
    %823 = arith.addf %822, %820 : vector<3x16xf32>
    %824 = vector.extract_strided_slice %775 {offsets = [0, 0], sizes = [3, 16], strides = [1, 1]} : vector<9x16xf32> to vector<3x16xf32>
    %825 = vector.extract_strided_slice %779 {offsets = [6, 0], sizes = [3, 16], strides = [1, 1]} : vector<9x16xf32> to vector<3x16xf32>
    %826 = vector.extract_strided_slice %777 {offsets = [3, 0], sizes = [3, 16], strides = [1, 1]} : vector<9x16xf32> to vector<3x16xf32>
    %827 = arith.addf %824, %826 : vector<3x16xf32>
    %828 = arith.addf %827, %825 : vector<3x16xf32>
    %829 = vector.extract_strided_slice %777 {offsets = [0, 0], sizes = [3, 16], strides = [1, 1]} : vector<9x16xf32> to vector<3x16xf32>
    %830 = vector.extract_strided_slice %781 {offsets = [6, 0], sizes = [3, 16], strides = [1, 1]} : vector<9x16xf32> to vector<3x16xf32>
    %831 = vector.extract_strided_slice %779 {offsets = [3, 0], sizes = [3, 16], strides = [1, 1]} : vector<9x16xf32> to vector<3x16xf32>
    %832 = arith.addf %829, %831 : vector<3x16xf32>
    %833 = arith.addf %832, %830 : vector<3x16xf32>
    %834 = vector.extract_strided_slice %779 {offsets = [0, 0], sizes = [3, 16], strides = [1, 1]} : vector<9x16xf32> to vector<3x16xf32>
    %835 = vector.extract_strided_slice %783 {offsets = [6, 0], sizes = [3, 16], strides = [1, 1]} : vector<9x16xf32> to vector<3x16xf32>
    %836 = vector.extract_strided_slice %781 {offsets = [3, 0], sizes = [3, 16], strides = [1, 1]} : vector<9x16xf32> to vector<3x16xf32>
    %837 = arith.addf %834, %836 : vector<3x16xf32>
    %838 = arith.addf %837, %835 : vector<3x16xf32>
    %839 = vector.extract_strided_slice %781 {offsets = [0, 0], sizes = [3, 16], strides = [1, 1]} : vector<9x16xf32> to vector<3x16xf32>
    %840 = vector.extract_strided_slice %785 {offsets = [6, 0], sizes = [3, 16], strides = [1, 1]} : vector<9x16xf32> to vector<3x16xf32>
    %841 = vector.extract_strided_slice %783 {offsets = [3, 0], sizes = [3, 16], strides = [1, 1]} : vector<9x16xf32> to vector<3x16xf32>
    %842 = arith.addf %839, %841 : vector<3x16xf32>
    %843 = arith.addf %842, %840 : vector<3x16xf32>
    %844 = vector.extract_strided_slice %783 {offsets = [0, 0], sizes = [3, 16], strides = [1, 1]} : vector<9x16xf32> to vector<3x16xf32>
    %845 = vector.extract_strided_slice %787 {offsets = [6, 0], sizes = [3, 16], strides = [1, 1]} : vector<9x16xf32> to vector<3x16xf32>
    %846 = vector.extract_strided_slice %785 {offsets = [3, 0], sizes = [3, 16], strides = [1, 1]} : vector<9x16xf32> to vector<3x16xf32>
    %847 = arith.addf %844, %846 : vector<3x16xf32>
    %848 = arith.addf %847, %845 : vector<3x16xf32>
    %849 = vector.extract_strided_slice %785 {offsets = [0, 0], sizes = [3, 16], strides = [1, 1]} : vector<9x16xf32> to vector<3x16xf32>
    %850 = vector.extract_strided_slice %789 {offsets = [6, 0], sizes = [3, 16], strides = [1, 1]} : vector<9x16xf32> to vector<3x16xf32>
    %851 = vector.extract_strided_slice %787 {offsets = [3, 0], sizes = [3, 16], strides = [1, 1]} : vector<9x16xf32> to vector<3x16xf32>
    %852 = arith.addf %849, %851 : vector<3x16xf32>
    %853 = arith.addf %852, %850 : vector<3x16xf32>
    %854 = vector.extract_strided_slice %787 {offsets = [0, 0], sizes = [3, 16], strides = [1, 1]} : vector<9x16xf32> to vector<3x16xf32>
    %855 = vector.extract_strided_slice %791 {offsets = [6, 0], sizes = [3, 16], strides = [1, 1]} : vector<9x16xf32> to vector<3x16xf32>
    %856 = vector.extract_strided_slice %789 {offsets = [3, 0], sizes = [3, 16], strides = [1, 1]} : vector<9x16xf32> to vector<3x16xf32>
    %857 = arith.addf %854, %856 : vector<3x16xf32>
    %858 = arith.addf %857, %855 : vector<3x16xf32>
    %859 = vector.extract_strided_slice %789 {offsets = [0, 0], sizes = [3, 16], strides = [1, 1]} : vector<9x16xf32> to vector<3x16xf32>
    %860 = vector.extract_strided_slice %793 {offsets = [6, 0], sizes = [3, 16], strides = [1, 1]} : vector<9x16xf32> to vector<3x16xf32>
    %861 = vector.extract_strided_slice %791 {offsets = [3, 0], sizes = [3, 16], strides = [1, 1]} : vector<9x16xf32> to vector<3x16xf32>
    %862 = arith.addf %859, %861 : vector<3x16xf32>
    %863 = arith.addf %862, %860 : vector<3x16xf32>
    %864 = vector.extract_strided_slice %791 {offsets = [0, 0], sizes = [3, 16], strides = [1, 1]} : vector<9x16xf32> to vector<3x16xf32>
    %865 = vector.extract_strided_slice %795 {offsets = [6, 0], sizes = [3, 16], strides = [1, 1]} : vector<9x16xf32> to vector<3x16xf32>
    %866 = vector.extract_strided_slice %793 {offsets = [3, 0], sizes = [3, 16], strides = [1, 1]} : vector<9x16xf32> to vector<3x16xf32>
    %867 = arith.addf %864, %866 : vector<3x16xf32>
    %868 = arith.addf %867, %865 : vector<3x16xf32>
    %869 = vector.extract_strided_slice %793 {offsets = [0, 0], sizes = [3, 16], strides = [1, 1]} : vector<9x16xf32> to vector<3x16xf32>
    %870 = vector.extract_strided_slice %797 {offsets = [6, 0], sizes = [3, 16], strides = [1, 1]} : vector<9x16xf32> to vector<3x16xf32>
    %871 = vector.extract_strided_slice %795 {offsets = [3, 0], sizes = [3, 16], strides = [1, 1]} : vector<9x16xf32> to vector<3x16xf32>
    %872 = arith.addf %869, %871 : vector<3x16xf32>
    %873 = arith.addf %872, %870 : vector<3x16xf32>
    %874 = vector.extract_strided_slice %795 {offsets = [0, 0], sizes = [3, 16], strides = [1, 1]} : vector<9x16xf32> to vector<3x16xf32>
    %875 = vector.extract_strided_slice %799 {offsets = [6, 0], sizes = [3, 16], strides = [1, 1]} : vector<9x16xf32> to vector<3x16xf32>
    %876 = vector.extract_strided_slice %797 {offsets = [3, 0], sizes = [3, 16], strides = [1, 1]} : vector<9x16xf32> to vector<3x16xf32>
    %877 = arith.addf %874, %876 : vector<3x16xf32>
    %878 = arith.addf %877, %875 : vector<3x16xf32>
    %879 = vector.extract_strided_slice %797 {offsets = [0, 0], sizes = [3, 16], strides = [1, 1]} : vector<9x16xf32> to vector<3x16xf32>
    %880 = vector.extract_strided_slice %801 {offsets = [6, 0], sizes = [3, 16], strides = [1, 1]} : vector<9x16xf32> to vector<3x16xf32>
    %881 = vector.extract_strided_slice %799 {offsets = [3, 0], sizes = [3, 16], strides = [1, 1]} : vector<9x16xf32> to vector<3x16xf32>
    %882 = arith.addf %879, %881 : vector<3x16xf32>
    %883 = arith.addf %882, %880 : vector<3x16xf32>
    %884 = vector.extract_strided_slice %799 {offsets = [0, 0], sizes = [3, 16], strides = [1, 1]} : vector<9x16xf32> to vector<3x16xf32>
    %885 = vector.extract_strided_slice %771 {offsets = [6, 0], sizes = [3, 16], strides = [1, 1]} : vector<9x16xf32> to vector<3x16xf32>
    %886 = vector.extract_strided_slice %885 {offsets = [0, 1], sizes = [3, 15], strides = [1, 1]} : vector<3x16xf32> to vector<3x15xf32>
    %cst_167 = arith.constant 0.000000e+00 : f32
    %887 = vector.broadcast %cst_167 : f32 to vector<3x1xf32>
    %888 = tpu.concatenate %886, %887 in 1 : vector<3x15xf32>, vector<3x1xf32> -> vector<3x16xf32>
    %cst_168 = arith.constant 0.000000e+00 : f32
    %889 = vector.shape_cast %37 : vector<1x16xi1> to vector<1x16xi1>
    %890 = vector.broadcast %889 : vector<1x16xi1> to vector<3x16xi1>
    %891 = vector.broadcast %cst_168 : f32 to vector<3x16xf32>
    %892 = arith.select %890, %888, %891 : vector<3x16xi1>, vector<3x16xf32>
    %893 = vector.extract_strided_slice %801 {offsets = [3, 0], sizes = [3, 16], strides = [1, 1]} : vector<9x16xf32> to vector<3x16xf32>
    %894 = arith.addf %884, %893 : vector<3x16xf32>
    %895 = arith.addf %894, %892 : vector<3x16xf32>
    %896 = vector.extract_strided_slice %0 {offsets = [0, 13], sizes = [3, 1], strides = [1, 1]} : vector<32x15xf32> to vector<3x1xf32>
    %897 = vector.extract_strided_slice %0 {offsets = [0, 14], sizes = [3, 1], strides = [1, 1]} : vector<32x15xf32> to vector<3x1xf32>
    %898 = arith.mulf %813, %813 : vector<3x16xf32>
    %899 = arith.addf %813, %818 : vector<3x16xf32>
    %900 = arith.mulf %818, %818 : vector<3x16xf32>
    %901 = arith.addf %898, %900 : vector<3x16xf32>
    %902 = arith.addf %899, %823 : vector<3x16xf32>
    %903 = arith.mulf %823, %823 : vector<3x16xf32>
    %904 = arith.addf %901, %903 : vector<3x16xf32>
    %905 = arith.addf %902, %828 : vector<3x16xf32>
    %906 = arith.mulf %828, %828 : vector<3x16xf32>
    %907 = arith.addf %904, %906 : vector<3x16xf32>
    %908 = arith.addf %905, %833 : vector<3x16xf32>
    %909 = arith.mulf %833, %833 : vector<3x16xf32>
    %910 = arith.addf %907, %909 : vector<3x16xf32>
    %911 = arith.addf %908, %838 : vector<3x16xf32>
    %912 = arith.mulf %838, %838 : vector<3x16xf32>
    %913 = arith.addf %910, %912 : vector<3x16xf32>
    %914 = arith.addf %911, %843 : vector<3x16xf32>
    %915 = arith.mulf %843, %843 : vector<3x16xf32>
    %916 = arith.addf %913, %915 : vector<3x16xf32>
    %917 = arith.addf %914, %848 : vector<3x16xf32>
    %918 = arith.mulf %848, %848 : vector<3x16xf32>
    %919 = arith.addf %916, %918 : vector<3x16xf32>
    %920 = arith.addf %917, %853 : vector<3x16xf32>
    %921 = arith.mulf %853, %853 : vector<3x16xf32>
    %922 = arith.addf %919, %921 : vector<3x16xf32>
    %923 = arith.addf %920, %858 : vector<3x16xf32>
    %924 = arith.mulf %858, %858 : vector<3x16xf32>
    %925 = arith.addf %922, %924 : vector<3x16xf32>
    %926 = arith.addf %923, %863 : vector<3x16xf32>
    %927 = arith.mulf %863, %863 : vector<3x16xf32>
    %928 = arith.addf %925, %927 : vector<3x16xf32>
    %929 = arith.addf %926, %868 : vector<3x16xf32>
    %930 = arith.mulf %868, %868 : vector<3x16xf32>
    %931 = arith.addf %928, %930 : vector<3x16xf32>
    %932 = arith.addf %929, %873 : vector<3x16xf32>
    %933 = arith.mulf %873, %873 : vector<3x16xf32>
    %934 = arith.addf %931, %933 : vector<3x16xf32>
    %935 = arith.addf %932, %878 : vector<3x16xf32>
    %936 = arith.mulf %878, %878 : vector<3x16xf32>
    %937 = arith.addf %934, %936 : vector<3x16xf32>
    %938 = arith.addf %935, %883 : vector<3x16xf32>
    %939 = arith.mulf %883, %883 : vector<3x16xf32>
    %940 = arith.addf %937, %939 : vector<3x16xf32>
    %941 = arith.addf %938, %895 : vector<3x16xf32>
    %942 = arith.mulf %895, %895 : vector<3x16xf32>
    %943 = arith.addf %940, %942 : vector<3x16xf32>
    %cst_169 = arith.constant dense<0.000000e+00> : vector<3xf32>
    %944 = vector.multi_reduction <add>, %941, %cst_169 [1] : vector<3x16xf32> to vector<3xf32>
    %945 = vector.shape_cast %944 : vector<3xf32> to vector<3x1xf32>
    %cst_170 = arith.constant 3.906250e-03 : f32
    %946 = vector.broadcast %cst_170 : f32 to vector<3x1xf32>
    %947 = arith.mulf %945, %946 : vector<3x1xf32>
    %cst_171 = arith.constant dense<0.000000e+00> : vector<3xf32>
    %948 = vector.multi_reduction <add>, %943, %cst_171 [1] : vector<3x16xf32> to vector<3xf32>
    %949 = vector.shape_cast %948 : vector<3xf32> to vector<3x1xf32>
    %cst_172 = arith.constant 3.906250e-03 : f32
    %950 = vector.broadcast %cst_172 : f32 to vector<3x1xf32>
    %951 = arith.mulf %949, %950 : vector<3x1xf32>
    %952 = arith.mulf %947, %947 : vector<3x1xf32>
    %953 = arith.subf %951, %952 : vector<3x1xf32>
    %cst_173 = arith.constant 0.000000e+00 : f32
    %954 = vector.broadcast %cst_173 : f32 to vector<3x1xf32>
    %955 = arith.maximumf %953, %954 : vector<3x1xf32>
    %cst_174 = arith.constant 9.99999974E-6 : f32
    %956 = vector.broadcast %cst_174 : f32 to vector<3x1xf32>
    %957 = arith.addf %955, %956 : vector<3x1xf32>
    %958 = math.rsqrt %957 : vector<3x1xf32>
    %959 = arith.mulf %958, %896 : vector<3x1xf32>
    %960 = arith.mulf %947, %959 : vector<3x1xf32>
    %961 = arith.subf %897, %960 : vector<3x1xf32>
    %962 = vector.broadcast %959 : vector<3x1xf32> to vector<3x16xf32>
    %963 = arith.mulf %813, %962 : vector<3x16xf32>
    %964 = vector.broadcast %961 : vector<3x1xf32> to vector<3x16xf32>
    %965 = arith.addf %963, %964 : vector<3x16xf32>
    %cst_175 = arith.constant 0.000000e+00 : f32
    %966 = vector.broadcast %cst_175 : f32 to vector<3x16xf32>
    %967 = arith.maximumf %965, %966 : vector<3x16xf32>
    %968 = arith.addf %738, %967 : vector<3x16xf32>
    %969 = vector.broadcast %959 : vector<3x1xf32> to vector<3x16xf32>
    %970 = arith.mulf %818, %969 : vector<3x16xf32>
    %971 = vector.broadcast %961 : vector<3x1xf32> to vector<3x16xf32>
    %972 = arith.addf %970, %971 : vector<3x16xf32>
    %cst_176 = arith.constant 0.000000e+00 : f32
    %973 = vector.broadcast %cst_176 : f32 to vector<3x16xf32>
    %974 = arith.maximumf %972, %973 : vector<3x16xf32>
    %975 = arith.addf %740, %974 : vector<3x16xf32>
    %976 = vector.broadcast %959 : vector<3x1xf32> to vector<3x16xf32>
    %977 = arith.mulf %823, %976 : vector<3x16xf32>
    %978 = vector.broadcast %961 : vector<3x1xf32> to vector<3x16xf32>
    %979 = arith.addf %977, %978 : vector<3x16xf32>
    %cst_177 = arith.constant 0.000000e+00 : f32
    %980 = vector.broadcast %cst_177 : f32 to vector<3x16xf32>
    %981 = arith.maximumf %979, %980 : vector<3x16xf32>
    %982 = arith.addf %742, %981 : vector<3x16xf32>
    %983 = vector.broadcast %959 : vector<3x1xf32> to vector<3x16xf32>
    %984 = arith.mulf %828, %983 : vector<3x16xf32>
    %985 = vector.broadcast %961 : vector<3x1xf32> to vector<3x16xf32>
    %986 = arith.addf %984, %985 : vector<3x16xf32>
    %cst_178 = arith.constant 0.000000e+00 : f32
    %987 = vector.broadcast %cst_178 : f32 to vector<3x16xf32>
    %988 = arith.maximumf %986, %987 : vector<3x16xf32>
    %989 = arith.addf %744, %988 : vector<3x16xf32>
    %990 = vector.broadcast %959 : vector<3x1xf32> to vector<3x16xf32>
    %991 = arith.mulf %833, %990 : vector<3x16xf32>
    %992 = vector.broadcast %961 : vector<3x1xf32> to vector<3x16xf32>
    %993 = arith.addf %991, %992 : vector<3x16xf32>
    %cst_179 = arith.constant 0.000000e+00 : f32
    %994 = vector.broadcast %cst_179 : f32 to vector<3x16xf32>
    %995 = arith.maximumf %993, %994 : vector<3x16xf32>
    %996 = arith.addf %746, %995 : vector<3x16xf32>
    %997 = vector.broadcast %959 : vector<3x1xf32> to vector<3x16xf32>
    %998 = arith.mulf %838, %997 : vector<3x16xf32>
    %999 = vector.broadcast %961 : vector<3x1xf32> to vector<3x16xf32>
    %1000 = arith.addf %998, %999 : vector<3x16xf32>
    %cst_180 = arith.constant 0.000000e+00 : f32
    %1001 = vector.broadcast %cst_180 : f32 to vector<3x16xf32>
    %1002 = arith.maximumf %1000, %1001 : vector<3x16xf32>
    %1003 = arith.addf %748, %1002 : vector<3x16xf32>
    %1004 = vector.broadcast %959 : vector<3x1xf32> to vector<3x16xf32>
    %1005 = arith.mulf %843, %1004 : vector<3x16xf32>
    %1006 = vector.broadcast %961 : vector<3x1xf32> to vector<3x16xf32>
    %1007 = arith.addf %1005, %1006 : vector<3x16xf32>
    %cst_181 = arith.constant 0.000000e+00 : f32
    %1008 = vector.broadcast %cst_181 : f32 to vector<3x16xf32>
    %1009 = arith.maximumf %1007, %1008 : vector<3x16xf32>
    %1010 = arith.addf %750, %1009 : vector<3x16xf32>
    %1011 = vector.broadcast %959 : vector<3x1xf32> to vector<3x16xf32>
    %1012 = arith.mulf %848, %1011 : vector<3x16xf32>
    %1013 = vector.broadcast %961 : vector<3x1xf32> to vector<3x16xf32>
    %1014 = arith.addf %1012, %1013 : vector<3x16xf32>
    %cst_182 = arith.constant 0.000000e+00 : f32
    %1015 = vector.broadcast %cst_182 : f32 to vector<3x16xf32>
    %1016 = arith.maximumf %1014, %1015 : vector<3x16xf32>
    %1017 = arith.addf %752, %1016 : vector<3x16xf32>
    %1018 = vector.broadcast %959 : vector<3x1xf32> to vector<3x16xf32>
    %1019 = arith.mulf %853, %1018 : vector<3x16xf32>
    %1020 = vector.broadcast %961 : vector<3x1xf32> to vector<3x16xf32>
    %1021 = arith.addf %1019, %1020 : vector<3x16xf32>
    %cst_183 = arith.constant 0.000000e+00 : f32
    %1022 = vector.broadcast %cst_183 : f32 to vector<3x16xf32>
    %1023 = arith.maximumf %1021, %1022 : vector<3x16xf32>
    %1024 = arith.addf %754, %1023 : vector<3x16xf32>
    %1025 = vector.broadcast %959 : vector<3x1xf32> to vector<3x16xf32>
    %1026 = arith.mulf %858, %1025 : vector<3x16xf32>
    %1027 = vector.broadcast %961 : vector<3x1xf32> to vector<3x16xf32>
    %1028 = arith.addf %1026, %1027 : vector<3x16xf32>
    %cst_184 = arith.constant 0.000000e+00 : f32
    %1029 = vector.broadcast %cst_184 : f32 to vector<3x16xf32>
    %1030 = arith.maximumf %1028, %1029 : vector<3x16xf32>
    %1031 = arith.addf %756, %1030 : vector<3x16xf32>
    %1032 = vector.broadcast %959 : vector<3x1xf32> to vector<3x16xf32>
    %1033 = arith.mulf %863, %1032 : vector<3x16xf32>
    %1034 = vector.broadcast %961 : vector<3x1xf32> to vector<3x16xf32>
    %1035 = arith.addf %1033, %1034 : vector<3x16xf32>
    %cst_185 = arith.constant 0.000000e+00 : f32
    %1036 = vector.broadcast %cst_185 : f32 to vector<3x16xf32>
    %1037 = arith.maximumf %1035, %1036 : vector<3x16xf32>
    %1038 = arith.addf %758, %1037 : vector<3x16xf32>
    %1039 = vector.broadcast %959 : vector<3x1xf32> to vector<3x16xf32>
    %1040 = arith.mulf %868, %1039 : vector<3x16xf32>
    %1041 = vector.broadcast %961 : vector<3x1xf32> to vector<3x16xf32>
    %1042 = arith.addf %1040, %1041 : vector<3x16xf32>
    %cst_186 = arith.constant 0.000000e+00 : f32
    %1043 = vector.broadcast %cst_186 : f32 to vector<3x16xf32>
    %1044 = arith.maximumf %1042, %1043 : vector<3x16xf32>
    %1045 = arith.addf %760, %1044 : vector<3x16xf32>
    %1046 = vector.broadcast %959 : vector<3x1xf32> to vector<3x16xf32>
    %1047 = arith.mulf %873, %1046 : vector<3x16xf32>
    %1048 = vector.broadcast %961 : vector<3x1xf32> to vector<3x16xf32>
    %1049 = arith.addf %1047, %1048 : vector<3x16xf32>
    %cst_187 = arith.constant 0.000000e+00 : f32
    %1050 = vector.broadcast %cst_187 : f32 to vector<3x16xf32>
    %1051 = arith.maximumf %1049, %1050 : vector<3x16xf32>
    %1052 = arith.addf %762, %1051 : vector<3x16xf32>
    %1053 = vector.broadcast %959 : vector<3x1xf32> to vector<3x16xf32>
    %1054 = arith.mulf %878, %1053 : vector<3x16xf32>
    %1055 = vector.broadcast %961 : vector<3x1xf32> to vector<3x16xf32>
    %1056 = arith.addf %1054, %1055 : vector<3x16xf32>
    %cst_188 = arith.constant 0.000000e+00 : f32
    %1057 = vector.broadcast %cst_188 : f32 to vector<3x16xf32>
    %1058 = arith.maximumf %1056, %1057 : vector<3x16xf32>
    %1059 = arith.addf %764, %1058 : vector<3x16xf32>
    %1060 = vector.broadcast %959 : vector<3x1xf32> to vector<3x16xf32>
    %1061 = arith.mulf %883, %1060 : vector<3x16xf32>
    %1062 = vector.broadcast %961 : vector<3x1xf32> to vector<3x16xf32>
    %1063 = arith.addf %1061, %1062 : vector<3x16xf32>
    %cst_189 = arith.constant 0.000000e+00 : f32
    %1064 = vector.broadcast %cst_189 : f32 to vector<3x16xf32>
    %1065 = arith.maximumf %1063, %1064 : vector<3x16xf32>
    %1066 = arith.addf %766, %1065 : vector<3x16xf32>
    %1067 = vector.broadcast %959 : vector<3x1xf32> to vector<3x16xf32>
    %1068 = arith.mulf %895, %1067 : vector<3x16xf32>
    %1069 = vector.broadcast %961 : vector<3x1xf32> to vector<3x16xf32>
    %1070 = arith.addf %1068, %1069 : vector<3x16xf32>
    %cst_190 = arith.constant 0.000000e+00 : f32
    %1071 = vector.broadcast %cst_190 : f32 to vector<3x16xf32>
    %1072 = arith.maximumf %1070, %1071 : vector<3x16xf32>
    %1073 = arith.addf %768, %1072 : vector<3x16xf32>
    %1074 = tpu.concatenate %968, %975, %982, %989, %996, %1003, %1010, %1017, %1024, %1031, %1038, %1045, %1052, %1059, %1066, %1073 in 1 : vector<3x16xf32>, vector<3x16xf32>, vector<3x16xf32>, vector<3x16xf32>, vector<3x16xf32>, vector<3x16xf32>, vector<3x16xf32>, vector<3x16xf32>, vector<3x16xf32>, vector<3x16xf32>, vector<3x16xf32>, vector<3x16xf32>, vector<3x16xf32>, vector<3x16xf32>, vector<3x16xf32>, vector<3x16xf32> -> vector<3x256xf32>
    %c0_191 = arith.constant 0 : index
    %c0_192 = arith.constant 0 : index
    %1075 = vector.load %arg10[%c0_191, %c0_192] : memref<3x256xf32, #tpu.memory_space<vmem>>, vector<3x256xf32>
    tpu.vector_store %arg10[%c0_191, %c0_192], %1074 {strides = array<i32>} : memref<3x256xf32, #tpu.memory_space<vmem>>, vector<3x256xf32>,
    return
  }
}

</mosaic_0001>

<llo_original>
// kernel: decoder_forward.1
$region0: #{decoder_forward.1}
  #allocation0 [shape = 'u32[]', space=smem, size = 0x4, offset = 0x4, fixed_abs, tag = 'smem constant byte address 0x4 - core index']
  #allocation1 [shape = 'u32[144,128]{1,0:T(1,128)}', space=vmem, size = 0x12000, scoped, tag = 'internal scratch']
  %s0 = inlined_call_operand.vmem [shape: f32[2,16], index: 0, kind: input, shape index: {}]
  %s1 = inlined_call_operand.vmem [shape: f32[32,15], index: 1, kind: input, shape index: {}]
  %s2 = inlined_call_operand.vmem [shape: bf16[128,2], index: 2, kind: input, shape index: {}]
  %s3 = inlined_call_operand.vmem [shape: bf16[96,32], index: 3, kind: input, shape index: {}]
  %s4 = inlined_call_operand.vmem [shape: bf16[64,32], index: 4, kind: input, shape index: {}]
  %s5 = inlined_call_operand.vmem [shape: bf16[48,16], index: 5, kind: input, shape index: {}]
  %s6 = inlined_call_operand.vmem [shape: bf16[32,16], index: 6, kind: input, shape index: {}]
  %s7 = inlined_call_operand.vmem [shape: bf16[24,8], index: 7, kind: input, shape index: {}]
  %s8 = inlined_call_operand.vmem [shape: bf16[12,8], index: 8, kind: input, shape index: {}]
  %s9 = inlined_call_operand.vmem [shape: bf16[9,3], index: 9, kind: input, shape index: {}]
  %s10 = inlined_call_operand.vmem [shape: f32[3,256], index: 10, kind: output, shape index: {}]
  %s11 = sld [smem:[#allocation0]]
  $region50: #{decoder_forward.1} parent=0
    _
  %s13 = ssub.s32 1, %s11
  %s14 = scalar_select 0, %s13, %s11
  // Predicated region
  $region2: #{decoder_forward.1} parent=0 // pred_check
    _
  $region3: #{decoder_forward.1} parent=0 // pred_check_branch
    %16 = sbr.rel (0) target = $region5
  $region4: #{decoder_forward.1} parent=0 // pred_region
    _
  $region5: #{decoder_forward.1} parent=0 // pred_fallthru
    _
  // Predicated region
  $region6: #{decoder_forward.1} parent=0 // pred_check
    _
  $region7: #{decoder_forward.1} parent=0 // pred_check_branch
    %18 = sbr.rel (0) target = $region9
  $region8: #{decoder_forward.1} parent=0 // pred_region
    _
  $region9: #{decoder_forward.1} parent=0 // pred_fallthru
    _
  // Predicated region
  $region10: #{decoder_forward.1} parent=0 // pred_check
    _
  $region11: #{decoder_forward.1} parent=0 // pred_check_branch
    %20 = sbr.rel (0) target = $region13
  $region12: #{decoder_forward.1} parent=0 // pred_region
    _
  $region13: #{decoder_forward.1} parent=0 // pred_fallthru
    _
  // Predicated region
  $region14: #{decoder_forward.1} parent=0 // pred_check
    _
  $region15: #{decoder_forward.1} parent=0 // pred_check_branch
    %22 = sbr.rel (0) target = $region17
  $region16: #{decoder_forward.1} parent=0 // pred_region
    _
  $region17: #{decoder_forward.1} parent=0 // pred_fallthru
    _
  // Predicated region
  $region18: #{decoder_forward.1} parent=0 // pred_check
    _
  $region19: #{decoder_forward.1} parent=0 // pred_check_branch
    %24 = sbr.rel (0) target = $region21
  $region20: #{decoder_forward.1} parent=0 // pred_region
    _
  $region21: #{decoder_forward.1} parent=0 // pred_fallthru
    _
  // Predicated region
  $region22: #{decoder_forward.1} parent=0 // pred_check
    _
  $region23: #{decoder_forward.1} parent=0 // pred_check_branch
    %26 = sbr.rel (0) target = $region25
  $region24: #{decoder_forward.1} parent=0 // pred_region
    _
  $region25: #{decoder_forward.1} parent=0 // pred_fallthru
    _
  // Predicated region
  $region26: #{decoder_forward.1} parent=0 // pred_check
    _
  $region27: #{decoder_forward.1} parent=0 // pred_check_branch
    %28 = sbr.rel (0) target = $region29
  $region28: #{decoder_forward.1} parent=0 // pred_region
    _
  $region29: #{decoder_forward.1} parent=0 // pred_fallthru
    _
  // Predicated region
  $region30: #{decoder_forward.1} parent=0 // pred_check
    _
  $region31: #{decoder_forward.1} parent=0 // pred_check_branch
    %30 = sbr.rel (0) target = $region33
  $region32: #{decoder_forward.1} parent=0 // pred_region
    _
  $region33: #{decoder_forward.1} parent=0 // pred_fallthru
    _
  // Predicated region
  $region34: #{decoder_forward.1} parent=0 // pred_check
    _
  $region35: #{decoder_forward.1} parent=0 // pred_check_branch
    %32 = sbr.rel (0) target = $region37
  $region36: #{decoder_forward.1} parent=0 // pred_region
    _
  $region37: #{decoder_forward.1} parent=0 // pred_fallthru
    _
  // Predicated region
  $region38: #{decoder_forward.1} parent=0 // pred_check
    _
  $region39: #{decoder_forward.1} parent=0 // pred_check_branch
    %34 = sbr.rel (0) target = $region41
  $region40: #{decoder_forward.1} parent=0 // pred_region
    _
  $region41: #{decoder_forward.1} parent=0 // pred_fallthru
    _
  %v36 = vld [vmem:[%s1] sm:$0xff]
  %v37 = vld [vmem:[%s1 + $0x8] sm:$0xff]
  %v38 = vld [vmem:[%s1 + $0x10] sm:$0xff]
  %v39 = vld [vmem:[%s1 + $0x18] sm:$0xff]
  %v40 = vlaneseq
  %v41 = vand.u32 %v40, 127
  %vm42 = vcmp.lt.s32.totalorder %v41, 0
  %v43 = vsub.s32 0, %v41
  %v44 = vsel %vm42, %v43, %v41
  %v45 = vshrl.u32 %v44, 3
  %v46 = vand.u32 %v44, 7
  %v47 = vsub.s32 0, %v46
  %v48 = vsel %vm42, %v47, %v46
  %vm49 = vcmp.ne.s32.totalorder %v48, 0
  %vm50 = vcmp.lt.s32.totalorder %v48, 0
  %vm51 = vmand %vm50, %vm49
  %v52 = vadd.s32 %v48, 8
  %v53 = vsel %vm51, %v52, %v48
  %vm54 = vcmp.ne.s32.totalorder %v53, 0
  %vm55 = vcmp.ne.s32.totalorder %v53, 7
  %v56 = vld [vmem:[%s0] sm:$0x3]
  %v57 = vld [vmem:[%s2] sm:$0xf]
  %v58 = vld [vmem:[%s2 + $0x4] sm:$0xf]
  %v59 = vld [vmem:[%s2 + $0x8] sm:$0xf]
  %v60 = vld [vmem:[%s2 + $0xc] sm:$0xf]
  %v61 = vld [vmem:[%s2 + $0x10] sm:$0xf]
  %v62 = vld [vmem:[%s2 + $0x14] sm:$0xf]
  %v63 = vld [vmem:[%s2 + $0x18] sm:$0xf]
  %v64 = vld [vmem:[%s2 + $0x1c] sm:$0xf]
  %v65 = vld [vmem:[%s2 + $0x20] sm:$0xf]
  %v66 = vld [vmem:[%s2 + $0x24] sm:$0xf]
  %v67 = vld [vmem:[%s2 + $0x28] sm:$0xf]
  %v68 = vld [vmem:[%s2 + $0x2c] sm:$0xf]
  %v69 = vld [vmem:[%s2 + $0x30] sm:$0xf]
  %v70 = vld [vmem:[%s2 + $0x34] sm:$0xf]
  %v71 = vld [vmem:[%s2 + $0x38] sm:$0xf]
  %v72 = vld [vmem:[%s2 + $0x3c] sm:$0xf]
  %v73 = vpack.c.bf16 %v56, %v56
  %v90 = vunpack.c.l.b16 %v57
  %v91 = vunpack.c.l.b16 %v58
  %v92 = vunpack.c.l.b16 %v59
  %v93 = vunpack.c.l.b16 %v60
  %v94 = vunpack.c.l.b16 %v61
  %v95 = vunpack.c.l.b16 %v62
  %v96 = vunpack.c.l.b16 %v63
  %v97 = vunpack.c.l.b16 %v64
  %v98 = vunpack.c.l.b16 %v65
  %v99 = vunpack.c.l.b16 %v66
  %v100 = vunpack.c.l.b16 %v67
  %v101 = vunpack.c.l.b16 %v68
  %v102 = vunpack.c.l.b16 %v69
  %v103 = vunpack.c.l.b16 %v70
  %v104 = vunpack.c.l.b16 %v71
  %v105 = vunpack.c.l.b16 %v72
  %v106 = vpack.c.b16 %v91, %v90
  %v107 = vpack.c.b16 %v93, %v92
  %v108 = vpack.c.b16 %v95, %v94
  %v109 = vpack.c.b16 %v97, %v96
  %v110 = vpack.c.b16 %v99, %v98
  %v111 = vpack.c.b16 %v101, %v100
  %v112 = vpack.c.b16 %v103, %v102
  %v113 = vpack.c.b16 %v105, %v104
  %vm114 = vcmask 15360
  %v116 = vsel %vm114, %v106, 0
  %v119 = vsel %vm114, %v107, 0
  %v122 = vsel %vm114, %v108, 0
  %v125 = vsel %vm114, %v109, 0
  %v128 = vsel %vm114, %v110, 0
  %v131 = vsel %vm114, %v111, 0
  %v134 = vsel %vm114, %v112, 0
  %v137 = vsel %vm114, %v113, 0
  %vm139 = vcmask 1040384
  %v141 = vsel %vm139, %v73, 0
  %143 = vmatprep.subr.bf16.mxu0 0
  %144 = vmatpush1.bf16.msra.mxu0 %v141
  %145 = vmatprep.subr.bf16.mxu0 0
  %146 = vmatpush1.bf16.msra.mxu0 0
  %147 = vmatprep.subr.bf16.mxu0 0
  %148 = vmatpush1.bf16.msra.mxu0 0
  %149 = vmatprep.subr.bf16.mxu0 0
  %150 = vmatpush1.bf16.msra.mxu0 0
  %151 = vmatprep.subr.bf16.mxu0 0
  %152 = vmatpush1.bf16.msra.mxu0 0
  %153 = vmatprep.subr.bf16.mxu0 0
  %154 = vmatpush1.bf16.msra.mxu0 0
  %155 = vmatprep.subr.bf16.mxu0 0
  %156 = vmatpush1.bf16.msra.mxu0 0
  %157 = vmatprep.subr.bf16.mxu0 0
  %158 = vmatpush1.bf16.msra.mxu0 0
  %159 = vmatprep.subr.bf16.mxu0 0
  %160 = vmatpush1.bf16.msra.mxu0 0
  %161 = vmatprep.subr.bf16.mxu0 0
  %162 = vmatpush1.bf16.msra.mxu0 0
  %163 = vmatprep.subr.bf16.mxu0 0
  %164 = vmatpush1.bf16.msra.mxu0 0
  %165 = vmatprep.subr.bf16.mxu0 0
  %166 = vmatpush1.bf16.msra.mxu0 0
  %167 = vmatprep.subr.bf16.mxu0 0
  %168 = vmatpush1.bf16.msra.mxu0 0
  %169 = vmatprep.subr.bf16.mxu0 0
  %170 = vmatpush1.bf16.msra.mxu0 0
  %171 = vmatprep.subr.bf16.mxu0 0
  %172 = vmatpush1.bf16.msra.mxu0 0
  %173 = vmatprep.subr.bf16.mxu0 0
  %174 = vmatpush1.bf16.msra.mxu0 0
  %175 = vmatprep.mubr.bf16.mxu0 0
  %176 = vmatmul.mubr.bf16.gmra.mrb[0].mxu0 %v116
  %v177 = vpop.f32.mrb[0].mxu0
  %v178 = vadd.f32 0.0, %v177
  %v179 = vpop.f32.mrb[0].mxu0
  %v180 = vpop.f32.mrb[0].mxu0
  %v181 = vadd.f32 0.0, %v180
  %v182 = vpop.f32.mrb[0].mxu0
  %183 = vmatprep.mubr.bf16.mxu0 0
  %184 = vmatmul.mubr.bf16.gmra.mrb[0].mxu0 %v119
  %v185 = vpop.f32.mrb[0].mxu0
  %v186 = vadd.f32 0.0, %v185
  %v187 = vpop.f32.mrb[0].mxu0
  %v188 = vpop.f32.mrb[0].mxu0
  %v189 = vadd.f32 0.0, %v188
  %v190 = vpop.f32.mrb[0].mxu0
  %191 = vmatprep.mubr.bf16.mxu0 0
  %192 = vmatmul.mubr.bf16.gmra.mrb[0].mxu0 %v122
  %v193 = vpop.f32.mrb[0].mxu0
  %v194 = vadd.f32 0.0, %v193
  %v195 = vpop.f32.mrb[0].mxu0
  %v196 = vpop.f32.mrb[0].mxu0
  %v197 = vadd.f32 0.0, %v196
  %v198 = vpop.f32.mrb[0].mxu0
  %199 = vmatprep.mubr.bf16.mxu0 0
  %200 = vmatmul.mubr.bf16.gmra.mrb[0].mxu0 %v125
  %v201 = vpop.f32.mrb[0].mxu0
  %v202 = vadd.f32 0.0, %v201
  %v203 = vpop.f32.mrb[0].mxu0
  %v204 = vpop.f32.mrb[0].mxu0
  %v205 = vadd.f32 0.0, %v204
  %v206 = vpop.f32.mrb[0].mxu0
  %207 = vmatprep.mubr.bf16.mxu0 0
  %208 = vmatmul.mubr.bf16.gmra.mrb[0].mxu0 %v128
  %v209 = vpop.f32.mrb[0].mxu0
  %v210 = vadd.f32 0.0, %v209
  %v211 = vpop.f32.mrb[0].mxu0
  %v212 = vpop.f32.mrb[0].mxu0
  %v213 = vadd.f32 0.0, %v212
  %v214 = vpop.f32.mrb[0].mxu0
  %215 = vmatprep.mubr.bf16.mxu0 0
  %216 = vmatmul.mubr.bf16.gmra.mrb[0].mxu0 %v131
  %v217 = vpop.f32.mrb[0].mxu0
  %v218 = vadd.f32 0.0, %v217
  %v219 = vpop.f32.mrb[0].mxu0
  %v220 = vpop.f32.mrb[0].mxu0
  %v221 = vadd.f32 0.0, %v220
  %v222 = vpop.f32.mrb[0].mxu0
  %223 = vmatprep.mubr.bf16.mxu0 0
  %224 = vmatmul.mubr.bf16.gmra.mrb[0].mxu0 %v134
  %v225 = vpop.f32.mrb[0].mxu0
  %v226 = vadd.f32 0.0, %v225
  %v227 = vpop.f32.mrb[0].mxu0
  %v228 = vpop.f32.mrb[0].mxu0
  %v229 = vadd.f32 0.0, %v228
  %v230 = vpop.f32.mrb[0].mxu0
  %231 = vmatprep.mubr.bf16.mxu0 0
  %232 = vmatmul.mubr.bf16.gmra.mrb[0].mxu0 %v137
  %v233 = vpop.f32.mrb[0].mxu0
  %v234 = vadd.f32 0.0, %v233
  %v235 = vpop.f32.mrb[0].mxu0
  %v236 = vpop.f32.mrb[0].mxu0
  %v237 = vadd.f32 0.0, %v236
  %v238 = vpop.f32.mrb[0].mxu0
  %239 = vdwg.mxu0
  %244 = vrot.lane.b32.xlu0 %v226, 1
  %v245 = vpop.permute.xlu0 %244
  %246 = vrot.lane.b32.xlu0 %v229, 1
  %v247 = vpop.permute.xlu0 %246
  %248 = vrot.lane.b32.xlu0 %v234, 1
  %v249 = vpop.permute.xlu0 %248
  %250 = vrot.lane.b32.xlu0 %v237, 1
  %v251 = vpop.permute.xlu0 %250
  %vm256 = vcmask 7168
  %v257 = vsel %vm256, 0.0, %v245
  %v258 = vsel %vm256, 0.0, %v247
  %v259 = vsel %vm256, 0.0, %v249
  %v260 = vsel %vm256, 0.0, %v251
  %v261 = vsel %vm54, 1, 0
  %vm262 = vcmp.eq.s32.totalorder %v261, 1
  %v263 = vsel %vm262, %v257, 0.0
  %v264 = vsel %vm262, %v258, 0.0
  %v265 = vsel %vm262, %v259, 0.0
  %v266 = vsel %vm262, %v260, 0.0
  %271 = vrot.lane.b32.xlu0 %v178, 127
  %v272 = vpop.permute.xlu0 %271
  %273 = vrot.lane.b32.xlu0 %v181, 127
  %v274 = vpop.permute.xlu0 %273
  %275 = vrot.lane.b32.xlu0 %v186, 127
  %v276 = vpop.permute.xlu0 %275
  %277 = vrot.lane.b32.xlu0 %v189, 127
  %v278 = vpop.permute.xlu0 %277
  %vm283 = vcmask 121856
  %v284 = vsel %vm283, %v272, 0.0
  %v285 = vsel %vm283, %v274, 0.0
  %v286 = vsel %vm283, %v276, 0.0
  %v287 = vsel %vm283, %v278, 0.0
  %v288 = vsel %vm55, 1, 0
  %vm289 = vcmp.eq.s32.totalorder %v288, 1
  %v290 = vsel %vm289, %v284, 0.0
  %v291 = vsel %vm289, %v285, 0.0
  %v292 = vsel %vm289, %v286, 0.0
  %v293 = vsel %vm289, %v287, 0.0
  %v294 = vadd.f32 %v194, %v263
  %v295 = vadd.f32 %v197, %v264
  %v296 = vadd.f32 %v202, %v265
  %v297 = vadd.f32 %v205, %v266
  %v298 = vadd.f32 %v210, %v290
  %v299 = vadd.f32 %v213, %v291
  %v300 = vadd.f32 %v218, %v292
  %v301 = vadd.f32 %v221, %v293
  %v302 = vmul.f32 %v294, %v294
  %v303 = vmul.f32 %v295, %v295
  %v304 = vmul.f32 %v296, %v296
  %v305 = vmul.f32 %v297, %v297
  %v306 = vadd.f32 %v294, %v298
  %v307 = vadd.f32 %v295, %v299
  %v308 = vadd.f32 %v296, %v300
  %v309 = vadd.f32 %v297, %v301
  %v310 = vmul.f32 %v298, %v298
  %v311 = vmul.f32 %v299, %v299
  %v312 = vmul.f32 %v300, %v300
  %v313 = vmul.f32 %v301, %v301
  %v314 = vadd.f32 %v302, %v310
  %v315 = vadd.f32 %v303, %v311
  %v316 = vadd.f32 %v304, %v312
  %v317 = vadd.f32 %v305, %v313
  %vm318 = vcmask 130048
  %v319 = vsel %vm318, %v306, 0.0
  %320 = vadd.xlane.f32.xlu0 %v319
  %v321 = vpop.xlane.xlu0 %320
  %v322 = vsel %vm318, %v307, 0.0
  %323 = vadd.xlane.f32.xlu0 %v322
  %v324 = vpop.xlane.xlu0 %323
  %v325 = vsel %vm318, %v308, 0.0
  %326 = vadd.xlane.f32.xlu0 %v325
  %v327 = vpop.xlane.xlu0 %326
  %v328 = vsel %vm318, %v309, 0.0
  %329 = vadd.xlane.f32.xlu0 %v328
  %v330 = vpop.xlane.xlu0 %329
  %v331 = vmul.f32 %v321, 0.03125
  %v332 = vmul.f32 %v324, 0.03125
  %v333 = vmul.f32 %v327, 0.03125
  %v334 = vmul.f32 %v330, 0.03125
  %v335 = vsel %vm318, %v314, 0.0
  %336 = vadd.xlane.f32.xlu0 %v335
  %v337 = vpop.xlane.xlu0 %336
  %v338 = vsel %vm318, %v315, 0.0
  %339 = vadd.xlane.f32.xlu0 %v338
  %v340 = vpop.xlane.xlu0 %339
  %v341 = vsel %vm318, %v316, 0.0
  %342 = vadd.xlane.f32.xlu0 %v341
  %v343 = vpop.xlane.xlu0 %342
  %v344 = vsel %vm318, %v317, 0.0
  %345 = vadd.xlane.f32.xlu0 %v344
  %v346 = vpop.xlane.xlu0 %345
  %v347 = vmul.f32 %v337, 0.03125
  %v348 = vmul.f32 %v340, 0.03125
  %v349 = vmul.f32 %v343, 0.03125
  %v350 = vmul.f32 %v346, 0.03125
  %v351 = vmul.f32 %v331, %v331
  %v352 = vmul.f32 %v332, %v332
  %v353 = vmul.f32 %v333, %v333
  %v354 = vmul.f32 %v334, %v334
  %v355 = vsub.f32 %v347, %v351
  %v356 = vsub.f32 %v348, %v352
  %v357 = vsub.f32 %v349, %v353
  %v358 = vsub.f32 %v350, %v354
  %v359 = vmax.f32 %v355, 0.0
  %v360 = vmax.f32 %v356, 0.0
  %v361 = vmax.f32 %v357, 0.0
  %v362 = vmax.f32 %v358, 0.0
  %v363 = vadd.f32 %v359, 1e-05
  %v364 = vadd.f32 %v360, 1e-05
  %v365 = vadd.f32 %v361, 1e-05
  %v366 = vadd.f32 %v362, 1e-05
  %v367 = vrsqrt.pop %v363
  %v368 = vrsqrt.pop %v364
  %v369 = vrsqrt.pop %v365
  %v370 = vrsqrt.pop %v366
  %v371 = vmul.f32 %v367, %v36
  %v372 = vmul.f32 %v368, %v37
  %v373 = vmul.f32 %v369, %v38
  %v374 = vmul.f32 %v370, %v39
  %v375 = vmul.f32 %v331, %v371
  %v376 = vmul.f32 %v332, %v372
  %v377 = vmul.f32 %v333, %v373
  %v378 = vmul.f32 %v334, %v374
  %383 = vrot.lane.b32.xlu0 %v375, 1
  %v384 = vpop.permute.xlu0 %383
  %385 = vrot.lane.b32.xlu0 %v376, 1
  %v386 = vpop.permute.xlu0 %385
  %387 = vrot.lane.b32.xlu0 %v377, 1
  %v388 = vpop.permute.xlu0 %387
  %389 = vrot.lane.b32.xlu0 %v378, 1
  %v390 = vpop.permute.xlu0 %389
  %v395 = vsub.f32 %v36, %v384
  %v396 = vsub.f32 %v37, %v386
  %v397 = vsub.f32 %v38, %v388
  %v398 = vsub.f32 %v39, %v390
  %400 = vset.pattern.permute.xlu0 0
  %401 = vperm.xlu0 %400, %v371
  %v402 = vpop.permute.xlu0 %401
  %405 = vset.pattern.permute.xlu0 0
  %406 = vperm.xlu0 %405, %v372
  %v407 = vpop.permute.xlu0 %406
  %410 = vset.pattern.permute.xlu0 0
  %411 = vperm.xlu0 %410, %v373
  %v412 = vpop.permute.xlu0 %411
  %415 = vset.pattern.permute.xlu0 0
  %416 = vperm.xlu0 %415, %v374
  %v417 = vpop.permute.xlu0 %416
  %v419 = vmul.f32 %v294, %v402
  %v420 = vmul.f32 %v295, %v407
  %v421 = vmul.f32 %v296, %v412
  %v422 = vmul.f32 %v297, %v417
  %424 = vset.pattern.permute.xlu0 1
  %425 = vperm.xlu0 %424, %v395
  %v426 = vpop.permute.xlu0 %425
  %429 = vset.pattern.permute.xlu0 1
  %430 = vperm.xlu0 %429, %v396
  %v431 = vpop.permute.xlu0 %430
  %434 = vset.pattern.permute.xlu0 1
  %435 = vperm.xlu0 %434, %v397
  %v436 = vpop.permute.xlu0 %435
  %439 = vset.pattern.permute.xlu0 1
  %440 = vperm.xlu0 %439, %v398
  %v441 = vpop.permute.xlu0 %440
  %v443 = vadd.f32 %v419, %v426
  %v444 = vadd.f32 %v420, %v431
  %v445 = vadd.f32 %v421, %v436
  %v446 = vadd.f32 %v422, %v441
  %v447 = vmax.f32 %v443, 0.0
  %v448 = vmax.f32 %v444, 0.0
  %v449 = vmax.f32 %v445, 0.0
  %v450 = vmax.f32 %v446, 0.0
  %v451 = vmul.f32 %v298, %v402
  %v452 = vmul.f32 %v299, %v407
  %v453 = vmul.f32 %v300, %v412
  %v454 = vmul.f32 %v301, %v417
  %v455 = vadd.f32 %v451, %v426
  %v456 = vadd.f32 %v452, %v431
  %v457 = vadd.f32 %v453, %v436
  %v458 = vadd.f32 %v454, %v441
  %v459 = vmax.f32 %v455, 0.0
  %v460 = vmax.f32 %v456, 0.0
  %v461 = vmax.f32 %v457, 0.0
  %v462 = vmax.f32 %v458, 0.0
  %v463 = vld [vmem:[%s3] sm:$0xf]
  %v464 = vld [vmem:[%s3 + $0x4] sm:$0xf]
  %v465 = vld [vmem:[%s3 + $0x8] sm:$0xf]
  %v466 = vld [vmem:[%s3 + $0xc] sm:$0xf]
  %v467 = vld [vmem:[%s3 + $0x10] sm:$0xf]
  %v468 = vld [vmem:[%s3 + $0x14] sm:$0xf]
  %v469 = vld [vmem:[%s3 + $0x18] sm:$0xf]
  %v470 = vld [vmem:[%s3 + $0x1c] sm:$0xf]
  %v471 = vld [vmem:[%s3 + $0x20] sm:$0xf]
  %v472 = vld [vmem:[%s3 + $0x24] sm:$0xf]
  %v473 = vld [vmem:[%s3 + $0x28] sm:$0xf]
  %v474 = vld [vmem:[%s3 + $0x2c] sm:$0xf]
  %v475 = vpack.c.bf16 %v448, %v447
  %v476 = vpack.c.bf16 %v450, %v449
  %v489 = vunpack.c.l.b16 %v463
  %v490 = vunpack.c.l.b16 %v464
  %v491 = vunpack.c.l.b16 %v465
  %v492 = vunpack.c.l.b16 %v466
  %v493 = vunpack.c.l.b16 %v467
  %v494 = vunpack.c.l.b16 %v468
  %v495 = vunpack.c.l.b16 %v469
  %v496 = vunpack.c.l.b16 %v470
  %v497 = vunpack.c.l.b16 %v471
  %v498 = vunpack.c.l.b16 %v472
  %v499 = vunpack.c.l.b16 %v473
  %v500 = vunpack.c.l.b16 %v474
  %v501 = vpack.c.b16 %v490, %v489
  %v502 = vpack.c.b16 %v492, %v491
  %v503 = vpack.c.b16 %v494, %v493
  %v504 = vpack.c.b16 %v496, %v495
  %v505 = vpack.c.b16 %v498, %v497
  %v506 = vpack.c.b16 %v500, %v499
  %vm507 = vcmask 261120
  %v509 = vsel %vm507, %v501, 0
  %v512 = vsel %vm507, %v502, 0
  %v515 = vsel %vm507, %v503, 0
  %v518 = vsel %vm507, %v504, 0
  %v521 = vsel %vm507, %v505, 0
  %v524 = vsel %vm507, %v506, 0
  %526 = vmatprep.subr.bf16.mxu0 0
  %527 = vmatpush1.bf16.msra.mxu0 %v475
  %528 = vmatprep.subr.bf16.mxu0 0
  %529 = vmatpush1.bf16.msra.mxu0 %v476
  %530 = vmatprep.subr.bf16.mxu0 0
  %531 = vmatpush1.bf16.msra.mxu0 0
  %532 = vmatprep.subr.bf16.mxu0 0
  %533 = vmatpush1.bf16.msra.mxu0 0
  %534 = vmatprep.subr.bf16.mxu0 0
  %535 = vmatpush1.bf16.msra.mxu0 0
  %536 = vmatprep.subr.bf16.mxu0 0
  %537 = vmatpush1.bf16.msra.mxu0 0
  %538 = vmatprep.subr.bf16.mxu0 0
  %539 = vmatpush1.bf16.msra.mxu0 0
  %540 = vmatprep.subr.bf16.mxu0 0
  %541 = vmatpush1.bf16.msra.mxu0 0
  %542 = vmatprep.subr.bf16.mxu0 0
  %543 = vmatpush1.bf16.msra.mxu0 0
  %544 = vmatprep.subr.bf16.mxu0 0
  %545 = vmatpush1.bf16.msra.mxu0 0
  %546 = vmatprep.subr.bf16.mxu0 0
  %547 = vmatpush1.bf16.msra.mxu0 0
  %548 = vmatprep.subr.bf16.mxu0 0
  %549 = vmatpush1.bf16.msra.mxu0 0
  %550 = vmatprep.subr.bf16.mxu0 0
  %551 = vmatpush1.bf16.msra.mxu0 0
  %552 = vmatprep.subr.bf16.mxu0 0
  %553 = vmatpush1.bf16.msra.mxu0 0
  %554 = vmatprep.subr.bf16.mxu0 0
  %555 = vmatpush1.bf16.msra.mxu0 0
  %556 = vmatprep.subr.bf16.mxu0 0
  %557 = vmatpush1.bf16.msra.mxu0 0
  %558 = vmatprep.mubr.bf16.mxu0 0
  %559 = vmatmul.mubr.bf16.gmra.mrb[0].mxu0 %v509
  %v560 = vpop.f32.mrb[0].mxu0
  %v561 = vadd.f32 0.0, %v560
  %v562 = vpop.f32.mrb[0].mxu0
  %v563 = vpop.f32.mrb[0].mxu0
  %v564 = vadd.f32 0.0, %v563
  %v565 = vpop.f32.mrb[0].mxu0
  %566 = vmatprep.mubr.bf16.mxu0 0
  %567 = vmatmul.mubr.bf16.gmra.mrb[0].mxu0 %v512
  %v568 = vpop.f32.mrb[0].mxu0
  %v569 = vadd.f32 0.0, %v568
  %v570 = vpop.f32.mrb[0].mxu0
  %v571 = vpop.f32.mrb[0].mxu0
  %v572 = vadd.f32 0.0, %v571
  %v573 = vpop.f32.mrb[0].mxu0
  %574 = vmatprep.mubr.bf16.mxu0 0
  %575 = vmatmul.mubr.bf16.gmra.mrb[0].mxu0 %v515
  %v576 = vpop.f32.mrb[0].mxu0
  %v577 = vadd.f32 0.0, %v576
  %v578 = vpop.f32.mrb[0].mxu0
  %v579 = vpop.f32.mrb[0].mxu0
  %v580 = vadd.f32 0.0, %v579
  %v581 = vpop.f32.mrb[0].mxu0
  %582 = vmatprep.mubr.bf16.mxu0 0
  %583 = vmatmul.mubr.bf16.gmra.mrb[0].mxu0 %v518
  %v584 = vpop.f32.mrb[0].mxu0
  %v585 = vadd.f32 0.0, %v584
  %v586 = vpop.f32.mrb[0].mxu0
  %v587 = vpop.f32.mrb[0].mxu0
  %v588 = vadd.f32 0.0, %v587
  %v589 = vpop.f32.mrb[0].mxu0
  %590 = vmatprep.mubr.bf16.mxu0 0
  %591 = vmatmul.mubr.bf16.gmra.mrb[0].mxu0 %v521
  %v592 = vpop.f32.mrb[0].mxu0
  %v593 = vadd.f32 0.0, %v592
  %v594 = vpop.f32.mrb[0].mxu0
  %v595 = vpop.f32.mrb[0].mxu0
  %v596 = vadd.f32 0.0, %v595
  %v597 = vpop.f32.mrb[0].mxu0
  %598 = vmatprep.mubr.bf16.mxu0 0
  %599 = vmatmul.mubr.bf16.gmra.mrb[0].mxu0 %v524
  %v600 = vpop.f32.mrb[0].mxu0
  %v601 = vadd.f32 0.0, %v600
  %v602 = vpop.f32.mrb[0].mxu0
  %v603 = vpop.f32.mrb[0].mxu0
  %v604 = vadd.f32 0.0, %v603
  %v605 = vpop.f32.mrb[0].mxu0
  %606 = vdwg.mxu0
  %v607 = vpack.c.bf16 %v460, %v459
  %v608 = vpack.c.bf16 %v462, %v461
  %609 = vmatprep.subr.bf16.mxu0 0
  %610 = vmatpush1.bf16.msra.mxu0 %v607
  %611 = vmatprep.subr.bf16.mxu0 0
  %612 = vmatpush1.bf16.msra.mxu0 %v608
  %613 = vmatprep.subr.bf16.mxu0 0
  %614 = vmatpush1.bf16.msra.mxu0 0
  %615 = vmatprep.subr.bf16.mxu0 0
  %616 = vmatpush1.bf16.msra.mxu0 0
  %617 = vmatprep.subr.bf16.mxu0 0
  %618 = vmatpush1.bf16.msra.mxu0 0
  %619 = vmatprep.subr.bf16.mxu0 0
  %620 = vmatpush1.bf16.msra.mxu0 0
  %621 = vmatprep.subr.bf16.mxu0 0
  %622 = vmatpush1.bf16.msra.mxu0 0
  %623 = vmatprep.subr.bf16.mxu0 0
  %624 = vmatpush1.bf16.msra.mxu0 0
  %625 = vmatprep.subr.bf16.mxu0 0
  %626 = vmatpush1.bf16.msra.mxu0 0
  %627 = vmatprep.subr.bf16.mxu0 0
  %628 = vmatpush1.bf16.msra.mxu0 0
  %629 = vmatprep.subr.bf16.mxu0 0
  %630 = vmatpush1.bf16.msra.mxu0 0
  %631 = vmatprep.subr.bf16.mxu0 0
  %632 = vmatpush1.bf16.msra.mxu0 0
  %633 = vmatprep.subr.bf16.mxu0 0
  %634 = vmatpush1.bf16.msra.mxu0 0
  %635 = vmatprep.subr.bf16.mxu0 0
  %636 = vmatpush1.bf16.msra.mxu0 0
  %637 = vmatprep.subr.bf16.mxu0 0
  %638 = vmatpush1.bf16.msra.mxu0 0
  %639 = vmatprep.subr.bf16.mxu0 0
  %640 = vmatpush1.bf16.msra.mxu0 0
  %641 = vmatprep.mubr.bf16.mxu0 0
  %642 = vmatmul.mubr.bf16.gmra.mrb[0].mxu0 %v509
  %v643 = vpop.f32.mrb[0].mxu0
  %v644 = vadd.f32 0.0, %v643
  %v645 = vpop.f32.mrb[0].mxu0
  %v646 = vpop.f32.mrb[0].mxu0
  %v647 = vadd.f32 0.0, %v646
  %v648 = vpop.f32.mrb[0].mxu0
  %649 = vmatprep.mubr.bf16.mxu0 0
  %650 = vmatmul.mubr.bf16.gmra.mrb[0].mxu0 %v512
  %v651 = vpop.f32.mrb[0].mxu0
  %v652 = vadd.f32 0.0, %v651
  %v653 = vpop.f32.mrb[0].mxu0
  %v654 = vpop.f32.mrb[0].mxu0
  %v655 = vadd.f32 0.0, %v654
  %v656 = vpop.f32.mrb[0].mxu0
  %657 = vmatprep.mubr.bf16.mxu0 0
  %658 = vmatmul.mubr.bf16.gmra.mrb[0].mxu0 %v515
  %v659 = vpop.f32.mrb[0].mxu0
  %v660 = vadd.f32 0.0, %v659
  %v661 = vpop.f32.mrb[0].mxu0
  %v662 = vpop.f32.mrb[0].mxu0
  %v663 = vadd.f32 0.0, %v662
  %v664 = vpop.f32.mrb[0].mxu0
  %665 = vmatprep.mubr.bf16.mxu0 0
  %666 = vmatmul.mubr.bf16.gmra.mrb[0].mxu0 %v518
  %v667 = vpop.f32.mrb[0].mxu0
  %v668 = vadd.f32 0.0, %v667
  %v669 = vpop.f32.mrb[0].mxu0
  %v670 = vpop.f32.mrb[0].mxu0
  %v671 = vadd.f32 0.0, %v670
  %v672 = vpop.f32.mrb[0].mxu0
  %673 = vmatprep.mubr.bf16.mxu0 0
  %674 = vmatmul.mubr.bf16.gmra.mrb[0].mxu0 %v521
  %v675 = vpop.f32.mrb[0].mxu0
  %v676 = vadd.f32 0.0, %v675
  %v677 = vpop.f32.mrb[0].mxu0
  %v678 = vpop.f32.mrb[0].mxu0
  %v679 = vadd.f32 0.0, %v678
  %v680 = vpop.f32.mrb[0].mxu0
  %681 = vmatprep.mubr.bf16.mxu0 0
  %682 = vmatmul.mubr.bf16.gmra.mrb[0].mxu0 %v524
  %v683 = vpop.f32.mrb[0].mxu0
  %v684 = vadd.f32 0.0, %v683
  %v685 = vpop.f32.mrb[0].mxu0
  %v686 = vpop.f32.mrb[0].mxu0
  %v687 = vadd.f32 0.0, %v686
  %v688 = vpop.f32.mrb[0].mxu0
  %689 = vdwg.mxu0
  %694 = vrot.lane.b32.xlu0 %v644, 1
  %v695 = vpop.permute.xlu0 %694
  %696 = vrot.lane.b32.xlu0 %v647, 1
  %v697 = vpop.permute.xlu0 %696
  %698 = vrot.lane.b32.xlu0 %v652, 1
  %v699 = vpop.permute.xlu0 %698
  %700 = vrot.lane.b32.xlu0 %v655, 1
  %v701 = vpop.permute.xlu0 %700
  %v706 = vsel %vm256, 0.0, %v695
  %v707 = vsel %vm256, 0.0, %v697
  %v708 = vsel %vm256, 0.0, %v699
  %v709 = vsel %vm256, 0.0, %v701
  %v710 = vsel %vm262, %v706, 0.0
  %v711 = vsel %vm262, %v707, 0.0
  %v712 = vsel %vm262, %v708, 0.0
  %v713 = vsel %vm262, %v709, 0.0
  %v714 = vadd.f32 %v710, %v577
  %v715 = vadd.f32 %v711, %v580
  %v716 = vadd.f32 %v712, %v585
  %v717 = vadd.f32 %v713, %v588
  %v718 = vadd.f32 %v714, %v676
  %v719 = vadd.f32 %v715, %v679
  %v720 = vadd.f32 %v716, %v684
  %v721 = vadd.f32 %v717, %v687
  %726 = vrot.lane.b32.xlu0 %v593, 127
  %v727 = vpop.permute.xlu0 %726
  %728 = vrot.lane.b32.xlu0 %v596, 127
  %v729 = vpop.permute.xlu0 %728
  %730 = vrot.lane.b32.xlu0 %v601, 127
  %v731 = vpop.permute.xlu0 %730
  %732 = vrot.lane.b32.xlu0 %v604, 127
  %v733 = vpop.permute.xlu0 %732
  %v738 = vsel %vm283, %v727, 0.0
  %v739 = vsel %vm283, %v729, 0.0
  %v740 = vsel %vm283, %v731, 0.0
  %v741 = vsel %vm283, %v733, 0.0
  %v742 = vsel %vm289, %v738, 0.0
  %v743 = vsel %vm289, %v739, 0.0
  %v744 = vsel %vm289, %v740, 0.0
  %v745 = vsel %vm289, %v741, 0.0
  %v746 = vadd.f32 %v561, %v660
  %v747 = vadd.f32 %v564, %v663
  %v748 = vadd.f32 %v569, %v668
  %v749 = vadd.f32 %v572, %v671
  %v750 = vadd.f32 %v746, %v742
  %v751 = vadd.f32 %v747, %v743
  %v752 = vadd.f32 %v748, %v744
  %v753 = vadd.f32 %v749, %v745
  %v754 = vmul.f32 %v718, %v718
  %v755 = vmul.f32 %v719, %v719
  %v756 = vmul.f32 %v720, %v720
  %v757 = vmul.f32 %v721, %v721
  %v758 = vadd.f32 %v718, %v750
  %v759 = vadd.f32 %v719, %v751
  %v760 = vadd.f32 %v720, %v752
  %v761 = vadd.f32 %v721, %v753
  %v762 = vmul.f32 %v750, %v750
  %v763 = vmul.f32 %v751, %v751
  %v764 = vmul.f32 %v752, %v752
  %v765 = vmul.f32 %v753, %v753
  %v766 = vadd.f32 %v754, %v762
  %v767 = vadd.f32 %v755, %v763
  %v768 = vadd.f32 %v756, %v764
  %v769 = vadd.f32 %v757, %v765
  %v770 = vsel %vm318, %v758, 0.0
  %771 = vadd.xlane.f32.xlu0 %v770
  %v772 = vpop.xlane.xlu0 %771
  %v773 = vsel %vm318, %v759, 0.0
  %774 = vadd.xlane.f32.xlu0 %v773
  %v775 = vpop.xlane.xlu0 %774
  %v776 = vsel %vm318, %v760, 0.0
  %777 = vadd.xlane.f32.xlu0 %v776
  %v778 = vpop.xlane.xlu0 %777
  %v779 = vsel %vm318, %v761, 0.0
  %780 = vadd.xlane.f32.xlu0 %v779
  %v781 = vpop.xlane.xlu0 %780
  %v782 = vmul.f32 %v772, 0.03125
  %v783 = vmul.f32 %v775, 0.03125
  %v784 = vmul.f32 %v778, 0.03125
  %v785 = vmul.f32 %v781, 0.03125
  %v786 = vsel %vm318, %v766, 0.0
  %787 = vadd.xlane.f32.xlu0 %v786
  %v788 = vpop.xlane.xlu0 %787
  %v789 = vsel %vm318, %v767, 0.0
  %790 = vadd.xlane.f32.xlu0 %v789
  %v791 = vpop.xlane.xlu0 %790
  %v792 = vsel %vm318, %v768, 0.0
  %793 = vadd.xlane.f32.xlu0 %v792
  %v794 = vpop.xlane.xlu0 %793
  %v795 = vsel %vm318, %v769, 0.0
  %796 = vadd.xlane.f32.xlu0 %v795
  %v797 = vpop.xlane.xlu0 %796
  %v798 = vmul.f32 %v788, 0.03125
  %v799 = vmul.f32 %v791, 0.03125
  %v800 = vmul.f32 %v794, 0.03125
  %v801 = vmul.f32 %v797, 0.03125
  %v802 = vmul.f32 %v782, %v782
  %v803 = vmul.f32 %v783, %v783
  %v804 = vmul.f32 %v784, %v784
  %v805 = vmul.f32 %v785, %v785
  %v806 = vsub.f32 %v798, %v802
  %v807 = vsub.f32 %v799, %v803
  %v808 = vsub.f32 %v800, %v804
  %v809 = vsub.f32 %v801, %v805
  %v810 = vmax.f32 %v806, 0.0
  %v811 = vmax.f32 %v807, 0.0
  %v812 = vmax.f32 %v808, 0.0
  %v813 = vmax.f32 %v809, 0.0
  %v814 = vadd.f32 %v810, 1e-05
  %v815 = vadd.f32 %v811, 1e-05
  %v816 = vadd.f32 %v812, 1e-05
  %v817 = vadd.f32 %v813, 1e-05
  %v818 = vrsqrt.pop %v814
  %v819 = vrsqrt.pop %v815
  %v820 = vrsqrt.pop %v816
  %v821 = vrsqrt.pop %v817
  %v822 = vmul.f32 %v818, %v36
  %v823 = vmul.f32 %v819, %v37
  %v824 = vmul.f32 %v820, %v38
  %v825 = vmul.f32 %v821, %v39
  %v826 = vmul.f32 %v782, %v822
  %v827 = vmul.f32 %v783, %v823
  %v828 = vmul.f32 %v784, %v824
  %v829 = vmul.f32 %v785, %v825
  %834 = vrot.lane.b32.xlu0 %v826, 1
  %v835 = vpop.permute.xlu0 %834
  %836 = vrot.lane.b32.xlu0 %v827, 1
  %v837 = vpop.permute.xlu0 %836
  %838 = vrot.lane.b32.xlu0 %v828, 1
  %v839 = vpop.permute.xlu0 %838
  %840 = vrot.lane.b32.xlu0 %v829, 1
  %v841 = vpop.permute.xlu0 %840
  %v846 = vsub.f32 %v36, %v835
  %v847 = vsub.f32 %v37, %v837
  %v848 = vsub.f32 %v38, %v839
  %v849 = vsub.f32 %v39, %v841
  %851 = vset.pattern.permute.xlu0 2
  %852 = vperm.xlu0 %851, %v822
  %v853 = vpop.permute.xlu0 %852
  %856 = vset.pattern.permute.xlu0 2
  %857 = vperm.xlu0 %856, %v823
  %v858 = vpop.permute.xlu0 %857
  %861 = vset.pattern.permute.xlu0 2
  %862 = vperm.xlu0 %861, %v824
  %v863 = vpop.permute.xlu0 %862
  %866 = vset.pattern.permute.xlu0 2
  %867 = vperm.xlu0 %866, %v825
  %v868 = vpop.permute.xlu0 %867
  %v870 = vmul.f32 %v718, %v853
  %v871 = vmul.f32 %v719, %v858
  %v872 = vmul.f32 %v720, %v863
  %v873 = vmul.f32 %v721, %v868
  %875 = vset.pattern.permute.xlu0 3
  %876 = vperm.xlu0 %875, %v846
  %v877 = vpop.permute.xlu0 %876
  %880 = vset.pattern.permute.xlu0 3
  %881 = vperm.xlu0 %880, %v847
  %v882 = vpop.permute.xlu0 %881
  %885 = vset.pattern.permute.xlu0 3
  %886 = vperm.xlu0 %885, %v848
  %v887 = vpop.permute.xlu0 %886
  %890 = vset.pattern.permute.xlu0 3
  %891 = vperm.xlu0 %890, %v849
  %v892 = vpop.permute.xlu0 %891
  %v894 = vadd.f32 %v870, %v877
  %v895 = vadd.f32 %v871, %v882
  %v896 = vadd.f32 %v872, %v887
  %v897 = vadd.f32 %v873, %v892
  %v898 = vmax.f32 %v894, 0.0
  %v899 = vmax.f32 %v895, 0.0
  %v900 = vmax.f32 %v896, 0.0
  %v901 = vmax.f32 %v897, 0.0
  %v902 = vadd.f32 %v447, %v898
  %v903 = vadd.f32 %v448, %v899
  %v904 = vadd.f32 %v449, %v900
  %v905 = vadd.f32 %v450, %v901
  %v906 = vmul.f32 %v750, %v853
  %v907 = vmul.f32 %v751, %v858
  %v908 = vmul.f32 %v752, %v863
  %v909 = vmul.f32 %v753, %v868
  %v910 = vadd.f32 %v906, %v877
  %v911 = vadd.f32 %v907, %v882
  %v912 = vadd.f32 %v908, %v887
  %v913 = vadd.f32 %v909, %v892
  %v914 = vmax.f32 %v910, 0.0
  %v915 = vmax.f32 %v911, 0.0
  %v916 = vmax.f32 %v912, 0.0
  %v917 = vmax.f32 %v913, 0.0
  %v918 = vadd.f32 %v459, %v914
  %v919 = vadd.f32 %v460, %v915
  %v920 = vadd.f32 %v461, %v916
  %v921 = vadd.f32 %v462, %v917
  %v922 = vld [vmem:[%s4] sm:$0xf]
  %v923 = vld [vmem:[%s4 + $0x4] sm:$0xf]
  %v924 = vld [vmem:[%s4 + $0x8] sm:$0xf]
  %v925 = vld [vmem:[%s4 + $0xc] sm:$0xf]
  %v926 = vld [vmem:[%s4 + $0x10] sm:$0xf]
  %v927 = vld [vmem:[%s4 + $0x14] sm:$0xf]
  %v928 = vld [vmem:[%s4 + $0x18] sm:$0xf]
  %v929 = vld [vmem:[%s4 + $0x1c] sm:$0xf]
  %v930 = vpack.c.bf16 %v903, %v902
  %v931 = vpack.c.bf16 %v905, %v904
  %v940 = vunpack.c.l.b16 %v922
  %v941 = vunpack.c.l.b16 %v923
  %v942 = vunpack.c.l.b16 %v924
  %v943 = vunpack.c.l.b16 %v925
  %v944 = vunpack.c.l.b16 %v926
  %v945 = vunpack.c.l.b16 %v927
  %v946 = vunpack.c.l.b16 %v928
  %v947 = vunpack.c.l.b16 %v929
  %v948 = vpack.c.b16 %v941, %v940
  %v949 = vpack.c.b16 %v943, %v942
  %v950 = vpack.c.b16 %v945, %v944
  %v951 = vpack.c.b16 %v947, %v946
  %v953 = vsel %vm507, %v948, 0
  %v956 = vsel %vm507, %v949, 0
  %v959 = vsel %vm507, %v950, 0
  %v962 = vsel %vm507, %v951, 0
  %964 = vmatprep.subr.bf16.mxu0 0
  %965 = vmatpush1.bf16.msra.mxu0 %v930
  %966 = vmatprep.subr.bf16.mxu0 0
  %967 = vmatpush1.bf16.msra.mxu0 %v931
  %968 = vmatprep.subr.bf16.mxu0 0
  %969 = vmatpush1.bf16.msra.mxu0 0
  %970 = vmatprep.subr.bf16.mxu0 0
  %971 = vmatpush1.bf16.msra.mxu0 0
  %972 = vmatprep.subr.bf16.mxu0 0
  %973 = vmatpush1.bf16.msra.mxu0 0
  %974 = vmatprep.subr.bf16.mxu0 0
  %975 = vmatpush1.bf16.msra.mxu0 0
  %976 = vmatprep.subr.bf16.mxu0 0
  %977 = vmatpush1.bf16.msra.mxu0 0
  %978 = vmatprep.subr.bf16.mxu0 0
  %979 = vmatpush1.bf16.msra.mxu0 0
  %980 = vmatprep.subr.bf16.mxu0 0
  %981 = vmatpush1.bf16.msra.mxu0 0
  %982 = vmatprep.subr.bf16.mxu0 0
  %983 = vmatpush1.bf16.msra.mxu0 0
  %984 = vmatprep.subr.bf16.mxu0 0
  %985 = vmatpush1.bf16.msra.mxu0 0
  %986 = vmatprep.subr.bf16.mxu0 0
  %987 = vmatpush1.bf16.msra.mxu0 0
  %988 = vmatprep.subr.bf16.mxu0 0
  %989 = vmatpush1.bf16.msra.mxu0 0
  %990 = vmatprep.subr.bf16.mxu0 0
  %991 = vmatpush1.bf16.msra.mxu0 0
  %992 = vmatprep.subr.bf16.mxu0 0
  %993 = vmatpush1.bf16.msra.mxu0 0
  %994 = vmatprep.subr.bf16.mxu0 0
  %995 = vmatpush1.bf16.msra.mxu0 0
  %996 = vmatprep.mubr.bf16.mxu0 0
  %997 = vmatmul.mubr.bf16.gmra.mrb[0].mxu0 %v953
  %v998 = vpop.f32.mrb[0].mxu0
  %v999 = vadd.f32 0.0, %v998
  %v1000 = vpop.f32.mrb[0].mxu0
  %v1001 = vpop.f32.mrb[0].mxu0
  %v1002 = vadd.f32 0.0, %v1001
  %v1003 = vpop.f32.mrb[0].mxu0
  %1004 = vmatprep.mubr.bf16.mxu0 0
  %1005 = vmatmul.mubr.bf16.gmra.mrb[0].mxu0 %v956
  %v1006 = vpop.f32.mrb[0].mxu0
  %v1007 = vadd.f32 0.0, %v1006
  %v1008 = vpop.f32.mrb[0].mxu0
  %v1009 = vpop.f32.mrb[0].mxu0
  %v1010 = vadd.f32 0.0, %v1009
  %v1011 = vpop.f32.mrb[0].mxu0
  %1012 = vmatprep.mubr.bf16.mxu0 0
  %1013 = vmatmul.mubr.bf16.gmra.mrb[0].mxu0 %v959
  %v1014 = vpop.f32.mrb[0].mxu0
  %v1015 = vadd.f32 0.0, %v1014
  %v1016 = vpop.f32.mrb[0].mxu0
  %v1017 = vpop.f32.mrb[0].mxu0
  %v1018 = vadd.f32 0.0, %v1017
  %v1019 = vpop.f32.mrb[0].mxu0
  %1020 = vmatprep.mubr.bf16.mxu0 0
  %1021 = vmatmul.mubr.bf16.gmra.mrb[0].mxu0 %v962
  %v1022 = vpop.f32.mrb[0].mxu0
  %v1023 = vadd.f32 0.0, %v1022
  %v1024 = vpop.f32.mrb[0].mxu0
  %v1025 = vpop.f32.mrb[0].mxu0
  %v1026 = vadd.f32 0.0, %v1025
  %v1027 = vpop.f32.mrb[0].mxu0
  %1028 = vdwg.mxu0
  %v1029 = vpack.c.bf16 %v919, %v918
  %v1030 = vpack.c.bf16 %v921, %v920
  %1031 = vmatprep.subr.bf16.mxu0 0
  %1032 = vmatpush1.bf16.msra.mxu0 %v1029
  %1033 = vmatprep.subr.bf16.mxu0 0
  %1034 = vmatpush1.bf16.msra.mxu0 %v1030
  %1035 = vmatprep.subr.bf16.mxu0 0
  %1036 = vmatpush1.bf16.msra.mxu0 0
  %1037 = vmatprep.subr.bf16.mxu0 0
  %1038 = vmatpush1.bf16.msra.mxu0 0
  %1039 = vmatprep.subr.bf16.mxu0 0
  %1040 = vmatpush1.bf16.msra.mxu0 0
  %1041 = vmatprep.subr.bf16.mxu0 0
  %1042 = vmatpush1.bf16.msra.mxu0 0
  %1043 = vmatprep.subr.bf16.mxu0 0
  %1044 = vmatpush1.bf16.msra.mxu0 0
  %1045 = vmatprep.subr.bf16.mxu0 0
  %1046 = vmatpush1.bf16.msra.mxu0 0
  %1047 = vmatprep.subr.bf16.mxu0 0
  %1048 = vmatpush1.bf16.msra.mxu0 0
  %1049 = vmatprep.subr.bf16.mxu0 0
  %1050 = vmatpush1.bf16.msra.mxu0 0
  %1051 = vmatprep.subr.bf16.mxu0 0
  %1052 = vmatpush1.bf16.msra.mxu0 0
  %1053 = vmatprep.subr.bf16.mxu0 0
  %1054 = vmatpush1.bf16.msra.mxu0 0
  %1055 = vmatprep.subr.bf16.mxu0 0
  %1056 = vmatpush1.bf16.msra.mxu0 0
  %1057 = vmatprep.subr.bf16.mxu0 0
  %1058 = vmatpush1.bf16.msra.mxu0 0
  %1059 = vmatprep.subr.bf16.mxu0 0
  %1060 = vmatpush1.bf16.msra.mxu0 0
  %1061 = vmatprep.subr.bf16.mxu0 0
  %1062 = vmatpush1.bf16.msra.mxu0 0
  %1063 = vmatprep.mubr.bf16.mxu0 0
  %1064 = vmatmul.mubr.bf16.gmra.mrb[0].mxu0 %v953
  %v1065 = vpop.f32.mrb[0].mxu0
  %v1066 = vadd.f32 0.0, %v1065
  %v1067 = vpop.f32.mrb[0].mxu0
  %v1068 = vpop.f32.mrb[0].mxu0
  %v1069 = vadd.f32 0.0, %v1068
  %v1070 = vpop.f32.mrb[0].mxu0
  %1071 = vmatprep.mubr.bf16.mxu0 0
  %1072 = vmatmul.mubr.bf16.gmra.mrb[0].mxu0 %v956
  %v1073 = vpop.f32.mrb[0].mxu0
  %v1074 = vadd.f32 0.0, %v1073
  %v1075 = vpop.f32.mrb[0].mxu0
  %v1076 = vpop.f32.mrb[0].mxu0
  %v1077 = vadd.f32 0.0, %v1076
  %v1078 = vpop.f32.mrb[0].mxu0
  %1079 = vmatprep.mubr.bf16.mxu0 0
  %1080 = vmatmul.mubr.bf16.gmra.mrb[0].mxu0 %v959
  %v1081 = vpop.f32.mrb[0].mxu0
  %v1082 = vadd.f32 0.0, %v1081
  %v1083 = vpop.f32.mrb[0].mxu0
  %v1084 = vpop.f32.mrb[0].mxu0
  %v1085 = vadd.f32 0.0, %v1084
  %v1086 = vpop.f32.mrb[0].mxu0
  %1087 = vmatprep.mubr.bf16.mxu0 0
  %1088 = vmatmul.mubr.bf16.gmra.mrb[0].mxu0 %v962
  %v1089 = vpop.f32.mrb[0].mxu0
  %v1090 = vadd.f32 0.0, %v1089
  %v1091 = vpop.f32.mrb[0].mxu0
  %v1092 = vpop.f32.mrb[0].mxu0
  %v1093 = vadd.f32 0.0, %v1092
  %v1094 = vpop.f32.mrb[0].mxu0
  %1095 = vdwg.mxu0
  %1098 = vrot.lane.b32.xlu0 %v1090, 1
  %v1099 = vpop.permute.xlu0 %1098
  %1100 = vrot.lane.b32.xlu0 %v1093, 1
  %v1101 = vpop.permute.xlu0 %1100
  %v1104 = vsel %vm256, 0.0, %v1099
  %v1105 = vsel %vm256, 0.0, %v1101
  %v1106 = vsel %vm262, %v1104, 0.0
  %v1107 = vsel %vm262, %v1105, 0.0
  %v1108 = vadd.f32 %v1007, %v1106
  %v1109 = vadd.f32 %v1010, %v1107
  %v1110 = vadd.f32 %v1015, %v1066
  %v1111 = vadd.f32 %v1018, %v1069
  %1114 = vrot.lane.b32.xlu0 %v999, 127
  %v1115 = vpop.permute.xlu0 %1114
  %1116 = vrot.lane.b32.xlu0 %v1002, 127
  %v1117 = vpop.permute.xlu0 %1116
  %v1120 = vsel %vm283, %v1115, 0.0
  %v1121 = vsel %vm283, %v1117, 0.0
  %v1122 = vsel %vm289, %v1120, 0.0
  %v1123 = vsel %vm289, %v1121, 0.0
  %v1124 = vadd.f32 %v1074, %v1023
  %v1125 = vadd.f32 %v1077, %v1026
  %v1126 = vadd.f32 %v1082, %v1122
  %v1127 = vadd.f32 %v1085, %v1123
  %v1128 = vmul.f32 %v1108, %v1108
  %v1129 = vmul.f32 %v1109, %v1109
  %v1130 = vadd.f32 %v1108, %v1110
  %v1131 = vadd.f32 %v1109, %v1111
  %v1132 = vmul.f32 %v1110, %v1110
  %v1133 = vmul.f32 %v1111, %v1111
  %v1134 = vadd.f32 %v1128, %v1132
  %v1135 = vadd.f32 %v1129, %v1133
  %v1136 = vadd.f32 %v1130, %v1124
  %v1137 = vadd.f32 %v1131, %v1125
  %v1138 = vmul.f32 %v1124, %v1124
  %v1139 = vmul.f32 %v1125, %v1125
  %v1140 = vadd.f32 %v1134, %v1138
  %v1141 = vadd.f32 %v1135, %v1139
  %v1142 = vadd.f32 %v1136, %v1126
  %v1143 = vadd.f32 %v1137, %v1127
  %v1144 = vmul.f32 %v1126, %v1126
  %v1145 = vmul.f32 %v1127, %v1127
  %v1146 = vadd.f32 %v1140, %v1144
  %v1147 = vadd.f32 %v1141, %v1145
  %v1148 = vsel %vm318, %v1142, 0.0
  %1149 = vadd.xlane.f32.xlu0 %v1148
  %v1150 = vpop.xlane.xlu0 %1149
  %v1151 = vsel %vm318, %v1143, 0.0
  %1152 = vadd.xlane.f32.xlu0 %v1151
  %v1153 = vpop.xlane.xlu0 %1152
  %v1154 = vmul.f32 %v1150, 0.015625
  %v1155 = vmul.f32 %v1153, 0.015625
  %v1156 = vsel %vm318, %v1146, 0.0
  %1157 = vadd.xlane.f32.xlu0 %v1156
  %v1158 = vpop.xlane.xlu0 %1157
  %v1159 = vsel %vm318, %v1147, 0.0
  %1160 = vadd.xlane.f32.xlu0 %v1159
  %v1161 = vpop.xlane.xlu0 %1160
  %v1162 = vmul.f32 %v1158, 0.015625
  %v1163 = vmul.f32 %v1161, 0.015625
  %v1164 = vmul.f32 %v1154, %v1154
  %v1165 = vmul.f32 %v1155, %v1155
  %v1166 = vsub.f32 %v1162, %v1164
  %v1167 = vsub.f32 %v1163, %v1165
  %v1168 = vmax.f32 %v1166, 0.0
  %v1169 = vmax.f32 %v1167, 0.0
  %v1170 = vadd.f32 %v1168, 1e-05
  %v1171 = vadd.f32 %v1169, 1e-05
  %v1172 = vrsqrt.pop %v1170
  %v1173 = vrsqrt.pop %v1171
  %v1174 = vmul.f32 %v1172, %v36
  %v1175 = vmul.f32 %v1173, %v37
  %v1176 = vmul.f32 %v1154, %v1174
  %v1177 = vmul.f32 %v1155, %v1175
  %1180 = vrot.lane.b32.xlu0 %v1176, 1
  %v1181 = vpop.permute.xlu0 %1180
  %1182 = vrot.lane.b32.xlu0 %v1177, 1
  %v1183 = vpop.permute.xlu0 %1182
  %v1186 = vsub.f32 %v36, %v1181
  %v1187 = vsub.f32 %v37, %v1183
  %1189 = vset.pattern.permute.xlu0 4
  %1190 = vperm.xlu0 %1189, %v1174
  %v1191 = vpop.permute.xlu0 %1190
  %1194 = vset.pattern.permute.xlu0 4
  %1195 = vperm.xlu0 %1194, %v1175
  %v1196 = vpop.permute.xlu0 %1195
  %v1198 = vmul.f32 %v1108, %v1191
  %v1199 = vmul.f32 %v1109, %v1196
  %1201 = vset.pattern.permute.xlu0 5
  %1202 = vperm.xlu0 %1201, %v1186
  %v1203 = vpop.permute.xlu0 %1202
  %1206 = vset.pattern.permute.xlu0 5
  %1207 = vperm.xlu0 %1206, %v1187
  %v1208 = vpop.permute.xlu0 %1207
  %v1210 = vadd.f32 %v1198, %v1203
  %v1211 = vadd.f32 %v1199, %v1208
  %v1212 = vmax.f32 %v1210, 0.0
  %v1213 = vmax.f32 %v1211, 0.0
  %v1214 = vmul.f32 %v1110, %v1191
  %v1215 = vmul.f32 %v1111, %v1196
  %v1216 = vadd.f32 %v1214, %v1203
  %v1217 = vadd.f32 %v1215, %v1208
  %v1218 = vmax.f32 %v1216, 0.0
  %v1219 = vmax.f32 %v1217, 0.0
  %v1220 = vmul.f32 %v1124, %v1191
  %v1221 = vmul.f32 %v1125, %v1196
  %v1222 = vadd.f32 %v1220, %v1203
  %v1223 = vadd.f32 %v1221, %v1208
  %v1224 = vmax.f32 %v1222, 0.0
  %v1225 = vmax.f32 %v1223, 0.0
  %v1226 = vmul.f32 %v1126, %v1191
  %v1227 = vmul.f32 %v1127, %v1196
  %v1228 = vadd.f32 %v1226, %v1203
  %v1229 = vadd.f32 %v1227, %v1208
  %v1230 = vmax.f32 %v1228, 0.0
  %v1231 = vmax.f32 %v1229, 0.0
  %v1232 = vld [vmem:[%s5] sm:$0xf]
  %v1233 = vld [vmem:[%s5 + $0x4] sm:$0xf]
  %v1234 = vld [vmem:[%s5 + $0x8] sm:$0xf]
  %v1235 = vld [vmem:[%s5 + $0xc] sm:$0xf]
  %v1236 = vld [vmem:[%s5 + $0x10] sm:$0xf]
  %v1237 = vld [vmem:[%s5 + $0x14] sm:$0xf]
  %v1238 = vpack.c.bf16 %v1213, %v1212
  %v1245 = vunpack.c.l.b16 %v1232
  %v1246 = vunpack.c.l.b16 %v1233
  %v1247 = vunpack.c.l.b16 %v1234
  %v1248 = vunpack.c.l.b16 %v1235
  %v1249 = vunpack.c.l.b16 %v1236
  %v1250 = vunpack.c.l.b16 %v1237
  %v1251 = vpack.c.b16 %v1246, %v1245
  %v1252 = vpack.c.b16 %v1248, %v1247
  %v1253 = vpack.c.b16 %v1250, %v1249
  %v1255 = vsel %vm318, %v1251, 0
  %v1258 = vsel %vm318, %v1252, 0
  %v1261 = vsel %vm318, %v1253, 0
  %1263 = vmatprep.subr.bf16.mxu0 0
  %1264 = vmatpush1.bf16.msra.mxu0 %v1238
  %1265 = vmatprep.subr.bf16.mxu0 0
  %1266 = vmatpush1.bf16.msra.mxu0 0
  %1267 = vmatprep.subr.bf16.mxu0 0
  %1268 = vmatpush1.bf16.msra.mxu0 0
  %1269 = vmatprep.subr.bf16.mxu0 0
  %1270 = vmatpush1.bf16.msra.mxu0 0
  %1271 = vmatprep.subr.bf16.mxu0 0
  %1272 = vmatpush1.bf16.msra.mxu0 0
  %1273 = vmatprep.subr.bf16.mxu0 0
  %1274 = vmatpush1.bf16.msra.mxu0 0
  %1275 = vmatprep.subr.bf16.mxu0 0
  %1276 = vmatpush1.bf16.msra.mxu0 0
  %1277 = vmatprep.subr.bf16.mxu0 0
  %1278 = vmatpush1.bf16.msra.mxu0 0
  %1279 = vmatprep.subr.bf16.mxu0 0
  %1280 = vmatpush1.bf16.msra.mxu0 0
  %1281 = vmatprep.subr.bf16.mxu0 0
  %1282 = vmatpush1.bf16.msra.mxu0 0
  %1283 = vmatprep.subr.bf16.mxu0 0
  %1284 = vmatpush1.bf16.msra.mxu0 0
  %1285 = vmatprep.subr.bf16.mxu0 0
  %1286 = vmatpush1.bf16.msra.mxu0 0
  %1287 = vmatprep.subr.bf16.mxu0 0
  %1288 = vmatpush1.bf16.msra.mxu0 0
  %1289 = vmatprep.subr.bf16.mxu0 0
  %1290 = vmatpush1.bf16.msra.mxu0 0
  %1291 = vmatprep.subr.bf16.mxu0 0
  %1292 = vmatpush1.bf16.msra.mxu0 0
  %1293 = vmatprep.subr.bf16.mxu0 0
  %1294 = vmatpush1.bf16.msra.mxu0 0
  %1295 = vmatprep.mubr.bf16.mxu0 0
  %1296 = vmatmul.mubr.bf16.gmra.mrb[0].mxu0 %v1255
  %v1297 = vpop.f32.mrb[0].mxu0
  %v1298 = vadd.f32 0.0, %v1297
  %v1299 = vpop.f32.mrb[0].mxu0
  %v1300 = vpop.f32.mrb[0].mxu0
  %v1301 = vadd.f32 0.0, %v1300
  %v1302 = vpop.f32.mrb[0].mxu0
  %1303 = vmatprep.mubr.bf16.mxu0 0
  %1304 = vmatmul.mubr.bf16.gmra.mrb[0].mxu0 %v1258
  %v1305 = vpop.f32.mrb[0].mxu0
  %v1306 = vadd.f32 0.0, %v1305
  %v1307 = vpop.f32.mrb[0].mxu0
  %v1308 = vpop.f32.mrb[0].mxu0
  %v1309 = vadd.f32 0.0, %v1308
  %v1310 = vpop.f32.mrb[0].mxu0
  %1311 = vmatprep.mubr.bf16.mxu0 0
  %1312 = vmatmul.mubr.bf16.gmra.mrb[0].mxu0 %v1261
  %v1313 = vpop.f32.mrb[0].mxu0
  %v1314 = vadd.f32 0.0, %v1313
  %v1315 = vpop.f32.mrb[0].mxu0
  %v1316 = vpop.f32.mrb[0].mxu0
  %v1317 = vadd.f32 0.0, %v1316
  %v1318 = vpop.f32.mrb[0].mxu0
  %1319 = vdwg.mxu0
  %v1320 = vpack.c.bf16 %v1219, %v1218
  %1321 = vmatprep.subr.bf16.mxu0 0
  %1322 = vmatpush1.bf16.msra.mxu0 %v1320
  %1323 = vmatprep.subr.bf16.mxu0 0
  %1324 = vmatpush1.bf16.msra.mxu0 0
  %1325 = vmatprep.subr.bf16.mxu0 0
  %1326 = vmatpush1.bf16.msra.mxu0 0
  %1327 = vmatprep.subr.bf16.mxu0 0
  %1328 = vmatpush1.bf16.msra.mxu0 0
  %1329 = vmatprep.subr.bf16.mxu0 0
  %1330 = vmatpush1.bf16.msra.mxu0 0
  %1331 = vmatprep.subr.bf16.mxu0 0
  %1332 = vmatpush1.bf16.msra.mxu0 0
  %1333 = vmatprep.subr.bf16.mxu0 0
  %1334 = vmatpush1.bf16.msra.mxu0 0
  %1335 = vmatprep.subr.bf16.mxu0 0
  %1336 = vmatpush1.bf16.msra.mxu0 0
  %1337 = vmatprep.subr.bf16.mxu0 0
  %1338 = vmatpush1.bf16.msra.mxu0 0
  %1339 = vmatprep.subr.bf16.mxu0 0
  %1340 = vmatpush1.bf16.msra.mxu0 0
  %1341 = vmatprep.subr.bf16.mxu0 0
  %1342 = vmatpush1.bf16.msra.mxu0 0
  %1343 = vmatprep.subr.bf16.mxu0 0
  %1344 = vmatpush1.bf16.msra.mxu0 0
  %1345 = vmatprep.subr.bf16.mxu0 0
  %1346 = vmatpush1.bf16.msra.mxu0 0
  %1347 = vmatprep.subr.bf16.mxu0 0
  %1348 = vmatpush1.bf16.msra.mxu0 0
  %1349 = vmatprep.subr.bf16.mxu0 0
  %1350 = vmatpush1.bf16.msra.mxu0 0
  %1351 = vmatprep.subr.bf16.mxu0 0
  %1352 = vmatpush1.bf16.msra.mxu0 0
  %1353 = vmatprep.mubr.bf16.mxu0 0
  %1354 = vmatmul.mubr.bf16.gmra.mrb[0].mxu0 %v1255
  %v1355 = vpop.f32.mrb[0].mxu0
  %v1356 = vadd.f32 0.0, %v1355
  %v1357 = vpop.f32.mrb[0].mxu0
  %v1358 = vpop.f32.mrb[0].mxu0
  %v1359 = vadd.f32 0.0, %v1358
  %v1360 = vpop.f32.mrb[0].mxu0
  %1361 = vmatprep.mubr.bf16.mxu0 0
  %1362 = vmatmul.mubr.bf16.gmra.mrb[0].mxu0 %v1258
  %v1363 = vpop.f32.mrb[0].mxu0
  %v1364 = vadd.f32 0.0, %v1363
  %v1365 = vpop.f32.mrb[0].mxu0
  %v1366 = vpop.f32.mrb[0].mxu0
  %v1367 = vadd.f32 0.0, %v1366
  %v1368 = vpop.f32.mrb[0].mxu0
  %1369 = vmatprep.mubr.bf16.mxu0 0
  %1370 = vmatmul.mubr.bf16.gmra.mrb[0].mxu0 %v1261
  %v1371 = vpop.f32.mrb[0].mxu0
  %v1372 = vadd.f32 0.0, %v1371
  %v1373 = vpop.f32.mrb[0].mxu0
  %v1374 = vpop.f32.mrb[0].mxu0
  %v1375 = vadd.f32 0.0, %v1374
  %v1376 = vpop.f32.mrb[0].mxu0
  %1377 = vdwg.mxu0
  %v1378 = vpack.c.bf16 %v1225, %v1224
  %1379 = vmatprep.subr.bf16.mxu0 0
  %1380 = vmatpush1.bf16.msra.mxu0 %v1378
  %1381 = vmatprep.subr.bf16.mxu0 0
  %1382 = vmatpush1.bf16.msra.mxu0 0
  %1383 = vmatprep.subr.bf16.mxu0 0
  %1384 = vmatpush1.bf16.msra.mxu0 0
  %1385 = vmatprep.subr.bf16.mxu0 0
  %1386 = vmatpush1.bf16.msra.mxu0 0
  %1387 = vmatprep.subr.bf16.mxu0 0
  %1388 = vmatpush1.bf16.msra.mxu0 0
  %1389 = vmatprep.subr.bf16.mxu0 0
  %1390 = vmatpush1.bf16.msra.mxu0 0
  %1391 = vmatprep.subr.bf16.mxu0 0
  %1392 = vmatpush1.bf16.msra.mxu0 0
  %1393 = vmatprep.subr.bf16.mxu0 0
  %1394 = vmatpush1.bf16.msra.mxu0 0
  %1395 = vmatprep.subr.bf16.mxu0 0
  %1396 = vmatpush1.bf16.msra.mxu0 0
  %1397 = vmatprep.subr.bf16.mxu0 0
  %1398 = vmatpush1.bf16.msra.mxu0 0
  %1399 = vmatprep.subr.bf16.mxu0 0
  %1400 = vmatpush1.bf16.msra.mxu0 0
  %1401 = vmatprep.subr.bf16.mxu0 0
  %1402 = vmatpush1.bf16.msra.mxu0 0
  %1403 = vmatprep.subr.bf16.mxu0 0
  %1404 = vmatpush1.bf16.msra.mxu0 0
  %1405 = vmatprep.subr.bf16.mxu0 0
  %1406 = vmatpush1.bf16.msra.mxu0 0
  %1407 = vmatprep.subr.bf16.mxu0 0
  %1408 = vmatpush1.bf16.msra.mxu0 0
  %1409 = vmatprep.subr.bf16.mxu0 0
  %1410 = vmatpush1.bf16.msra.mxu0 0
  %1411 = vmatprep.mubr.bf16.mxu0 0
  %1412 = vmatmul.mubr.bf16.gmra.mrb[0].mxu0 %v1255
  %v1413 = vpop.f32.mrb[0].mxu0
  %v1414 = vadd.f32 0.0, %v1413
  %v1415 = vpop.f32.mrb[0].mxu0
  %v1416 = vpop.f32.mrb[0].mxu0
  %v1417 = vadd.f32 0.0, %v1416
  %v1418 = vpop.f32.mrb[0].mxu0
  %1419 = vmatprep.mubr.bf16.mxu0 0
  %1420 = vmatmul.mubr.bf16.gmra.mrb[0].mxu0 %v1258
  %v1421 = vpop.f32.mrb[0].mxu0
  %v1422 = vadd.f32 0.0, %v1421
  %v1423 = vpop.f32.mrb[0].mxu0
  %v1424 = vpop.f32.mrb[0].mxu0
  %v1425 = vadd.f32 0.0, %v1424
  %v1426 = vpop.f32.mrb[0].mxu0
  %1427 = vmatprep.mubr.bf16.mxu0 0
  %1428 = vmatmul.mubr.bf16.gmra.mrb[0].mxu0 %v1261
  %v1429 = vpop.f32.mrb[0].mxu0
  %v1430 = vadd.f32 0.0, %v1429
  %v1431 = vpop.f32.mrb[0].mxu0
  %v1432 = vpop.f32.mrb[0].mxu0
  %v1433 = vadd.f32 0.0, %v1432
  %v1434 = vpop.f32.mrb[0].mxu0
  %1435 = vdwg.mxu0
  %v1436 = vpack.c.bf16 %v1231, %v1230
  %1437 = vmatprep.subr.bf16.mxu0 0
  %1438 = vmatpush1.bf16.msra.mxu0 %v1436
  %1439 = vmatprep.subr.bf16.mxu0 0
  %1440 = vmatpush1.bf16.msra.mxu0 0
  %1441 = vmatprep.subr.bf16.mxu0 0
  %1442 = vmatpush1.bf16.msra.mxu0 0
  %1443 = vmatprep.subr.bf16.mxu0 0
  %1444 = vmatpush1.bf16.msra.mxu0 0
  %1445 = vmatprep.subr.bf16.mxu0 0
  %1446 = vmatpush1.bf16.msra.mxu0 0
  %1447 = vmatprep.subr.bf16.mxu0 0
  %1448 = vmatpush1.bf16.msra.mxu0 0
  %1449 = vmatprep.subr.bf16.mxu0 0
  %1450 = vmatpush1.bf16.msra.mxu0 0
  %1451 = vmatprep.subr.bf16.mxu0 0
  %1452 = vmatpush1.bf16.msra.mxu0 0
  %1453 = vmatprep.subr.bf16.mxu0 0
  %1454 = vmatpush1.bf16.msra.mxu0 0
  %1455 = vmatprep.subr.bf16.mxu0 0
  %1456 = vmatpush1.bf16.msra.mxu0 0
  %1457 = vmatprep.subr.bf16.mxu0 0
  %1458 = vmatpush1.bf16.msra.mxu0 0
  %1459 = vmatprep.subr.bf16.mxu0 0
  %1460 = vmatpush1.bf16.msra.mxu0 0
  %1461 = vmatprep.subr.bf16.mxu0 0
  %1462 = vmatpush1.bf16.msra.mxu0 0
  %1463 = vmatprep.subr.bf16.mxu0 0
  %1464 = vmatpush1.bf16.msra.mxu0 0
  %1465 = vmatprep.subr.bf16.mxu0 0
  %1466 = vmatpush1.bf16.msra.mxu0 0
  %1467 = vmatprep.subr.bf16.mxu0 0
  %1468 = vmatpush1.bf16.msra.mxu0 0
  %1469 = vmatprep.mubr.bf16.mxu0 0
  %1470 = vmatmul.mubr.bf16.gmra.mrb[0].mxu0 %v1255
  %v1471 = vpop.f32.mrb[0].mxu0
  %v1472 = vadd.f32 0.0, %v1471
  %v1473 = vpop.f32.mrb[0].mxu0
  %v1474 = vpop.f32.mrb[0].mxu0
  %v1475 = vadd.f32 0.0, %v1474
  %v1476 = vpop.f32.mrb[0].mxu0
  %1477 = vmatprep.mubr.bf16.mxu0 0
  %1478 = vmatmul.mubr.bf16.gmra.mrb[0].mxu0 %v1258
  %v1479 = vpop.f32.mrb[0].mxu0
  %v1480 = vadd.f32 0.0, %v1479
  %v1481 = vpop.f32.mrb[0].mxu0
  %v1482 = vpop.f32.mrb[0].mxu0
  %v1483 = vadd.f32 0.0, %v1482
  %v1484 = vpop.f32.mrb[0].mxu0
  %1485 = vmatprep.mubr.bf16.mxu0 0
  %1486 = vmatmul.mubr.bf16.gmra.mrb[0].mxu0 %v1261
  %v1487 = vpop.f32.mrb[0].mxu0
  %v1488 = vadd.f32 0.0, %v1487
  %v1489 = vpop.f32.mrb[0].mxu0
  %v1490 = vpop.f32.mrb[0].mxu0
  %v1491 = vadd.f32 0.0, %v1490
  %v1492 = vpop.f32.mrb[0].mxu0
  %1493 = vdwg.mxu0
  %1496 = vrot.lane.b32.xlu0 %v1472, 1
  %v1497 = vpop.permute.xlu0 %1496
  %1498 = vrot.lane.b32.xlu0 %v1475, 1
  %v1499 = vpop.permute.xlu0 %1498
  %v1502 = vsel %vm256, 0.0, %v1497
  %v1503 = vsel %vm256, 0.0, %v1499
  %v1504 = vsel %vm262, %v1502, 0.0
  %v1505 = vsel %vm262, %v1503, 0.0
  %v1506 = vadd.f32 %v1504, %v1306
  %v1507 = vadd.f32 %v1505, %v1309
  %v1508 = vadd.f32 %v1506, %v1372
  %v1509 = vadd.f32 %v1507, %v1375
  %v1510 = vadd.f32 %v1298, %v1364
  %v1511 = vadd.f32 %v1301, %v1367
  %v1512 = vadd.f32 %v1510, %v1430
  %v1513 = vadd.f32 %v1511, %v1433
  %v1514 = vadd.f32 %v1356, %v1422
  %v1515 = vadd.f32 %v1359, %v1425
  %v1516 = vadd.f32 %v1514, %v1488
  %v1517 = vadd.f32 %v1515, %v1491
  %1520 = vrot.lane.b32.xlu0 %v1314, 127
  %v1521 = vpop.permute.xlu0 %1520
  %1522 = vrot.lane.b32.xlu0 %v1317, 127
  %v1523 = vpop.permute.xlu0 %1522
  %v1526 = vsel %vm283, %v1521, 0.0
  %v1527 = vsel %vm283, %v1523, 0.0
  %v1528 = vsel %vm289, %v1526, 0.0
  %v1529 = vsel %vm289, %v1527, 0.0
  %v1530 = vadd.f32 %v1414, %v1480
  %v1531 = vadd.f32 %v1417, %v1483
  %v1532 = vadd.f32 %v1530, %v1528
  %v1533 = vadd.f32 %v1531, %v1529
  %v1534 = vmul.f32 %v1508, %v1508
  %v1535 = vmul.f32 %v1509, %v1509
  %v1536 = vadd.f32 %v1508, %v1512
  %v1537 = vadd.f32 %v1509, %v1513
  %v1538 = vmul.f32 %v1512, %v1512
  %v1539 = vmul.f32 %v1513, %v1513
  %v1540 = vadd.f32 %v1534, %v1538
  %v1541 = vadd.f32 %v1535, %v1539
  %v1542 = vadd.f32 %v1536, %v1516
  %v1543 = vadd.f32 %v1537, %v1517
  %v1544 = vmul.f32 %v1516, %v1516
  %v1545 = vmul.f32 %v1517, %v1517
  %v1546 = vadd.f32 %v1540, %v1544
  %v1547 = vadd.f32 %v1541, %v1545
  %v1548 = vadd.f32 %v1542, %v1532
  %v1549 = vadd.f32 %v1543, %v1533
  %v1550 = vmul.f32 %v1532, %v1532
  %v1551 = vmul.f32 %v1533, %v1533
  %v1552 = vadd.f32 %v1546, %v1550
  %v1553 = vadd.f32 %v1547, %v1551
  %v1554 = vsel %vm318, %v1548, 0.0
  %1555 = vadd.xlane.f32.xlu0 %v1554
  %v1556 = vpop.xlane.xlu0 %1555
  %v1557 = vsel %vm318, %v1549, 0.0
  %1558 = vadd.xlane.f32.xlu0 %v1557
  %v1559 = vpop.xlane.xlu0 %1558
  %v1560 = vmul.f32 %v1556, 0.015625
  %v1561 = vmul.f32 %v1559, 0.015625
  %v1562 = vsel %vm318, %v1552, 0.0
  %1563 = vadd.xlane.f32.xlu0 %v1562
  %v1564 = vpop.xlane.xlu0 %1563
  %v1565 = vsel %vm318, %v1553, 0.0
  %1566 = vadd.xlane.f32.xlu0 %v1565
  %v1567 = vpop.xlane.xlu0 %1566
  %v1568 = vmul.f32 %v1564, 0.015625
  %v1569 = vmul.f32 %v1567, 0.015625
  %v1570 = vmul.f32 %v1560, %v1560
  %v1571 = vmul.f32 %v1561, %v1561
  %v1572 = vsub.f32 %v1568, %v1570
  %v1573 = vsub.f32 %v1569, %v1571
  %v1574 = vmax.f32 %v1572, 0.0
  %v1575 = vmax.f32 %v1573, 0.0
  %v1576 = vadd.f32 %v1574, 1e-05
  %v1577 = vadd.f32 %v1575, 1e-05
  %v1578 = vrsqrt.pop %v1576
  %v1579 = vrsqrt.pop %v1577
  %v1580 = vmul.f32 %v1578, %v36
  %v1581 = vmul.f32 %v1579, %v37
  %v1582 = vmul.f32 %v1560, %v1580
  %v1583 = vmul.f32 %v1561, %v1581
  %1586 = vrot.lane.b32.xlu0 %v1582, 1
  %v1587 = vpop.permute.xlu0 %1586
  %1588 = vrot.lane.b32.xlu0 %v1583, 1
  %v1589 = vpop.permute.xlu0 %1588
  %v1592 = vsub.f32 %v36, %v1587
  %v1593 = vsub.f32 %v37, %v1589
  %1595 = vset.pattern.permute.xlu0 6
  %1596 = vperm.xlu0 %1595, %v1580
  %v1597 = vpop.permute.xlu0 %1596
  %1600 = vset.pattern.permute.xlu0 6
  %1601 = vperm.xlu0 %1600, %v1581
  %v1602 = vpop.permute.xlu0 %1601
  %v1604 = vmul.f32 %v1508, %v1597
  %v1605 = vmul.f32 %v1509, %v1602
  %1607 = vset.pattern.permute.xlu0 7
  %1608 = vperm.xlu0 %1607, %v1592
  %v1609 = vpop.permute.xlu0 %1608
  %1612 = vset.pattern.permute.xlu0 7
  %1613 = vperm.xlu0 %1612, %v1593
  %v1614 = vpop.permute.xlu0 %1613
  %v1616 = vadd.f32 %v1604, %v1609
  %v1617 = vadd.f32 %v1605, %v1614
  %v1618 = vmax.f32 %v1616, 0.0
  %v1619 = vmax.f32 %v1617, 0.0
  %v1620 = vadd.f32 %v1212, %v1618
  %v1621 = vadd.f32 %v1213, %v1619
  %v1622 = vmul.f32 %v1512, %v1597
  %v1623 = vmul.f32 %v1513, %v1602
  %v1624 = vadd.f32 %v1622, %v1609
  %v1625 = vadd.f32 %v1623, %v1614
  %v1626 = vmax.f32 %v1624, 0.0
  %v1627 = vmax.f32 %v1625, 0.0
  %v1628 = vadd.f32 %v1218, %v1626
  %v1629 = vadd.f32 %v1219, %v1627
  %v1630 = vmul.f32 %v1516, %v1597
  %v1631 = vmul.f32 %v1517, %v1602
  %v1632 = vadd.f32 %v1630, %v1609
  %v1633 = vadd.f32 %v1631, %v1614
  %v1634 = vmax.f32 %v1632, 0.0
  %v1635 = vmax.f32 %v1633, 0.0
  %v1636 = vadd.f32 %v1224, %v1634
  %v1637 = vadd.f32 %v1225, %v1635
  %v1638 = vmul.f32 %v1532, %v1597
  %v1639 = vmul.f32 %v1533, %v1602
  %v1640 = vadd.f32 %v1638, %v1609
  %v1641 = vadd.f32 %v1639, %v1614
  %v1642 = vmax.f32 %v1640, 0.0
  %v1643 = vmax.f32 %v1641, 0.0
  %v1644 = vadd.f32 %v1230, %v1642
  %v1645 = vadd.f32 %v1231, %v1643
  %v1646 = vld [vmem:[%s6] sm:$0xf]
  %v1647 = vld [vmem:[%s6 + $0x4] sm:$0xf]
  %v1648 = vld [vmem:[%s6 + $0x8] sm:$0xf]
  %v1649 = vld [vmem:[%s6 + $0xc] sm:$0xf]
  %v1650 = vpack.c.bf16 %v1621, %v1620
  %v1655 = vunpack.c.l.b16 %v1646
  %v1656 = vunpack.c.l.b16 %v1647
  %v1657 = vunpack.c.l.b16 %v1648
  %v1658 = vunpack.c.l.b16 %v1649
  %v1659 = vpack.c.b16 %v1656, %v1655
  %v1660 = vpack.c.b16 %v1658, %v1657
  %v1662 = vsel %vm318, %v1659, 0
  %v1665 = vsel %vm318, %v1660, 0
  %1667 = vmatprep.subr.bf16.mxu0 0
  %1668 = vmatpush1.bf16.msra.mxu0 %v1650
  %1669 = vmatprep.subr.bf16.mxu0 0
  %1670 = vmatpush1.bf16.msra.mxu0 0
  %1671 = vmatprep.subr.bf16.mxu0 0
  %1672 = vmatpush1.bf16.msra.mxu0 0
  %1673 = vmatprep.subr.bf16.mxu0 0
  %1674 = vmatpush1.bf16.msra.mxu0 0
  %1675 = vmatprep.subr.bf16.mxu0 0
  %1676 = vmatpush1.bf16.msra.mxu0 0
  %1677 = vmatprep.subr.bf16.mxu0 0
  %1678 = vmatpush1.bf16.msra.mxu0 0
  %1679 = vmatprep.subr.bf16.mxu0 0
  %1680 = vmatpush1.bf16.msra.mxu0 0
  %1681 = vmatprep.subr.bf16.mxu0 0
  %1682 = vmatpush1.bf16.msra.mxu0 0
  %1683 = vmatprep.subr.bf16.mxu0 0
  %1684 = vmatpush1.bf16.msra.mxu0 0
  %1685 = vmatprep.subr.bf16.mxu0 0
  %1686 = vmatpush1.bf16.msra.mxu0 0
  %1687 = vmatprep.subr.bf16.mxu0 0
  %1688 = vmatpush1.bf16.msra.mxu0 0
  %1689 = vmatprep.subr.bf16.mxu0 0
  %1690 = vmatpush1.bf16.msra.mxu0 0
  %1691 = vmatprep.subr.bf16.mxu0 0
  %1692 = vmatpush1.bf16.msra.mxu0 0
  %1693 = vmatprep.subr.bf16.mxu0 0
  %1694 = vmatpush1.bf16.msra.mxu0 0
  %1695 = vmatprep.subr.bf16.mxu0 0
  %1696 = vmatpush1.bf16.msra.mxu0 0
  %1697 = vmatprep.subr.bf16.mxu0 0
  %1698 = vmatpush1.bf16.msra.mxu0 0
  %1699 = vmatprep.mubr.bf16.mxu0 0
  %1700 = vmatmul.mubr.bf16.gmra.mrb[0].mxu0 %v1662
  %v1701 = vpop.f32.mrb[0].mxu0
  %v1702 = vadd.f32 0.0, %v1701
  %v1703 = vpop.f32.mrb[0].mxu0
  %v1704 = vpop.f32.mrb[0].mxu0
  %v1705 = vadd.f32 0.0, %v1704
  %v1706 = vpop.f32.mrb[0].mxu0
  %1707 = vmatprep.mubr.bf16.mxu0 0
  %1708 = vmatmul.mubr.bf16.gmra.mrb[0].mxu0 %v1665
  %v1709 = vpop.f32.mrb[0].mxu0
  %v1710 = vadd.f32 0.0, %v1709
  %v1711 = vpop.f32.mrb[0].mxu0
  %v1712 = vpop.f32.mrb[0].mxu0
  %v1713 = vadd.f32 0.0, %v1712
  %v1714 = vpop.f32.mrb[0].mxu0
  %1715 = vdwg.mxu0
  %v1716 = vpack.c.bf16 %v1629, %v1628
  %1717 = vmatprep.subr.bf16.mxu0 0
  %1718 = vmatpush1.bf16.msra.mxu0 %v1716
  %1719 = vmatprep.subr.bf16.mxu0 0
  %1720 = vmatpush1.bf16.msra.mxu0 0
  %1721 = vmatprep.subr.bf16.mxu0 0
  %1722 = vmatpush1.bf16.msra.mxu0 0
  %1723 = vmatprep.subr.bf16.mxu0 0
  %1724 = vmatpush1.bf16.msra.mxu0 0
  %1725 = vmatprep.subr.bf16.mxu0 0
  %1726 = vmatpush1.bf16.msra.mxu0 0
  %1727 = vmatprep.subr.bf16.mxu0 0
  %1728 = vmatpush1.bf16.msra.mxu0 0
  %1729 = vmatprep.subr.bf16.mxu0 0
  %1730 = vmatpush1.bf16.msra.mxu0 0
  %1731 = vmatprep.subr.bf16.mxu0 0
  %1732 = vmatpush1.bf16.msra.mxu0 0
  %1733 = vmatprep.subr.bf16.mxu0 0
  %1734 = vmatpush1.bf16.msra.mxu0 0
  %1735 = vmatprep.subr.bf16.mxu0 0
  %1736 = vmatpush1.bf16.msra.mxu0 0
  %1737 = vmatprep.subr.bf16.mxu0 0
  %1738 = vmatpush1.bf16.msra.mxu0 0
  %1739 = vmatprep.subr.bf16.mxu0 0
  %1740 = vmatpush1.bf16.msra.mxu0 0
  %1741 = vmatprep.subr.bf16.mxu0 0
  %1742 = vmatpush1.bf16.msra.mxu0 0
  %1743 = vmatprep.subr.bf16.mxu0 0
  %1744 = vmatpush1.bf16.msra.mxu0 0
  %1745 = vmatprep.subr.bf16.mxu0 0
  %1746 = vmatpush1.bf16.msra.mxu0 0
  %1747 = vmatprep.subr.bf16.mxu0 0
  %1748 = vmatpush1.bf16.msra.mxu0 0
  %1749 = vmatprep.mubr.bf16.mxu0 0
  %1750 = vmatmul.mubr.bf16.gmra.mrb[0].mxu0 %v1662
  %v1751 = vpop.f32.mrb[0].mxu0
  %v1752 = vadd.f32 0.0, %v1751
  %v1753 = vpop.f32.mrb[0].mxu0
  %v1754 = vpop.f32.mrb[0].mxu0
  %v1755 = vadd.f32 0.0, %v1754
  %v1756 = vpop.f32.mrb[0].mxu0
  %1757 = vmatprep.mubr.bf16.mxu0 0
  %1758 = vmatmul.mubr.bf16.gmra.mrb[0].mxu0 %v1665
  %v1759 = vpop.f32.mrb[0].mxu0
  %v1760 = vadd.f32 0.0, %v1759
  %v1761 = vpop.f32.mrb[0].mxu0
  %v1762 = vpop.f32.mrb[0].mxu0
  %v1763 = vadd.f32 0.0, %v1762
  %v1764 = vpop.f32.mrb[0].mxu0
  %1765 = vdwg.mxu0
  %v1766 = vpack.c.bf16 %v1637, %v1636
  %1767 = vmatprep.subr.bf16.mxu0 0
  %1768 = vmatpush1.bf16.msra.mxu0 %v1766
  %1769 = vmatprep.subr.bf16.mxu0 0
  %1770 = vmatpush1.bf16.msra.mxu0 0
  %1771 = vmatprep.subr.bf16.mxu0 0
  %1772 = vmatpush1.bf16.msra.mxu0 0
  %1773 = vmatprep.subr.bf16.mxu0 0
  %1774 = vmatpush1.bf16.msra.mxu0 0
  %1775 = vmatprep.subr.bf16.mxu0 0
  %1776 = vmatpush1.bf16.msra.mxu0 0
  %1777 = vmatprep.subr.bf16.mxu0 0
  %1778 = vmatpush1.bf16.msra.mxu0 0
  %1779 = vmatprep.subr.bf16.mxu0 0
  %1780 = vmatpush1.bf16.msra.mxu0 0
  %1781 = vmatprep.subr.bf16.mxu0 0
  %1782 = vmatpush1.bf16.msra.mxu0 0
  %1783 = vmatprep.subr.bf16.mxu0 0
  %1784 = vmatpush1.bf16.msra.mxu0 0
  %1785 = vmatprep.subr.bf16.mxu0 0
  %1786 = vmatpush1.bf16.msra.mxu0 0
  %1787 = vmatprep.subr.bf16.mxu0 0
  %1788 = vmatpush1.bf16.msra.mxu0 0
  %1789 = vmatprep.subr.bf16.mxu0 0
  %1790 = vmatpush1.bf16.msra.mxu0 0
  %1791 = vmatprep.subr.bf16.mxu0 0
  %1792 = vmatpush1.bf16.msra.mxu0 0
  %1793 = vmatprep.subr.bf16.mxu0 0
  %1794 = vmatpush1.bf16.msra.mxu0 0
  %1795 = vmatprep.subr.bf16.mxu0 0
  %1796 = vmatpush1.bf16.msra.mxu0 0
  %1797 = vmatprep.subr.bf16.mxu0 0
  %1798 = vmatpush1.bf16.msra.mxu0 0
  %1799 = vmatprep.mubr.bf16.mxu0 0
  %1800 = vmatmul.mubr.bf16.gmra.mrb[0].mxu0 %v1662
  %v1801 = vpop.f32.mrb[0].mxu0
  %v1802 = vadd.f32 0.0, %v1801
  %v1803 = vpop.f32.mrb[0].mxu0
  %v1804 = vpop.f32.mrb[0].mxu0
  %v1805 = vadd.f32 0.0, %v1804
  %v1806 = vpop.f32.mrb[0].mxu0
  %1807 = vmatprep.mubr.bf16.mxu0 0
  %1808 = vmatmul.mubr.bf16.gmra.mrb[0].mxu0 %v1665
  %v1809 = vpop.f32.mrb[0].mxu0
  %v1810 = vadd.f32 0.0, %v1809
  %v1811 = vpop.f32.mrb[0].mxu0
  %v1812 = vpop.f32.mrb[0].mxu0
  %v1813 = vadd.f32 0.0, %v1812
  %v1814 = vpop.f32.mrb[0].mxu0
  %1815 = vdwg.mxu0
  %v1816 = vpack.c.bf16 %v1645, %v1644
  %1817 = vmatprep.subr.bf16.mxu0 0
  %1818 = vmatpush1.bf16.msra.mxu0 %v1816
  %1819 = vmatprep.subr.bf16.mxu0 0
  %1820 = vmatpush1.bf16.msra.mxu0 0
  %1821 = vmatprep.subr.bf16.mxu0 0
  %1822 = vmatpush1.bf16.msra.mxu0 0
  %1823 = vmatprep.subr.bf16.mxu0 0
  %1824 = vmatpush1.bf16.msra.mxu0 0
  %1825 = vmatprep.subr.bf16.mxu0 0
  %1826 = vmatpush1.bf16.msra.mxu0 0
  %1827 = vmatprep.subr.bf16.mxu0 0
  %1828 = vmatpush1.bf16.msra.mxu0 0
  %1829 = vmatprep.subr.bf16.mxu0 0
  %1830 = vmatpush1.bf16.msra.mxu0 0
  %1831 = vmatprep.subr.bf16.mxu0 0
  %1832 = vmatpush1.bf16.msra.mxu0 0
  %1833 = vmatprep.subr.bf16.mxu0 0
  %1834 = vmatpush1.bf16.msra.mxu0 0
  %1835 = vmatprep.subr.bf16.mxu0 0
  %1836 = vmatpush1.bf16.msra.mxu0 0
  %1837 = vmatprep.subr.bf16.mxu0 0
  %1838 = vmatpush1.bf16.msra.mxu0 0
  %1839 = vmatprep.subr.bf16.mxu0 0
  %1840 = vmatpush1.bf16.msra.mxu0 0
  %1841 = vmatprep.subr.bf16.mxu0 0
  %1842 = vmatpush1.bf16.msra.mxu0 0
  %1843 = vmatprep.subr.bf16.mxu0 0
  %1844 = vmatpush1.bf16.msra.mxu0 0
  %1845 = vmatprep.subr.bf16.mxu0 0
  %1846 = vmatpush1.bf16.msra.mxu0 0
  %1847 = vmatprep.subr.bf16.mxu0 0
  %1848 = vmatpush1.bf16.msra.mxu0 0
  %1849 = vmatprep.mubr.bf16.mxu0 0
  %1850 = vmatmul.mubr.bf16.gmra.mrb[0].mxu0 %v1662
  %v1851 = vpop.f32.mrb[0].mxu0
  %v1852 = vadd.f32 0.0, %v1851
  %v1853 = vpop.f32.mrb[0].mxu0
  %v1854 = vpop.f32.mrb[0].mxu0
  %v1855 = vadd.f32 0.0, %v1854
  %v1856 = vpop.f32.mrb[0].mxu0
  %1857 = vmatprep.mubr.bf16.mxu0 0
  %1858 = vmatmul.mubr.bf16.gmra.mrb[0].mxu0 %v1665
  %v1859 = vpop.f32.mrb[0].mxu0
  %v1860 = vadd.f32 0.0, %v1859
  %v1861 = vpop.f32.mrb[0].mxu0
  %v1862 = vpop.f32.mrb[0].mxu0
  %v1863 = vadd.f32 0.0, %v1862
  %v1864 = vpop.f32.mrb[0].mxu0
  %1865 = vdwg.mxu0
  %1867 = vrot.lane.b32.xlu0 %v1863, 1
  %v1868 = vpop.permute.xlu0 %1867
  %v1870 = vsel %vm256, 0.0, %v1868
  %v1871 = vsel %vm262, %v1870, 0.0
  %v1872 = vadd.f32 %v1705, %v1871
  %v1873 = vadd.f32 %v1710, %v1752
  %v1874 = vadd.f32 %v1755, %v1713
  %v1875 = vadd.f32 %v1760, %v1802
  %v1876 = vadd.f32 %v1805, %v1763
  %v1877 = vadd.f32 %v1810, %v1852
  %1879 = vrot.lane.b32.xlu0 %v1702, 127
  %v1880 = vpop.permute.xlu0 %1879
  %v1882 = vsel %vm283, %v1880, 0.0
  %v1883 = vsel %vm289, %v1882, 0.0
  %v1884 = vadd.f32 %v1855, %v1813
  %v1885 = vadd.f32 %v1860, %v1883
  %v1886 = vmul.f32 %v1872, %v1872
  %v1887 = vadd.f32 %v1872, %v1873
  %v1888 = vmul.f32 %v1873, %v1873
  %v1889 = vadd.f32 %v1886, %v1888
  %v1890 = vadd.f32 %v1887, %v1874
  %v1891 = vmul.f32 %v1874, %v1874
  %v1892 = vadd.f32 %v1889, %v1891
  %v1893 = vadd.f32 %v1890, %v1875
  %v1894 = vmul.f32 %v1875, %v1875
  %v1895 = vadd.f32 %v1892, %v1894
  %v1896 = vadd.f32 %v1893, %v1876
  %v1897 = vmul.f32 %v1876, %v1876
  %v1898 = vadd.f32 %v1895, %v1897
  %v1899 = vadd.f32 %v1896, %v1877
  %v1900 = vmul.f32 %v1877, %v1877
  %v1901 = vadd.f32 %v1898, %v1900
  %v1902 = vadd.f32 %v1899, %v1884
  %v1903 = vmul.f32 %v1884, %v1884
  %v1904 = vadd.f32 %v1901, %v1903
  %v1905 = vadd.f32 %v1902, %v1885
  %v1906 = vmul.f32 %v1885, %v1885
  %v1907 = vadd.f32 %v1904, %v1906
  %v1908 = vsel %vm318, %v1905, 0.0
  %1909 = vadd.xlane.f32.xlu0 %v1908
  %v1910 = vpop.xlane.xlu0 %1909
  %v1911 = vmul.f32 %v1910, 0.0078125
  %v1912 = vsel %vm318, %v1907, 0.0
  %1913 = vadd.xlane.f32.xlu0 %v1912
  %v1914 = vpop.xlane.xlu0 %1913
  %v1915 = vmul.f32 %v1914, 0.0078125
  %v1916 = vmul.f32 %v1911, %v1911
  %v1917 = vsub.f32 %v1915, %v1916
  %v1918 = vmax.f32 %v1917, 0.0
  %v1919 = vadd.f32 %v1918, 1e-05
  %v1920 = vrsqrt.pop %v1919
  %v1921 = vmul.f32 %v1920, %v36
  %v1922 = vmul.f32 %v1911, %v1921
  %1924 = vrot.lane.b32.xlu0 %v1922, 1
  %v1925 = vpop.permute.xlu0 %1924
  %v1927 = vsub.f32 %v36, %v1925
  %1929 = vset.pattern.permute.xlu0 8
  %1930 = vperm.xlu0 %1929, %v1921
  %v1931 = vpop.permute.xlu0 %1930
  %v1933 = vmul.f32 %v1872, %v1931
  %1935 = vset.pattern.permute.xlu0 9
  %1936 = vperm.xlu0 %1935, %v1927
  %v1937 = vpop.permute.xlu0 %1936
  %v1939 = vadd.f32 %v1933, %v1937
  %v1940 = vmax.f32 %v1939, 0.0
  %v1941 = vmul.f32 %v1873, %v1931
  %v1942 = vadd.f32 %v1941, %v1937
  %v1943 = vmax.f32 %v1942, 0.0
  %v1944 = vmul.f32 %v1874, %v1931
  %v1945 = vadd.f32 %v1944, %v1937
  %v1946 = vmax.f32 %v1945, 0.0
  %v1947 = vmul.f32 %v1875, %v1931
  %v1948 = vadd.f32 %v1947, %v1937
  %v1949 = vmax.f32 %v1948, 0.0
  %v1950 = vmul.f32 %v1876, %v1931
  %v1951 = vadd.f32 %v1950, %v1937
  %v1952 = vmax.f32 %v1951, 0.0
  %v1953 = vmul.f32 %v1877, %v1931
  %v1954 = vadd.f32 %v1953, %v1937
  %v1955 = vmax.f32 %v1954, 0.0
  %v1956 = vmul.f32 %v1884, %v1931
  %v1957 = vadd.f32 %v1956, %v1937
  %v1958 = vmax.f32 %v1957, 0.0
  %v1959 = vmul.f32 %v1885, %v1931
  %v1960 = vadd.f32 %v1959, %v1937
  %v1961 = vmax.f32 %v1960, 0.0
  %v1962 = vld [vmem:[%s7] sm:$0xf]
  %v1963 = vld [vmem:[%s7 + $0x4] sm:$0xf]
  %v1964 = vld [vmem:[%s7 + $0x8] sm:$0xf]
  %v1965 = vpack.c.bf16 %v1940, %v1940
  %v1969 = vunpack.c.l.b16 %v1962
  %v1970 = vunpack.c.l.b16 %v1963
  %v1971 = vunpack.c.l.b16 %v1964
  %v1972 = vpack.c.b16 %v1970, %v1969
  %v1973 = vpack.c.b16 %v1971, %v1971
  %vm1974 = vcmask 64512
  %v1976 = vsel %vm1974, %v1972, 0
  %v1979 = vsel %vm1974, %v1973, 0
  %vm1981 = vcmask 1043456
  %v1983 = vsel %vm1981, %v1965, 0
  %1985 = vmatprep.subr.bf16.mxu0 0
  %1986 = vmatpush1.bf16.msra.mxu0 %v1983
  %1987 = vmatprep.subr.bf16.mxu0 0
  %1988 = vmatpush1.bf16.msra.mxu0 0
  %1989 = vmatprep.subr.bf16.mxu0 0
  %1990 = vmatpush1.bf16.msra.mxu0 0
  %1991 = vmatprep.subr.bf16.mxu0 0
  %1992 = vmatpush1.bf16.msra.mxu0 0
  %1993 = vmatprep.subr.bf16.mxu0 0
  %1994 = vmatpush1.bf16.msra.mxu0 0
  %1995 = vmatprep.subr.bf16.mxu0 0
  %1996 = vmatpush1.bf16.msra.mxu0 0
  %1997 = vmatprep.subr.bf16.mxu0 0
  %1998 = vmatpush1.bf16.msra.mxu0 0
  %1999 = vmatprep.subr.bf16.mxu0 0
  %2000 = vmatpush1.bf16.msra.mxu0 0
  %2001 = vmatprep.subr.bf16.mxu0 0
  %2002 = vmatpush1.bf16.msra.mxu0 0
  %2003 = vmatprep.subr.bf16.mxu0 0
  %2004 = vmatpush1.bf16.msra.mxu0 0
  %2005 = vmatprep.subr.bf16.mxu0 0
  %2006 = vmatpush1.bf16.msra.mxu0 0
  %2007 = vmatprep.subr.bf16.mxu0 0
  %2008 = vmatpush1.bf16.msra.mxu0 0
  %2009 = vmatprep.subr.bf16.mxu0 0
  %2010 = vmatpush1.bf16.msra.mxu0 0
  %2011 = vmatprep.subr.bf16.mxu0 0
  %2012 = vmatpush1.bf16.msra.mxu0 0
  %2013 = vmatprep.subr.bf16.mxu0 0
  %2014 = vmatpush1.bf16.msra.mxu0 0
  %2015 = vmatprep.subr.bf16.mxu0 0
  %2016 = vmatpush1.bf16.msra.mxu0 0
  %2017 = vmatprep.mubr.bf16.mxu0 0
  %2018 = vmatmul.mubr.bf16.gmra.mrb[0].mxu0 %v1976
  %v2019 = vpop.f32.mrb[0].mxu0
  %v2020 = vadd.f32 0.0, %v2019
  %v2021 = vpop.f32.mrb[0].mxu0
  %v2022 = vpop.f32.mrb[0].mxu0
  %v2023 = vadd.f32 0.0, %v2022
  %v2024 = vpop.f32.mrb[0].mxu0
  %2025 = vmatprep.mubr.bf16.mxu0 0
  %2026 = vmatmul.mubr.bf16.gmra.mrb[0].mxu0 %v1979
  %v2027 = vpop.f32.mrb[0].mxu0
  %v2028 = vadd.f32 0.0, %v2027
  %v2029 = vpop.f32.mrb[0].mxu0
  %v2030 = vpop.f32.mrb[0].mxu0
  %v2031 = vpop.f32.mrb[0].mxu0
  %2032 = vdwg.mxu0
  %v2033 = vpack.c.bf16 %v1943, %v1943
  %v2035 = vsel %vm1981, %v2033, 0
  %2037 = vmatprep.subr.bf16.mxu0 0
  %2038 = vmatpush1.bf16.msra.mxu0 %v2035
  %2039 = vmatprep.subr.bf16.mxu0 0
  %2040 = vmatpush1.bf16.msra.mxu0 0
  %2041 = vmatprep.subr.bf16.mxu0 0
  %2042 = vmatpush1.bf16.msra.mxu0 0
  %2043 = vmatprep.subr.bf16.mxu0 0
  %2044 = vmatpush1.bf16.msra.mxu0 0
  %2045 = vmatprep.subr.bf16.mxu0 0
  %2046 = vmatpush1.bf16.msra.mxu0 0
  %2047 = vmatprep.subr.bf16.mxu0 0
  %2048 = vmatpush1.bf16.msra.mxu0 0
  %2049 = vmatprep.subr.bf16.mxu0 0
  %2050 = vmatpush1.bf16.msra.mxu0 0
  %2051 = vmatprep.subr.bf16.mxu0 0
  %2052 = vmatpush1.bf16.msra.mxu0 0
  %2053 = vmatprep.subr.bf16.mxu0 0
  %2054 = vmatpush1.bf16.msra.mxu0 0
  %2055 = vmatprep.subr.bf16.mxu0 0
  %2056 = vmatpush1.bf16.msra.mxu0 0
  %2057 = vmatprep.subr.bf16.mxu0 0
  %2058 = vmatpush1.bf16.msra.mxu0 0
  %2059 = vmatprep.subr.bf16.mxu0 0
  %2060 = vmatpush1.bf16.msra.mxu0 0
  %2061 = vmatprep.subr.bf16.mxu0 0
  %2062 = vmatpush1.bf16.msra.mxu0 0
  %2063 = vmatprep.subr.bf16.mxu0 0
  %2064 = vmatpush1.bf16.msra.mxu0 0
  %2065 = vmatprep.subr.bf16.mxu0 0
  %2066 = vmatpush1.bf16.msra.mxu0 0
  %2067 = vmatprep.subr.bf16.mxu0 0
  %2068 = vmatpush1.bf16.msra.mxu0 0
  %2069 = vmatprep.mubr.bf16.mxu0 0
  %2070 = vmatmul.mubr.bf16.gmra.mrb[0].mxu0 %v1976
  %v2071 = vpop.f32.mrb[0].mxu0
  %v2072 = vadd.f32 0.0, %v2071
  %v2073 = vpop.f32.mrb[0].mxu0
  %v2074 = vpop.f32.mrb[0].mxu0
  %v2075 = vadd.f32 0.0, %v2074
  %v2076 = vpop.f32.mrb[0].mxu0
  %2077 = vmatprep.mubr.bf16.mxu0 0
  %2078 = vmatmul.mubr.bf16.gmra.mrb[0].mxu0 %v1979
  %v2079 = vpop.f32.mrb[0].mxu0
  %v2080 = vadd.f32 0.0, %v2079
  %v2081 = vpop.f32.mrb[0].mxu0
  %v2082 = vpop.f32.mrb[0].mxu0
  %v2083 = vpop.f32.mrb[0].mxu0
  %2084 = vdwg.mxu0
  %v2085 = vpack.c.bf16 %v1946, %v1946
  %v2087 = vsel %vm1981, %v2085, 0
  %2089 = vmatprep.subr.bf16.mxu0 0
  %2090 = vmatpush1.bf16.msra.mxu0 %v2087
  %2091 = vmatprep.subr.bf16.mxu0 0
  %2092 = vmatpush1.bf16.msra.mxu0 0
  %2093 = vmatprep.subr.bf16.mxu0 0
  %2094 = vmatpush1.bf16.msra.mxu0 0
  %2095 = vmatprep.subr.bf16.mxu0 0
  %2096 = vmatpush1.bf16.msra.mxu0 0
  %2097 = vmatprep.subr.bf16.mxu0 0
  %2098 = vmatpush1.bf16.msra.mxu0 0
  %2099 = vmatprep.subr.bf16.mxu0 0
  %2100 = vmatpush1.bf16.msra.mxu0 0
  %2101 = vmatprep.subr.bf16.mxu0 0
  %2102 = vmatpush1.bf16.msra.mxu0 0
  %2103 = vmatprep.subr.bf16.mxu0 0
  %2104 = vmatpush1.bf16.msra.mxu0 0
  %2105 = vmatprep.subr.bf16.mxu0 0
  %2106 = vmatpush1.bf16.msra.mxu0 0
  %2107 = vmatprep.subr.bf16.mxu0 0
  %2108 = vmatpush1.bf16.msra.mxu0 0
  %2109 = vmatprep.subr.bf16.mxu0 0
  %2110 = vmatpush1.bf16.msra.mxu0 0
  %2111 = vmatprep.subr.bf16.mxu0 0
  %2112 = vmatpush1.bf16.msra.mxu0 0
  %2113 = vmatprep.subr.bf16.mxu0 0
  %2114 = vmatpush1.bf16.msra.mxu0 0
  %2115 = vmatprep.subr.bf16.mxu0 0
  %2116 = vmatpush1.bf16.msra.mxu0 0
  %2117 = vmatprep.subr.bf16.mxu0 0
  %2118 = vmatpush1.bf16.msra.mxu0 0
  %2119 = vmatprep.subr.bf16.mxu0 0
  %2120 = vmatpush1.bf16.msra.mxu0 0
  %2121 = vmatprep.mubr.bf16.mxu0 0
  %2122 = vmatmul.mubr.bf16.gmra.mrb[0].mxu0 %v1976
  %v2123 = vpop.f32.mrb[0].mxu0
  %v2124 = vadd.f32 0.0, %v2123
  %v2125 = vpop.f32.mrb[0].mxu0
  %v2126 = vpop.f32.mrb[0].mxu0
  %v2127 = vadd.f32 0.0, %v2126
  %v2128 = vpop.f32.mrb[0].mxu0
  %2129 = vmatprep.mubr.bf16.mxu0 0
  %2130 = vmatmul.mubr.bf16.gmra.mrb[0].mxu0 %v1979
  %v2131 = vpop.f32.mrb[0].mxu0
  %v2132 = vadd.f32 0.0, %v2131
  %v2133 = vpop.f32.mrb[0].mxu0
  %v2134 = vpop.f32.mrb[0].mxu0
  %v2135 = vpop.f32.mrb[0].mxu0
  %2136 = vdwg.mxu0
  %v2137 = vpack.c.bf16 %v1949, %v1949
  %v2139 = vsel %vm1981, %v2137, 0
  %2141 = vmatprep.subr.bf16.mxu0 0
  %2142 = vmatpush1.bf16.msra.mxu0 %v2139
  %2143 = vmatprep.subr.bf16.mxu0 0
  %2144 = vmatpush1.bf16.msra.mxu0 0
  %2145 = vmatprep.subr.bf16.mxu0 0
  %2146 = vmatpush1.bf16.msra.mxu0 0
  %2147 = vmatprep.subr.bf16.mxu0 0
  %2148 = vmatpush1.bf16.msra.mxu0 0
  %2149 = vmatprep.subr.bf16.mxu0 0
  %2150 = vmatpush1.bf16.msra.mxu0 0
  %2151 = vmatprep.subr.bf16.mxu0 0
  %2152 = vmatpush1.bf16.msra.mxu0 0
  %2153 = vmatprep.subr.bf16.mxu0 0
  %2154 = vmatpush1.bf16.msra.mxu0 0
  %2155 = vmatprep.subr.bf16.mxu0 0
  %2156 = vmatpush1.bf16.msra.mxu0 0
  %2157 = vmatprep.subr.bf16.mxu0 0
  %2158 = vmatpush1.bf16.msra.mxu0 0
  %2159 = vmatprep.subr.bf16.mxu0 0
  %2160 = vmatpush1.bf16.msra.mxu0 0
  %2161 = vmatprep.subr.bf16.mxu0 0
  %2162 = vmatpush1.bf16.msra.mxu0 0
  %2163 = vmatprep.subr.bf16.mxu0 0
  %2164 = vmatpush1.bf16.msra.mxu0 0
  %2165 = vmatprep.subr.bf16.mxu0 0
  %2166 = vmatpush1.bf16.msra.mxu0 0
  %2167 = vmatprep.subr.bf16.mxu0 0
  %2168 = vmatpush1.bf16.msra.mxu0 0
  %2169 = vmatprep.subr.bf16.mxu0 0
  %2170 = vmatpush1.bf16.msra.mxu0 0
  %2171 = vmatprep.subr.bf16.mxu0 0
  %2172 = vmatpush1.bf16.msra.mxu0 0
  %2173 = vmatprep.mubr.bf16.mxu0 0
  %2174 = vmatmul.mubr.bf16.gmra.mrb[0].mxu0 %v1976
  %v2175 = vpop.f32.mrb[0].mxu0
  %v2176 = vadd.f32 0.0, %v2175
  %v2177 = vpop.f32.mrb[0].mxu0
  %v2178 = vpop.f32.mrb[0].mxu0
  %v2179 = vadd.f32 0.0, %v2178
  %v2180 = vpop.f32.mrb[0].mxu0
  %2181 = vmatprep.mubr.bf16.mxu0 0
  %2182 = vmatmul.mubr.bf16.gmra.mrb[0].mxu0 %v1979
  %v2183 = vpop.f32.mrb[0].mxu0
  %v2184 = vadd.f32 0.0, %v2183
  %v2185 = vpop.f32.mrb[0].mxu0
  %v2186 = vpop.f32.mrb[0].mxu0
  %v2187 = vpop.f32.mrb[0].mxu0
  %2188 = vdwg.mxu0
  %v2189 = vpack.c.bf16 %v1952, %v1952
  %v2191 = vsel %vm1981, %v2189, 0
  %2193 = vmatprep.subr.bf16.mxu0 0
  %2194 = vmatpush1.bf16.msra.mxu0 %v2191
  %2195 = vmatprep.subr.bf16.mxu0 0
  %2196 = vmatpush1.bf16.msra.mxu0 0
  %2197 = vmatprep.subr.bf16.mxu0 0
  %2198 = vmatpush1.bf16.msra.mxu0 0
  %2199 = vmatprep.subr.bf16.mxu0 0
  %2200 = vmatpush1.bf16.msra.mxu0 0
  %2201 = vmatprep.subr.bf16.mxu0 0
  %2202 = vmatpush1.bf16.msra.mxu0 0
  %2203 = vmatprep.subr.bf16.mxu0 0
  %2204 = vmatpush1.bf16.msra.mxu0 0
  %2205 = vmatprep.subr.bf16.mxu0 0
  %2206 = vmatpush1.bf16.msra.mxu0 0
  %2207 = vmatprep.subr.bf16.mxu0 0
  %2208 = vmatpush1.bf16.msra.mxu0 0
  %2209 = vmatprep.subr.bf16.mxu0 0
  %2210 = vmatpush1.bf16.msra.mxu0 0
  %2211 = vmatprep.subr.bf16.mxu0 0
  %2212 = vmatpush1.bf16.msra.mxu0 0
  %2213 = vmatprep.subr.bf16.mxu0 0
  %2214 = vmatpush1.bf16.msra.mxu0 0
  %2215 = vmatprep.subr.bf16.mxu0 0
  %2216 = vmatpush1.bf16.msra.mxu0 0
  %2217 = vmatprep.subr.bf16.mxu0 0
  %2218 = vmatpush1.bf16.msra.mxu0 0
  %2219 = vmatprep.subr.bf16.mxu0 0
  %2220 = vmatpush1.bf16.msra.mxu0 0
  %2221 = vmatprep.subr.bf16.mxu0 0
  %2222 = vmatpush1.bf16.msra.mxu0 0
  %2223 = vmatprep.subr.bf16.mxu0 0
  %2224 = vmatpush1.bf16.msra.mxu0 0
  %2225 = vmatprep.mubr.bf16.mxu0 0
  %2226 = vmatmul.mubr.bf16.gmra.mrb[0].mxu0 %v1976
  %v2227 = vpop.f32.mrb[0].mxu0
  %v2228 = vadd.f32 0.0, %v2227
  %v2229 = vpop.f32.mrb[0].mxu0
  %v2230 = vpop.f32.mrb[0].mxu0
  %v2231 = vadd.f32 0.0, %v2230
  %v2232 = vpop.f32.mrb[0].mxu0
  %2233 = vmatprep.mubr.bf16.mxu0 0
  %2234 = vmatmul.mubr.bf16.gmra.mrb[0].mxu0 %v1979
  %v2235 = vpop.f32.mrb[0].mxu0
  %v2236 = vadd.f32 0.0, %v2235
  %v2237 = vpop.f32.mrb[0].mxu0
  %v2238 = vpop.f32.mrb[0].mxu0
  %v2239 = vpop.f32.mrb[0].mxu0
  %2240 = vdwg.mxu0
  %v2241 = vpack.c.bf16 %v1955, %v1955
  %v2243 = vsel %vm1981, %v2241, 0
  %2245 = vmatprep.subr.bf16.mxu0 0
  %2246 = vmatpush1.bf16.msra.mxu0 %v2243
  %2247 = vmatprep.subr.bf16.mxu0 0
  %2248 = vmatpush1.bf16.msra.mxu0 0
  %2249 = vmatprep.subr.bf16.mxu0 0
  %2250 = vmatpush1.bf16.msra.mxu0 0
  %2251 = vmatprep.subr.bf16.mxu0 0
  %2252 = vmatpush1.bf16.msra.mxu0 0
  %2253 = vmatprep.subr.bf16.mxu0 0
  %2254 = vmatpush1.bf16.msra.mxu0 0
  %2255 = vmatprep.subr.bf16.mxu0 0
  %2256 = vmatpush1.bf16.msra.mxu0 0
  %2257 = vmatprep.subr.bf16.mxu0 0
  %2258 = vmatpush1.bf16.msra.mxu0 0
  %2259 = vmatprep.subr.bf16.mxu0 0
  %2260 = vmatpush1.bf16.msra.mxu0 0
  %2261 = vmatprep.subr.bf16.mxu0 0
  %2262 = vmatpush1.bf16.msra.mxu0 0
  %2263 = vmatprep.subr.bf16.mxu0 0
  %2264 = vmatpush1.bf16.msra.mxu0 0
  %2265 = vmatprep.subr.bf16.mxu0 0
  %2266 = vmatpush1.bf16.msra.mxu0 0
  %2267 = vmatprep.subr.bf16.mxu0 0
  %2268 = vmatpush1.bf16.msra.mxu0 0
  %2269 = vmatprep.subr.bf16.mxu0 0
  %2270 = vmatpush1.bf16.msra.mxu0 0
  %2271 = vmatprep.subr.bf16.mxu0 0
  %2272 = vmatpush1.bf16.msra.mxu0 0
  %2273 = vmatprep.subr.bf16.mxu0 0
  %2274 = vmatpush1.bf16.msra.mxu0 0
  %2275 = vmatprep.subr.bf16.mxu0 0
  %2276 = vmatpush1.bf16.msra.mxu0 0
  %2277 = vmatprep.mubr.bf16.mxu0 0
  %2278 = vmatmul.mubr.bf16.gmra.mrb[0].mxu0 %v1976
  %v2279 = vpop.f32.mrb[0].mxu0
  %v2280 = vadd.f32 0.0, %v2279
  %v2281 = vpop.f32.mrb[0].mxu0
  %v2282 = vpop.f32.mrb[0].mxu0
  %v2283 = vadd.f32 0.0, %v2282
  %v2284 = vpop.f32.mrb[0].mxu0
  %2285 = vmatprep.mubr.bf16.mxu0 0
  %2286 = vmatmul.mubr.bf16.gmra.mrb[0].mxu0 %v1979
  %v2287 = vpop.f32.mrb[0].mxu0
  %v2288 = vadd.f32 0.0, %v2287
  %v2289 = vpop.f32.mrb[0].mxu0
  %v2290 = vpop.f32.mrb[0].mxu0
  %v2291 = vpop.f32.mrb[0].mxu0
  %2292 = vdwg.mxu0
  %v2293 = vpack.c.bf16 %v1958, %v1958
  %v2295 = vsel %vm1981, %v2293, 0
  %2297 = vmatprep.subr.bf16.mxu0 0
  %2298 = vmatpush1.bf16.msra.mxu0 %v2295
  %2299 = vmatprep.subr.bf16.mxu0 0
  %2300 = vmatpush1.bf16.msra.mxu0 0
  %2301 = vmatprep.subr.bf16.mxu0 0
  %2302 = vmatpush1.bf16.msra.mxu0 0
  %2303 = vmatprep.subr.bf16.mxu0 0
  %2304 = vmatpush1.bf16.msra.mxu0 0
  %2305 = vmatprep.subr.bf16.mxu0 0
  %2306 = vmatpush1.bf16.msra.mxu0 0
  %2307 = vmatprep.subr.bf16.mxu0 0
  %2308 = vmatpush1.bf16.msra.mxu0 0
  %2309 = vmatprep.subr.bf16.mxu0 0
  %2310 = vmatpush1.bf16.msra.mxu0 0
  %2311 = vmatprep.subr.bf16.mxu0 0
  %2312 = vmatpush1.bf16.msra.mxu0 0
  %2313 = vmatprep.subr.bf16.mxu0 0
  %2314 = vmatpush1.bf16.msra.mxu0 0
  %2315 = vmatprep.subr.bf16.mxu0 0
  %2316 = vmatpush1.bf16.msra.mxu0 0
  %2317 = vmatprep.subr.bf16.mxu0 0
  %2318 = vmatpush1.bf16.msra.mxu0 0
  %2319 = vmatprep.subr.bf16.mxu0 0
  %2320 = vmatpush1.bf16.msra.mxu0 0
  %2321 = vmatprep.subr.bf16.mxu0 0
  %2322 = vmatpush1.bf16.msra.mxu0 0
  %2323 = vmatprep.subr.bf16.mxu0 0
  %2324 = vmatpush1.bf16.msra.mxu0 0
  %2325 = vmatprep.subr.bf16.mxu0 0
  %2326 = vmatpush1.bf16.msra.mxu0 0
  %2327 = vmatprep.subr.bf16.mxu0 0
  %2328 = vmatpush1.bf16.msra.mxu0 0
  %2329 = vmatprep.mubr.bf16.mxu0 0
  %2330 = vmatmul.mubr.bf16.gmra.mrb[0].mxu0 %v1976
  %v2331 = vpop.f32.mrb[0].mxu0
  %v2332 = vadd.f32 0.0, %v2331
  %v2333 = vpop.f32.mrb[0].mxu0
  %v2334 = vpop.f32.mrb[0].mxu0
  %v2335 = vadd.f32 0.0, %v2334
  %v2336 = vpop.f32.mrb[0].mxu0
  %2337 = vmatprep.mubr.bf16.mxu0 0
  %2338 = vmatmul.mubr.bf16.gmra.mrb[0].mxu0 %v1979
  %v2339 = vpop.f32.mrb[0].mxu0
  %v2340 = vadd.f32 0.0, %v2339
  %v2341 = vpop.f32.mrb[0].mxu0
  %v2342 = vpop.f32.mrb[0].mxu0
  %v2343 = vpop.f32.mrb[0].mxu0
  %2344 = vdwg.mxu0
  %v2345 = vpack.c.bf16 %v1961, %v1961
  %v2347 = vsel %vm1981, %v2345, 0
  %2349 = vmatprep.subr.bf16.mxu0 0
  %2350 = vmatpush1.bf16.msra.mxu0 %v2347
  %2351 = vmatprep.subr.bf16.mxu0 0
  %2352 = vmatpush1.bf16.msra.mxu0 0
  %2353 = vmatprep.subr.bf16.mxu0 0
  %2354 = vmatpush1.bf16.msra.mxu0 0
  %2355 = vmatprep.subr.bf16.mxu0 0
  %2356 = vmatpush1.bf16.msra.mxu0 0
  %2357 = vmatprep.subr.bf16.mxu0 0
  %2358 = vmatpush1.bf16.msra.mxu0 0
  %2359 = vmatprep.subr.bf16.mxu0 0
  %2360 = vmatpush1.bf16.msra.mxu0 0
  %2361 = vmatprep.subr.bf16.mxu0 0
  %2362 = vmatpush1.bf16.msra.mxu0 0
  %2363 = vmatprep.subr.bf16.mxu0 0
  %2364 = vmatpush1.bf16.msra.mxu0 0
  %2365 = vmatprep.subr.bf16.mxu0 0
  %2366 = vmatpush1.bf16.msra.mxu0 0
  %2367 = vmatprep.subr.bf16.mxu0 0
  %2368 = vmatpush1.bf16.msra.mxu0 0
  %2369 = vmatprep.subr.bf16.mxu0 0
  %2370 = vmatpush1.bf16.msra.mxu0 0
  %2371 = vmatprep.subr.bf16.mxu0 0
  %2372 = vmatpush1.bf16.msra.mxu0 0
  %2373 = vmatprep.subr.bf16.mxu0 0
  %2374 = vmatpush1.bf16.msra.mxu0 0
  %2375 = vmatprep.subr.bf16.mxu0 0
  %2376 = vmatpush1.bf16.msra.mxu0 0
  %2377 = vmatprep.subr.bf16.mxu0 0
  %2378 = vmatpush1.bf16.msra.mxu0 0
  %2379 = vmatprep.subr.bf16.mxu0 0
  %2380 = vmatpush1.bf16.msra.mxu0 0
  %2381 = vmatprep.mubr.bf16.mxu0 0
  %2382 = vmatmul.mubr.bf16.gmra.mrb[0].mxu0 %v1976
  %v2383 = vpop.f32.mrb[0].mxu0
  %v2384 = vadd.f32 0.0, %v2383
  %v2385 = vpop.f32.mrb[0].mxu0
  %v2386 = vpop.f32.mrb[0].mxu0
  %v2387 = vadd.f32 0.0, %v2386
  %v2388 = vpop.f32.mrb[0].mxu0
  %2389 = vmatprep.mubr.bf16.mxu0 0
  %2390 = vmatmul.mubr.bf16.gmra.mrb[0].mxu0 %v1979
  %v2391 = vpop.f32.mrb[0].mxu0
  %v2392 = vadd.f32 0.0, %v2391
  %v2393 = vpop.f32.mrb[0].mxu0
  %v2394 = vpop.f32.mrb[0].mxu0
  %v2395 = vpop.f32.mrb[0].mxu0
  %2396 = vdwg.mxu0
  %2398 = vrot.lane.b32.xlu0 %v2384, 1
  %v2399 = vpop.permute.xlu0 %2398
  %v2401 = vsel %vm256, 0.0, %v2399
  %v2402 = vsel %vm262, %v2401, 0.0
  %v2403 = vadd.f32 %v2402, %v2023
  %v2404 = vadd.f32 %v2403, %v2080
  %v2405 = vadd.f32 %v2020, %v2075
  %v2406 = vadd.f32 %v2405, %v2132
  %v2407 = vadd.f32 %v2072, %v2127
  %v2408 = vadd.f32 %v2407, %v2184
  %v2409 = vadd.f32 %v2124, %v2179
  %v2410 = vadd.f32 %v2409, %v2236
  %v2411 = vadd.f32 %v2176, %v2231
  %v2412 = vadd.f32 %v2411, %v2288
  %v2413 = vadd.f32 %v2228, %v2283
  %v2414 = vadd.f32 %v2413, %v2340
  %v2415 = vadd.f32 %v2280, %v2335
  %v2416 = vadd.f32 %v2415, %v2392
  %2418 = vrot.lane.b32.xlu0 %v2028, 127
  %v2419 = vpop.permute.xlu0 %2418
  %v2421 = vsel %vm283, %v2419, 0.0
  %v2422 = vsel %vm289, %v2421, 0.0
  %v2423 = vadd.f32 %v2332, %v2387
  %v2424 = vadd.f32 %v2423, %v2422
  %v2425 = vmul.f32 %v2404, %v2404
  %v2426 = vadd.f32 %v2404, %v2406
  %v2427 = vmul.f32 %v2406, %v2406
  %v2428 = vadd.f32 %v2425, %v2427
  %v2429 = vadd.f32 %v2426, %v2408
  %v2430 = vmul.f32 %v2408, %v2408
  %v2431 = vadd.f32 %v2428, %v2430
  %v2432 = vadd.f32 %v2429, %v2410
  %v2433 = vmul.f32 %v2410, %v2410
  %v2434 = vadd.f32 %v2431, %v2433
  %v2435 = vadd.f32 %v2432, %v2412
  %v2436 = vmul.f32 %v2412, %v2412
  %v2437 = vadd.f32 %v2434, %v2436
  %v2438 = vadd.f32 %v2435, %v2414
  %v2439 = vmul.f32 %v2414, %v2414
  %v2440 = vadd.f32 %v2437, %v2439
  %v2441 = vadd.f32 %v2438, %v2416
  %v2442 = vmul.f32 %v2416, %v2416
  %v2443 = vadd.f32 %v2440, %v2442
  %v2444 = vadd.f32 %v2441, %v2424
  %v2445 = vmul.f32 %v2424, %v2424
  %v2446 = vadd.f32 %v2443, %v2445
  %v2447 = vsel %vm318, %v2444, 0.0
  %2448 = vadd.xlane.f32.xlu0 %v2447
  %v2449 = vpop.xlane.xlu0 %2448
  %v2450 = vmul.f32 %v2449, 0.0078125
  %v2451 = vsel %vm318, %v2446, 0.0
  %2452 = vadd.xlane.f32.xlu0 %v2451
  %v2453 = vpop.xlane.xlu0 %2452
  %v2454 = vmul.f32 %v2453, 0.0078125
  %v2455 = vmul.f32 %v2450, %v2450
  %v2456 = vsub.f32 %v2454, %v2455
  %v2457 = vmax.f32 %v2456, 0.0
  %v2458 = vadd.f32 %v2457, 1e-05
  %v2459 = vrsqrt.pop %v2458
  %v2460 = vmul.f32 %v2459, %v36
  %v2461 = vmul.f32 %v2450, %v2460
  %2463 = vrot.lane.b32.xlu0 %v2461, 1
  %v2464 = vpop.permute.xlu0 %2463
  %v2466 = vsub.f32 %v36, %v2464
  %2468 = vset.pattern.permute.xlu0 10
  %2469 = vperm.xlu0 %2468, %v2460
  %v2470 = vpop.permute.xlu0 %2469
  %v2472 = vmul.f32 %v2404, %v2470
  %2474 = vset.pattern.permute.xlu0 11
  %2475 = vperm.xlu0 %2474, %v2466
  %v2476 = vpop.permute.xlu0 %2475
  %v2478 = vadd.f32 %v2472, %v2476
  %v2479 = vmax.f32 %v2478, 0.0
  %v2480 = vadd.f32 %v1940, %v2479
  %v2481 = vmul.f32 %v2406, %v2470
  %v2482 = vadd.f32 %v2481, %v2476
  %v2483 = vmax.f32 %v2482, 0.0
  %v2484 = vadd.f32 %v1943, %v2483
  %v2485 = vmul.f32 %v2408, %v2470
  %v2486 = vadd.f32 %v2485, %v2476
  %v2487 = vmax.f32 %v2486, 0.0
  %v2488 = vadd.f32 %v1946, %v2487
  %v2489 = vmul.f32 %v2410, %v2470
  %v2490 = vadd.f32 %v2489, %v2476
  %v2491 = vmax.f32 %v2490, 0.0
  %v2492 = vadd.f32 %v1949, %v2491
  %v2493 = vmul.f32 %v2412, %v2470
  %v2494 = vadd.f32 %v2493, %v2476
  %v2495 = vmax.f32 %v2494, 0.0
  %v2496 = vadd.f32 %v1952, %v2495
  %v2497 = vmul.f32 %v2414, %v2470
  %v2498 = vadd.f32 %v2497, %v2476
  %v2499 = vmax.f32 %v2498, 0.0
  %v2500 = vadd.f32 %v1955, %v2499
  %v2501 = vmul.f32 %v2416, %v2470
  %v2502 = vadd.f32 %v2501, %v2476
  %v2503 = vmax.f32 %v2502, 0.0
  %v2504 = vadd.f32 %v1958, %v2503
  %v2505 = vmul.f32 %v2424, %v2470
  %v2506 = vadd.f32 %v2505, %v2476
  %v2507 = vmax.f32 %v2506, 0.0
  %v2508 = vadd.f32 %v1961, %v2507
  %v2509 = vld [vmem:[%s8] sm:$0xf]
  %v2510 = vld [vmem:[%s8 + $0x4] sm:$0x3]
  %v2511 = vpack.c.bf16 %v2480, %v2480
  %v2514 = vunpack.c.l.b16 %v2509
  %v2515 = vunpack.c.l.b16 %v2510
  %v2516 = vpack.c.b16 %v2515, %v2514
  %v2518 = vsel %vm1974, %v2516, 0
  %v2521 = vsel %vm1981, %v2511, 0
  %2523 = vmatprep.subr.bf16.mxu0 0
  %2524 = vmatpush1.bf16.msra.mxu0 %v2521
  %2525 = vmatprep.subr.bf16.mxu0 0
  %2526 = vmatpush1.bf16.msra.mxu0 0
  %2527 = vmatprep.subr.bf16.mxu0 0
  %2528 = vmatpush1.bf16.msra.mxu0 0
  %2529 = vmatprep.subr.bf16.mxu0 0
  %2530 = vmatpush1.bf16.msra.mxu0 0
  %2531 = vmatprep.subr.bf16.mxu0 0
  %2532 = vmatpush1.bf16.msra.mxu0 0
  %2533 = vmatprep.subr.bf16.mxu0 0
  %2534 = vmatpush1.bf16.msra.mxu0 0
  %2535 = vmatprep.subr.bf16.mxu0 0
  %2536 = vmatpush1.bf16.msra.mxu0 0
  %2537 = vmatprep.subr.bf16.mxu0 0
  %2538 = vmatpush1.bf16.msra.mxu0 0
  %2539 = vmatprep.subr.bf16.mxu0 0
  %2540 = vmatpush1.bf16.msra.mxu0 0
  %2541 = vmatprep.subr.bf16.mxu0 0
  %2542 = vmatpush1.bf16.msra.mxu0 0
  %2543 = vmatprep.subr.bf16.mxu0 0
  %2544 = vmatpush1.bf16.msra.mxu0 0
  %2545 = vmatprep.subr.bf16.mxu0 0
  %2546 = vmatpush1.bf16.msra.mxu0 0
  %2547 = vmatprep.subr.bf16.mxu0 0
  %2548 = vmatpush1.bf16.msra.mxu0 0
  %2549 = vmatprep.subr.bf16.mxu0 0
  %2550 = vmatpush1.bf16.msra.mxu0 0
  %2551 = vmatprep.subr.bf16.mxu0 0
  %2552 = vmatpush1.bf16.msra.mxu0 0
  %2553 = vmatprep.subr.bf16.mxu0 0
  %2554 = vmatpush1.bf16.msra.mxu0 0
  %2555 = vmatprep.mubr.bf16.mxu0 0
  %2556 = vmatmul.mubr.bf16.gmra.mrb[0].mxu0 %v2518
  %v2557 = vpop.f32.mrb[0].mxu0
  %v2558 = vadd.f32 0.0, %v2557
  %v2559 = vpop.f32.mrb[0].mxu0
  %v2560 = vpop.f32.mrb[0].mxu0
  %v2561 = vadd.f32 0.0, %v2560
  %v2562 = vpop.f32.mrb[0].mxu0
  %2563 = vdwg.mxu0
  %v2564 = vpack.c.bf16 %v2484, %v2484
  %v2566 = vsel %vm1981, %v2564, 0
  %2568 = vmatprep.subr.bf16.mxu0 0
  %2569 = vmatpush1.bf16.msra.mxu0 %v2566
  %2570 = vmatprep.subr.bf16.mxu0 0
  %2571 = vmatpush1.bf16.msra.mxu0 0
  %2572 = vmatprep.subr.bf16.mxu0 0
  %2573 = vmatpush1.bf16.msra.mxu0 0
  %2574 = vmatprep.subr.bf16.mxu0 0
  %2575 = vmatpush1.bf16.msra.mxu0 0
  %2576 = vmatprep.subr.bf16.mxu0 0
  %2577 = vmatpush1.bf16.msra.mxu0 0
  %2578 = vmatprep.subr.bf16.mxu0 0
  %2579 = vmatpush1.bf16.msra.mxu0 0
  %2580 = vmatprep.subr.bf16.mxu0 0
  %2581 = vmatpush1.bf16.msra.mxu0 0
  %2582 = vmatprep.subr.bf16.mxu0 0
  %2583 = vmatpush1.bf16.msra.mxu0 0
  %2584 = vmatprep.subr.bf16.mxu0 0
  %2585 = vmatpush1.bf16.msra.mxu0 0
  %2586 = vmatprep.subr.bf16.mxu0 0
  %2587 = vmatpush1.bf16.msra.mxu0 0
  %2588 = vmatprep.subr.bf16.mxu0 0
  %2589 = vmatpush1.bf16.msra.mxu0 0
  %2590 = vmatprep.subr.bf16.mxu0 0
  %2591 = vmatpush1.bf16.msra.mxu0 0
  %2592 = vmatprep.subr.bf16.mxu0 0
  %2593 = vmatpush1.bf16.msra.mxu0 0
  %2594 = vmatprep.subr.bf16.mxu0 0
  %2595 = vmatpush1.bf16.msra.mxu0 0
  %2596 = vmatprep.subr.bf16.mxu0 0
  %2597 = vmatpush1.bf16.msra.mxu0 0
  %2598 = vmatprep.subr.bf16.mxu0 0
  %2599 = vmatpush1.bf16.msra.mxu0 0
  %2600 = vmatprep.mubr.bf16.mxu0 0
  %2601 = vmatmul.mubr.bf16.gmra.mrb[0].mxu0 %v2518
  %v2602 = vpop.f32.mrb[0].mxu0
  %v2603 = vadd.f32 0.0, %v2602
  %v2604 = vpop.f32.mrb[0].mxu0
  %v2605 = vpop.f32.mrb[0].mxu0
  %v2606 = vadd.f32 0.0, %v2605
  %v2607 = vpop.f32.mrb[0].mxu0
  %2608 = vdwg.mxu0
  %v2609 = vpack.c.bf16 %v2488, %v2488
  %v2611 = vsel %vm1981, %v2609, 0
  %2613 = vmatprep.subr.bf16.mxu0 0
  %2614 = vmatpush1.bf16.msra.mxu0 %v2611
  %2615 = vmatprep.subr.bf16.mxu0 0
  %2616 = vmatpush1.bf16.msra.mxu0 0
  %2617 = vmatprep.subr.bf16.mxu0 0
  %2618 = vmatpush1.bf16.msra.mxu0 0
  %2619 = vmatprep.subr.bf16.mxu0 0
  %2620 = vmatpush1.bf16.msra.mxu0 0
  %2621 = vmatprep.subr.bf16.mxu0 0
  %2622 = vmatpush1.bf16.msra.mxu0 0
  %2623 = vmatprep.subr.bf16.mxu0 0
  %2624 = vmatpush1.bf16.msra.mxu0 0
  %2625 = vmatprep.subr.bf16.mxu0 0
  %2626 = vmatpush1.bf16.msra.mxu0 0
  %2627 = vmatprep.subr.bf16.mxu0 0
  %2628 = vmatpush1.bf16.msra.mxu0 0
  %2629 = vmatprep.subr.bf16.mxu0 0
  %2630 = vmatpush1.bf16.msra.mxu0 0
  %2631 = vmatprep.subr.bf16.mxu0 0
  %2632 = vmatpush1.bf16.msra.mxu0 0
  %2633 = vmatprep.subr.bf16.mxu0 0
  %2634 = vmatpush1.bf16.msra.mxu0 0
  %2635 = vmatprep.subr.bf16.mxu0 0
  %2636 = vmatpush1.bf16.msra.mxu0 0
  %2637 = vmatprep.subr.bf16.mxu0 0
  %2638 = vmatpush1.bf16.msra.mxu0 0
  %2639 = vmatprep.subr.bf16.mxu0 0
  %2640 = vmatpush1.bf16.msra.mxu0 0
  %2641 = vmatprep.subr.bf16.mxu0 0
  %2642 = vmatpush1.bf16.msra.mxu0 0
  %2643 = vmatprep.subr.bf16.mxu0 0
  %2644 = vmatpush1.bf16.msra.mxu0 0
  %2645 = vmatprep.mubr.bf16.mxu0 0
  %2646 = vmatmul.mubr.bf16.gmra.mrb[0].mxu0 %v2518
  %v2647 = vpop.f32.mrb[0].mxu0
  %v2648 = vadd.f32 0.0, %v2647
  %v2649 = vpop.f32.mrb[0].mxu0
  %v2650 = vpop.f32.mrb[0].mxu0
  %v2651 = vadd.f32 0.0, %v2650
  %v2652 = vpop.f32.mrb[0].mxu0
  %2653 = vdwg.mxu0
  %v2654 = vpack.c.bf16 %v2492, %v2492
  %v2656 = vsel %vm1981, %v2654, 0
  %2658 = vmatprep.subr.bf16.mxu0 0
  %2659 = vmatpush1.bf16.msra.mxu0 %v2656
  %2660 = vmatprep.subr.bf16.mxu0 0
  %2661 = vmatpush1.bf16.msra.mxu0 0
  %2662 = vmatprep.subr.bf16.mxu0 0
  %2663 = vmatpush1.bf16.msra.mxu0 0
  %2664 = vmatprep.subr.bf16.mxu0 0
  %2665 = vmatpush1.bf16.msra.mxu0 0
  %2666 = vmatprep.subr.bf16.mxu0 0
  %2667 = vmatpush1.bf16.msra.mxu0 0
  %2668 = vmatprep.subr.bf16.mxu0 0
  %2669 = vmatpush1.bf16.msra.mxu0 0
  %2670 = vmatprep.subr.bf16.mxu0 0
  %2671 = vmatpush1.bf16.msra.mxu0 0
  %2672 = vmatprep.subr.bf16.mxu0 0
  %2673 = vmatpush1.bf16.msra.mxu0 0
  %2674 = vmatprep.subr.bf16.mxu0 0
  %2675 = vmatpush1.bf16.msra.mxu0 0
  %2676 = vmatprep.subr.bf16.mxu0 0
  %2677 = vmatpush1.bf16.msra.mxu0 0
  %2678 = vmatprep.subr.bf16.mxu0 0
  %2679 = vmatpush1.bf16.msra.mxu0 0
  %2680 = vmatprep.subr.bf16.mxu0 0
  %2681 = vmatpush1.bf16.msra.mxu0 0
  %2682 = vmatprep.subr.bf16.mxu0 0
  %2683 = vmatpush1.bf16.msra.mxu0 0
  %2684 = vmatprep.subr.bf16.mxu0 0
  %2685 = vmatpush1.bf16.msra.mxu0 0
  %2686 = vmatprep.subr.bf16.mxu0 0
  %2687 = vmatpush1.bf16.msra.mxu0 0
  %2688 = vmatprep.subr.bf16.mxu0 0
  %2689 = vmatpush1.bf16.msra.mxu0 0
  %2690 = vmatprep.mubr.bf16.mxu0 0
  %2691 = vmatmul.mubr.bf16.gmra.mrb[0].mxu0 %v2518
  %v2692 = vpop.f32.mrb[0].mxu0
  %v2693 = vadd.f32 0.0, %v2692
  %v2694 = vpop.f32.mrb[0].mxu0
  %v2695 = vpop.f32.mrb[0].mxu0
  %v2696 = vadd.f32 0.0, %v2695
  %v2697 = vpop.f32.mrb[0].mxu0
  %2698 = vdwg.mxu0
  %v2699 = vpack.c.bf16 %v2496, %v2496
  %v2701 = vsel %vm1981, %v2699, 0
  %2703 = vmatprep.subr.bf16.mxu0 0
  %2704 = vmatpush1.bf16.msra.mxu0 %v2701
  %2705 = vmatprep.subr.bf16.mxu0 0
  %2706 = vmatpush1.bf16.msra.mxu0 0
  %2707 = vmatprep.subr.bf16.mxu0 0
  %2708 = vmatpush1.bf16.msra.mxu0 0
  %2709 = vmatprep.subr.bf16.mxu0 0
  %2710 = vmatpush1.bf16.msra.mxu0 0
  %2711 = vmatprep.subr.bf16.mxu0 0
  %2712 = vmatpush1.bf16.msra.mxu0 0
  %2713 = vmatprep.subr.bf16.mxu0 0
  %2714 = vmatpush1.bf16.msra.mxu0 0
  %2715 = vmatprep.subr.bf16.mxu0 0
  %2716 = vmatpush1.bf16.msra.mxu0 0
  %2717 = vmatprep.subr.bf16.mxu0 0
  %2718 = vmatpush1.bf16.msra.mxu0 0
  %2719 = vmatprep.subr.bf16.mxu0 0
  %2720 = vmatpush1.bf16.msra.mxu0 0
  %2721 = vmatprep.subr.bf16.mxu0 0
  %2722 = vmatpush1.bf16.msra.mxu0 0
  %2723 = vmatprep.subr.bf16.mxu0 0
  %2724 = vmatpush1.bf16.msra.mxu0 0
  %2725 = vmatprep.subr.bf16.mxu0 0
  %2726 = vmatpush1.bf16.msra.mxu0 0
  %2727 = vmatprep.subr.bf16.mxu0 0
  %2728 = vmatpush1.bf16.msra.mxu0 0
  %2729 = vmatprep.subr.bf16.mxu0 0
  %2730 = vmatpush1.bf16.msra.mxu0 0
  %2731 = vmatprep.subr.bf16.mxu0 0
  %2732 = vmatpush1.bf16.msra.mxu0 0
  %2733 = vmatprep.subr.bf16.mxu0 0
  %2734 = vmatpush1.bf16.msra.mxu0 0
  %2735 = vmatprep.mubr.bf16.mxu0 0
  %2736 = vmatmul.mubr.bf16.gmra.mrb[0].mxu0 %v2518
  %v2737 = vpop.f32.mrb[0].mxu0
  %v2738 = vadd.f32 0.0, %v2737
  %v2739 = vpop.f32.mrb[0].mxu0
  %v2740 = vpop.f32.mrb[0].mxu0
  %v2741 = vadd.f32 0.0, %v2740
  %v2742 = vpop.f32.mrb[0].mxu0
  %2743 = vdwg.mxu0
  %v2744 = vpack.c.bf16 %v2500, %v2500
  %v2746 = vsel %vm1981, %v2744, 0
  %2748 = vmatprep.subr.bf16.mxu0 0
  %2749 = vmatpush1.bf16.msra.mxu0 %v2746
  %2750 = vmatprep.subr.bf16.mxu0 0
  %2751 = vmatpush1.bf16.msra.mxu0 0
  %2752 = vmatprep.subr.bf16.mxu0 0
  %2753 = vmatpush1.bf16.msra.mxu0 0
  %2754 = vmatprep.subr.bf16.mxu0 0
  %2755 = vmatpush1.bf16.msra.mxu0 0
  %2756 = vmatprep.subr.bf16.mxu0 0
  %2757 = vmatpush1.bf16.msra.mxu0 0
  %2758 = vmatprep.subr.bf16.mxu0 0
  %2759 = vmatpush1.bf16.msra.mxu0 0
  %2760 = vmatprep.subr.bf16.mxu0 0
  %2761 = vmatpush1.bf16.msra.mxu0 0
  %2762 = vmatprep.subr.bf16.mxu0 0
  %2763 = vmatpush1.bf16.msra.mxu0 0
  %2764 = vmatprep.subr.bf16.mxu0 0
  %2765 = vmatpush1.bf16.msra.mxu0 0
  %2766 = vmatprep.subr.bf16.mxu0 0
  %2767 = vmatpush1.bf16.msra.mxu0 0
  %2768 = vmatprep.subr.bf16.mxu0 0
  %2769 = vmatpush1.bf16.msra.mxu0 0
  %2770 = vmatprep.subr.bf16.mxu0 0
  %2771 = vmatpush1.bf16.msra.mxu0 0
  %2772 = vmatprep.subr.bf16.mxu0 0
  %2773 = vmatpush1.bf16.msra.mxu0 0
  %2774 = vmatprep.subr.bf16.mxu0 0
  %2775 = vmatpush1.bf16.msra.mxu0 0
  %2776 = vmatprep.subr.bf16.mxu0 0
  %2777 = vmatpush1.bf16.msra.mxu0 0
  %2778 = vmatprep.subr.bf16.mxu0 0
  %2779 = vmatpush1.bf16.msra.mxu0 0
  %2780 = vmatprep.mubr.bf16.mxu0 0
  %2781 = vmatmul.mubr.bf16.gmra.mrb[0].mxu0 %v2518
  %v2782 = vpop.f32.mrb[0].mxu0
  %v2783 = vadd.f32 0.0, %v2782
  %v2784 = vpop.f32.mrb[0].mxu0
  %v2785 = vpop.f32.mrb[0].mxu0
  %v2786 = vadd.f32 0.0, %v2785
  %v2787 = vpop.f32.mrb[0].mxu0
  %2788 = vdwg.mxu0
  %v2789 = vpack.c.bf16 %v2504, %v2504
  %v2791 = vsel %vm1981, %v2789, 0
  %2793 = vmatprep.subr.bf16.mxu0 0
  %2794 = vmatpush1.bf16.msra.mxu0 %v2791
  %2795 = vmatprep.subr.bf16.mxu0 0
  %2796 = vmatpush1.bf16.msra.mxu0 0
  %2797 = vmatprep.subr.bf16.mxu0 0
  %2798 = vmatpush1.bf16.msra.mxu0 0
  %2799 = vmatprep.subr.bf16.mxu0 0
  %2800 = vmatpush1.bf16.msra.mxu0 0
  %2801 = vmatprep.subr.bf16.mxu0 0
  %2802 = vmatpush1.bf16.msra.mxu0 0
  %2803 = vmatprep.subr.bf16.mxu0 0
  %2804 = vmatpush1.bf16.msra.mxu0 0
  %2805 = vmatprep.subr.bf16.mxu0 0
  %2806 = vmatpush1.bf16.msra.mxu0 0
  %2807 = vmatprep.subr.bf16.mxu0 0
  %2808 = vmatpush1.bf16.msra.mxu0 0
  %2809 = vmatprep.subr.bf16.mxu0 0
  %2810 = vmatpush1.bf16.msra.mxu0 0
  %2811 = vmatprep.subr.bf16.mxu0 0
  %2812 = vmatpush1.bf16.msra.mxu0 0
  %2813 = vmatprep.subr.bf16.mxu0 0
  %2814 = vmatpush1.bf16.msra.mxu0 0
  %2815 = vmatprep.subr.bf16.mxu0 0
  %2816 = vmatpush1.bf16.msra.mxu0 0
  %2817 = vmatprep.subr.bf16.mxu0 0
  %2818 = vmatpush1.bf16.msra.mxu0 0
  %2819 = vmatprep.subr.bf16.mxu0 0
  %2820 = vmatpush1.bf16.msra.mxu0 0
  %2821 = vmatprep.subr.bf16.mxu0 0
  %2822 = vmatpush1.bf16.msra.mxu0 0
  %2823 = vmatprep.subr.bf16.mxu0 0
  %2824 = vmatpush1.bf16.msra.mxu0 0
  %2825 = vmatprep.mubr.bf16.mxu0 0
  %2826 = vmatmul.mubr.bf16.gmra.mrb[0].mxu0 %v2518
  %v2827 = vpop.f32.mrb[0].mxu0
  %v2828 = vadd.f32 0.0, %v2827
  %v2829 = vpop.f32.mrb[0].mxu0
  %v2830 = vpop.f32.mrb[0].mxu0
  %v2831 = vadd.f32 0.0, %v2830
  %v2832 = vpop.f32.mrb[0].mxu0
  %2833 = vdwg.mxu0
  %v2834 = vpack.c.bf16 %v2508, %v2508
  %v2836 = vsel %vm1981, %v2834, 0
  %2838 = vmatprep.subr.bf16.mxu0 0
  %2839 = vmatpush1.bf16.msra.mxu0 %v2836
  %2840 = vmatprep.subr.bf16.mxu0 0
  %2841 = vmatpush1.bf16.msra.mxu0 0
  %2842 = vmatprep.subr.bf16.mxu0 0
  %2843 = vmatpush1.bf16.msra.mxu0 0
  %2844 = vmatprep.subr.bf16.mxu0 0
  %2845 = vmatpush1.bf16.msra.mxu0 0
  %2846 = vmatprep.subr.bf16.mxu0 0
  %2847 = vmatpush1.bf16.msra.mxu0 0
  %2848 = vmatprep.subr.bf16.mxu0 0
  %2849 = vmatpush1.bf16.msra.mxu0 0
  %2850 = vmatprep.subr.bf16.mxu0 0
  %2851 = vmatpush1.bf16.msra.mxu0 0
  %2852 = vmatprep.subr.bf16.mxu0 0
  %2853 = vmatpush1.bf16.msra.mxu0 0
  %2854 = vmatprep.subr.bf16.mxu0 0
  %2855 = vmatpush1.bf16.msra.mxu0 0
  %2856 = vmatprep.subr.bf16.mxu0 0
  %2857 = vmatpush1.bf16.msra.mxu0 0
  %2858 = vmatprep.subr.bf16.mxu0 0
  %2859 = vmatpush1.bf16.msra.mxu0 0
  %2860 = vmatprep.subr.bf16.mxu0 0
  %2861 = vmatpush1.bf16.msra.mxu0 0
  %2862 = vmatprep.subr.bf16.mxu0 0
  %2863 = vmatpush1.bf16.msra.mxu0 0
  %2864 = vmatprep.subr.bf16.mxu0 0
  %2865 = vmatpush1.bf16.msra.mxu0 0
  %2866 = vmatprep.subr.bf16.mxu0 0
  %2867 = vmatpush1.bf16.msra.mxu0 0
  %2868 = vmatprep.subr.bf16.mxu0 0
  %2869 = vmatpush1.bf16.msra.mxu0 0
  %2870 = vmatprep.mubr.bf16.mxu0 0
  %2871 = vmatmul.mubr.bf16.gmra.mrb[0].mxu0 %v2518
  %v2872 = vpop.f32.mrb[0].mxu0
  %v2873 = vadd.f32 0.0, %v2872
  %v2874 = vpop.f32.mrb[0].mxu0
  %v2875 = vpop.f32.mrb[0].mxu0
  %v2876 = vadd.f32 0.0, %v2875
  %v2877 = vpop.f32.mrb[0].mxu0
  %2878 = vdwg.mxu0
  %v2880 = vrot.slane %v2876, 1
  %2881 = vrot.lane.b32.xlu0 %v2880, 1
  %v2882 = vpop.permute.xlu0 %2881
  %v2884 = vsel %vm256, 0.0, %v2882
  %v2885 = vsel %vm262, %v2884, 0.0
  %v2887 = vrot.slane %v2885, 5
  %v2889 = vadd.f32 %v2558, %v2887
  %v2891 = vrot.slane %v2603, 2
  %v2893 = vadd.f32 %v2558, %v2891
  %v2894 = vadd.f32 %v2561, %v2891
  %v2896 = vrot.slane %v2561, 6
  %v2898 = vadd.f32 %v2603, %v2896
  %v2900 = vrot.slane %v2648, 2
  %v2902 = vadd.f32 %v2603, %v2900
  %v2903 = vadd.f32 %v2606, %v2900
  %v2905 = vrot.slane %v2606, 6
  %v2907 = vadd.f32 %v2648, %v2905
  %v2909 = vrot.slane %v2693, 2
  %v2911 = vadd.f32 %v2648, %v2909
  %v2912 = vadd.f32 %v2651, %v2909
  %v2914 = vrot.slane %v2651, 6
  %v2916 = vadd.f32 %v2693, %v2914
  %v2918 = vrot.slane %v2738, 2
  %v2920 = vadd.f32 %v2693, %v2918
  %v2921 = vadd.f32 %v2696, %v2918
  %v2923 = vrot.slane %v2696, 6
  %v2925 = vadd.f32 %v2738, %v2923
  %v2927 = vrot.slane %v2783, 2
  %v2929 = vadd.f32 %v2738, %v2927
  %v2930 = vadd.f32 %v2741, %v2927
  %v2932 = vrot.slane %v2741, 6
  %v2934 = vadd.f32 %v2783, %v2932
  %v2936 = vrot.slane %v2828, 2
  %v2938 = vadd.f32 %v2783, %v2936
  %v2939 = vadd.f32 %v2786, %v2936
  %v2941 = vrot.slane %v2786, 6
  %v2943 = vadd.f32 %v2828, %v2941
  %v2945 = vrot.slane %v2873, 2
  %v2947 = vadd.f32 %v2828, %v2945
  %v2948 = vadd.f32 %v2831, %v2945
  %2950 = vrot.lane.b32.xlu0 %v2558, 127
  %v2951 = vpop.permute.xlu0 %2950
  %v2953 = vsel %vm283, %v2951, 0.0
  %v2954 = vsel %vm289, %v2953, 0.0
  %v2956 = vrot.slane %v2831, 6
  %v2958 = vadd.f32 %v2873, %v2956
  %v2960 = vrot.slane %v2954, 2
  %v2962 = vadd.f32 %v2873, %v2960
  %v2963 = vadd.f32 %v2876, %v2960
  %2965 = vset.pattern.permute.xlu0 12
  %2966 = vperm.xlu0 %2965, %v36
  %v2967 = vpop.permute.xlu0 %2966
  %v2968 = vrot.slane %v2967, 5
  %v2970 = vadd.f32 %v2889, %v2968
  %v2971 = vrot.slane %v2967, 2
  %v2973 = vadd.f32 %v2893, %v2971
  %v2974 = vadd.f32 %v2894, %v2971
  %v2975 = vadd.f32 %v2898, %v2968
  %v2976 = vadd.f32 %v2902, %v2971
  %v2977 = vadd.f32 %v2903, %v2971
  %v2978 = vadd.f32 %v2907, %v2968
  %v2979 = vadd.f32 %v2911, %v2971
  %v2980 = vadd.f32 %v2912, %v2971
  %v2981 = vadd.f32 %v2916, %v2968
  %v2982 = vadd.f32 %v2920, %v2971
  %v2983 = vadd.f32 %v2921, %v2971
  %v2984 = vadd.f32 %v2925, %v2968
  %v2985 = vadd.f32 %v2929, %v2971
  %v2986 = vadd.f32 %v2930, %v2971
  %v2987 = vadd.f32 %v2934, %v2968
  %v2988 = vadd.f32 %v2938, %v2971
  %v2989 = vadd.f32 %v2939, %v2971
  %v2990 = vadd.f32 %v2943, %v2968
  %v2991 = vadd.f32 %v2947, %v2971
  %v2992 = vadd.f32 %v2948, %v2971
  %v2993 = vadd.f32 %v2958, %v2968
  %v2994 = vadd.f32 %v2962, %v2971
  %v2995 = vadd.f32 %v2963, %v2971
  %v2996 = vld [vmem:[%s9] sm:$0xf]
  %v2997 = vld [vmem:[%s9 + $0x4] sm:$0x1]
  %v2998 = vpack.c.bf16 %v2970, %v2970
  %v3001 = vunpack.c.l.b16 %v2996
  %v3002 = vunpack.c.l.b16 %v2997
  %v3003 = vpack.c.b16 %v3002, %v3001
  %v3005 = vshrl.u32 %v2998, 16
  %v3007 = vrot.slane %v3005, 1
  %v3008 = vshll.u32 %v2998, 16
  %v3010 = vrot.slane %v3008, 2
  %v3011 = vor.u32 %v3007, %v3010
  %vm3012 = vcmask 23552
  %v3014 = vsel %vm3012, %v3003, 0
  %vm3016 = vcmask 1041408
  %v3017 = vsel %vm139, 4294967295, 65535
  %v3018 = vsel %vm3016, %v3017, 0
  %v3020 = vand.u32 %v3011, %v3018
  %3022 = vmatprep.subr.bf16.mxu0 0
  %3023 = vmatpush1.bf16.msra.mxu0 %v3020
  %3024 = vmatprep.subr.bf16.mxu0 0
  %3025 = vmatpush1.bf16.msra.mxu0 0
  %3026 = vmatprep.subr.bf16.mxu0 0
  %3027 = vmatpush1.bf16.msra.mxu0 0
  %3028 = vmatprep.subr.bf16.mxu0 0
  %3029 = vmatpush1.bf16.msra.mxu0 0
  %3030 = vmatprep.subr.bf16.mxu0 0
  %3031 = vmatpush1.bf16.msra.mxu0 0
  %3032 = vmatprep.subr.bf16.mxu0 0
  %3033 = vmatpush1.bf16.msra.mxu0 0
  %3034 = vmatprep.subr.bf16.mxu0 0
  %3035 = vmatpush1.bf16.msra.mxu0 0
  %3036 = vmatprep.subr.bf16.mxu0 0
  %3037 = vmatpush1.bf16.msra.mxu0 0
  %3038 = vmatprep.subr.bf16.mxu0 0
  %3039 = vmatpush1.bf16.msra.mxu0 0
  %3040 = vmatprep.subr.bf16.mxu0 0
  %3041 = vmatpush1.bf16.msra.mxu0 0
  %3042 = vmatprep.subr.bf16.mxu0 0
  %3043 = vmatpush1.bf16.msra.mxu0 0
  %3044 = vmatprep.subr.bf16.mxu0 0
  %3045 = vmatpush1.bf16.msra.mxu0 0
  %3046 = vmatprep.subr.bf16.mxu0 0
  %3047 = vmatpush1.bf16.msra.mxu0 0
  %3048 = vmatprep.subr.bf16.mxu0 0
  %3049 = vmatpush1.bf16.msra.mxu0 0
  %3050 = vmatprep.subr.bf16.mxu0 0
  %3051 = vmatpush1.bf16.msra.mxu0 0
  %3052 = vmatprep.subr.bf16.mxu0 0
  %3053 = vmatpush1.bf16.msra.mxu0 0
  %3054 = vmatprep.mubr.bf16.mxu0 0
  %3055 = vmatmul.mubr.bf16.gmra.mrb[0].mxu0 %v3014
  %v3056 = vpop.f32.mrb[0].mxu0
  %v3057 = vadd.f32 0.0, %v3056
  %v3058 = vpop.f32.mrb[0].mxu0
  %v3059 = vpop.f32.mrb[0].mxu0
  %v3060 = vadd.f32 0.0, %v3059
  %v3061 = vpop.f32.mrb[0].mxu0
  %3062 = vdwg.mxu0
  %v3063 = vpack.c.bf16 %v2974, %v2973
  %v3065 = vrot.slane %v3063, 3
  %v3067 = vand.u32 %v3065, %v3018
  %3069 = vmatprep.subr.bf16.mxu0 0
  %3070 = vmatpush1.bf16.msra.mxu0 %v3067
  %3071 = vmatprep.subr.bf16.mxu0 0
  %3072 = vmatpush1.bf16.msra.mxu0 0
  %3073 = vmatprep.subr.bf16.mxu0 0
  %3074 = vmatpush1.bf16.msra.mxu0 0
  %3075 = vmatprep.subr.bf16.mxu0 0
  %3076 = vmatpush1.bf16.msra.mxu0 0
  %3077 = vmatprep.subr.bf16.mxu0 0
  %3078 = vmatpush1.bf16.msra.mxu0 0
  %3079 = vmatprep.subr.bf16.mxu0 0
  %3080 = vmatpush1.bf16.msra.mxu0 0
  %3081 = vmatprep.subr.bf16.mxu0 0
  %3082 = vmatpush1.bf16.msra.mxu0 0
  %3083 = vmatprep.subr.bf16.mxu0 0
  %3084 = vmatpush1.bf16.msra.mxu0 0
  %3085 = vmatprep.subr.bf16.mxu0 0
  %3086 = vmatpush1.bf16.msra.mxu0 0
  %3087 = vmatprep.subr.bf16.mxu0 0
  %3088 = vmatpush1.bf16.msra.mxu0 0
  %3089 = vmatprep.subr.bf16.mxu0 0
  %3090 = vmatpush1.bf16.msra.mxu0 0
  %3091 = vmatprep.subr.bf16.mxu0 0
  %3092 = vmatpush1.bf16.msra.mxu0 0
  %3093 = vmatprep.subr.bf16.mxu0 0
  %3094 = vmatpush1.bf16.msra.mxu0 0
  %3095 = vmatprep.subr.bf16.mxu0 0
  %3096 = vmatpush1.bf16.msra.mxu0 0
  %3097 = vmatprep.subr.bf16.mxu0 0
  %3098 = vmatpush1.bf16.msra.mxu0 0
  %3099 = vmatprep.subr.bf16.mxu0 0
  %3100 = vmatpush1.bf16.msra.mxu0 0
  %3101 = vmatprep.mubr.bf16.mxu0 0
  %3102 = vmatmul.mubr.bf16.gmra.mrb[0].mxu0 %v3014
  %v3103 = vpop.f32.mrb[0].mxu0
  %v3104 = vadd.f32 0.0, %v3103
  %v3105 = vpop.f32.mrb[0].mxu0
  %v3106 = vpop.f32.mrb[0].mxu0
  %v3107 = vadd.f32 0.0, %v3106
  %v3108 = vpop.f32.mrb[0].mxu0
  %3109 = vdwg.mxu0
  %v3110 = vpack.c.bf16 %v2975, %v2975
  %v3112 = vshrl.u32 %v3110, 16
  %v3114 = vrot.slane %v3112, 1
  %v3115 = vshll.u32 %v3110, 16
  %v3117 = vrot.slane %v3115, 2
  %v3118 = vor.u32 %v3114, %v3117
  %v3120 = vand.u32 %v3118, %v3018
  %3122 = vmatprep.subr.bf16.mxu0 0
  %3123 = vmatpush1.bf16.msra.mxu0 %v3120
  %3124 = vmatprep.subr.bf16.mxu0 0
  %3125 = vmatpush1.bf16.msra.mxu0 0
  %3126 = vmatprep.subr.bf16.mxu0 0
  %3127 = vmatpush1.bf16.msra.mxu0 0
  %3128 = vmatprep.subr.bf16.mxu0 0
  %3129 = vmatpush1.bf16.msra.mxu0 0
  %3130 = vmatprep.subr.bf16.mxu0 0
  %3131 = vmatpush1.bf16.msra.mxu0 0
  %3132 = vmatprep.subr.bf16.mxu0 0
  %3133 = vmatpush1.bf16.msra.mxu0 0
  %3134 = vmatprep.subr.bf16.mxu0 0
  %3135 = vmatpush1.bf16.msra.mxu0 0
  %3136 = vmatprep.subr.bf16.mxu0 0
  %3137 = vmatpush1.bf16.msra.mxu0 0
  %3138 = vmatprep.subr.bf16.mxu0 0
  %3139 = vmatpush1.bf16.msra.mxu0 0
  %3140 = vmatprep.subr.bf16.mxu0 0
  %3141 = vmatpush1.bf16.msra.mxu0 0
  %3142 = vmatprep.subr.bf16.mxu0 0
  %3143 = vmatpush1.bf16.msra.mxu0 0
  %3144 = vmatprep.subr.bf16.mxu0 0
  %3145 = vmatpush1.bf16.msra.mxu0 0
  %3146 = vmatprep.subr.bf16.mxu0 0
  %3147 = vmatpush1.bf16.msra.mxu0 0
  %3148 = vmatprep.subr.bf16.mxu0 0
  %3149 = vmatpush1.bf16.msra.mxu0 0
  %3150 = vmatprep.subr.bf16.mxu0 0
  %3151 = vmatpush1.bf16.msra.mxu0 0
  %3152 = vmatprep.subr.bf16.mxu0 0
  %3153 = vmatpush1.bf16.msra.mxu0 0
  %3154 = vmatprep.mubr.bf16.mxu0 0
  %3155 = vmatmul.mubr.bf16.gmra.mrb[0].mxu0 %v3014
  %v3156 = vpop.f32.mrb[0].mxu0
  %v3157 = vadd.f32 0.0, %v3156
  %v3158 = vpop.f32.mrb[0].mxu0
  %v3159 = vpop.f32.mrb[0].mxu0
  %v3160 = vadd.f32 0.0, %v3159
  %v3161 = vpop.f32.mrb[0].mxu0
  %3162 = vdwg.mxu0
  %v3163 = vpack.c.bf16 %v2977, %v2976
  %v3165 = vrot.slane %v3163, 3
  %v3167 = vand.u32 %v3165, %v3018
  %3169 = vmatprep.subr.bf16.mxu0 0
  %3170 = vmatpush1.bf16.msra.mxu0 %v3167
  %3171 = vmatprep.subr.bf16.mxu0 0
  %3172 = vmatpush1.bf16.msra.mxu0 0
  %3173 = vmatprep.subr.bf16.mxu0 0
  %3174 = vmatpush1.bf16.msra.mxu0 0
  %3175 = vmatprep.subr.bf16.mxu0 0
  %3176 = vmatpush1.bf16.msra.mxu0 0
  %3177 = vmatprep.subr.bf16.mxu0 0
  %3178 = vmatpush1.bf16.msra.mxu0 0
  %3179 = vmatprep.subr.bf16.mxu0 0
  %3180 = vmatpush1.bf16.msra.mxu0 0
  %3181 = vmatprep.subr.bf16.mxu0 0
  %3182 = vmatpush1.bf16.msra.mxu0 0
  %3183 = vmatprep.subr.bf16.mxu0 0
  %3184 = vmatpush1.bf16.msra.mxu0 0
  %3185 = vmatprep.subr.bf16.mxu0 0
  %3186 = vmatpush1.bf16.msra.mxu0 0
  %3187 = vmatprep.subr.bf16.mxu0 0
  %3188 = vmatpush1.bf16.msra.mxu0 0
  %3189 = vmatprep.subr.bf16.mxu0 0
  %3190 = vmatpush1.bf16.msra.mxu0 0
  %3191 = vmatprep.subr.bf16.mxu0 0
  %3192 = vmatpush1.bf16.msra.mxu0 0
  %3193 = vmatprep.subr.bf16.mxu0 0
  %3194 = vmatpush1.bf16.msra.mxu0 0
  %3195 = vmatprep.subr.bf16.mxu0 0
  %3196 = vmatpush1.bf16.msra.mxu0 0
  %3197 = vmatprep.subr.bf16.mxu0 0
  %3198 = vmatpush1.bf16.msra.mxu0 0
  %3199 = vmatprep.subr.bf16.mxu0 0
  %3200 = vmatpush1.bf16.msra.mxu0 0
  %3201 = vmatprep.mubr.bf16.mxu0 0
  %3202 = vmatmul.mubr.bf16.gmra.mrb[0].mxu0 %v3014
  %v3203 = vpop.f32.mrb[0].mxu0
  %v3204 = vadd.f32 0.0, %v3203
  %v3205 = vpop.f32.mrb[0].mxu0
  %v3206 = vpop.f32.mrb[0].mxu0
  %v3207 = vadd.f32 0.0, %v3206
  %v3208 = vpop.f32.mrb[0].mxu0
  %3209 = vdwg.mxu0
  %v3210 = vpack.c.bf16 %v2978, %v2978
  %v3212 = vshrl.u32 %v3210, 16
  %v3214 = vrot.slane %v3212, 1
  %v3215 = vshll.u32 %v3210, 16
  %v3217 = vrot.slane %v3215, 2
  %v3218 = vor.u32 %v3214, %v3217
  %v3220 = vand.u32 %v3218, %v3018
  %3222 = vmatprep.subr.bf16.mxu0 0
  %3223 = vmatpush1.bf16.msra.mxu0 %v3220
  %3224 = vmatprep.subr.bf16.mxu0 0
  %3225 = vmatpush1.bf16.msra.mxu0 0
  %3226 = vmatprep.subr.bf16.mxu0 0
  %3227 = vmatpush1.bf16.msra.mxu0 0
  %3228 = vmatprep.subr.bf16.mxu0 0
  %3229 = vmatpush1.bf16.msra.mxu0 0
  %3230 = vmatprep.subr.bf16.mxu0 0
  %3231 = vmatpush1.bf16.msra.mxu0 0
  %3232 = vmatprep.subr.bf16.mxu0 0
  %3233 = vmatpush1.bf16.msra.mxu0 0
  %3234 = vmatprep.subr.bf16.mxu0 0
  %3235 = vmatpush1.bf16.msra.mxu0 0
  %3236 = vmatprep.subr.bf16.mxu0 0
  %3237 = vmatpush1.bf16.msra.mxu0 0
  %3238 = vmatprep.subr.bf16.mxu0 0
  %3239 = vmatpush1.bf16.msra.mxu0 0
  %3240 = vmatprep.subr.bf16.mxu0 0
  %3241 = vmatpush1.bf16.msra.mxu0 0
  %3242 = vmatprep.subr.bf16.mxu0 0
  %3243 = vmatpush1.bf16.msra.mxu0 0
  %3244 = vmatprep.subr.bf16.mxu0 0
  %3245 = vmatpush1.bf16.msra.mxu0 0
  %3246 = vmatprep.subr.bf16.mxu0 0
  %3247 = vmatpush1.bf16.msra.mxu0 0
  %3248 = vmatprep.subr.bf16.mxu0 0
  %3249 = vmatpush1.bf16.msra.mxu0 0
  %3250 = vmatprep.subr.bf16.mxu0 0
  %3251 = vmatpush1.bf16.msra.mxu0 0
  %3252 = vmatprep.subr.bf16.mxu0 0
  %3253 = vmatpush1.bf16.msra.mxu0 0
  %3254 = vmatprep.mubr.bf16.mxu0 0
  %3255 = vmatmul.mubr.bf16.gmra.mrb[0].mxu0 %v3014
  %v3256 = vpop.f32.mrb[0].mxu0
  %v3257 = vadd.f32 0.0, %v3256
  %v3258 = vpop.f32.mrb[0].mxu0
  %v3259 = vpop.f32.mrb[0].mxu0
  %v3260 = vadd.f32 0.0, %v3259
  %v3261 = vpop.f32.mrb[0].mxu0
  %3262 = vdwg.mxu0
  %v3263 = vpack.c.bf16 %v2980, %v2979
  %v3265 = vrot.slane %v3263, 3
  %v3267 = vand.u32 %v3265, %v3018
  %3269 = vmatprep.subr.bf16.mxu0 0
  %3270 = vmatpush1.bf16.msra.mxu0 %v3267
  %3271 = vmatprep.subr.bf16.mxu0 0
  %3272 = vmatpush1.bf16.msra.mxu0 0
  %3273 = vmatprep.subr.bf16.mxu0 0
  %3274 = vmatpush1.bf16.msra.mxu0 0
  %3275 = vmatprep.subr.bf16.mxu0 0
  %3276 = vmatpush1.bf16.msra.mxu0 0
  %3277 = vmatprep.subr.bf16.mxu0 0
  %3278 = vmatpush1.bf16.msra.mxu0 0
  %3279 = vmatprep.subr.bf16.mxu0 0
  %3280 = vmatpush1.bf16.msra.mxu0 0
  %3281 = vmatprep.subr.bf16.mxu0 0
  %3282 = vmatpush1.bf16.msra.mxu0 0
  %3283 = vmatprep.subr.bf16.mxu0 0
  %3284 = vmatpush1.bf16.msra.mxu0 0
  %3285 = vmatprep.subr.bf16.mxu0 0
  %3286 = vmatpush1.bf16.msra.mxu0 0
  %3287 = vmatprep.subr.bf16.mxu0 0
  %3288 = vmatpush1.bf16.msra.mxu0 0
  %3289 = vmatprep.subr.bf16.mxu0 0
  %3290 = vmatpush1.bf16.msra.mxu0 0
  %3291 = vmatprep.subr.bf16.mxu0 0
  %3292 = vmatpush1.bf16.msra.mxu0 0
  %3293 = vmatprep.subr.bf16.mxu0 0
  %3294 = vmatpush1.bf16.msra.mxu0 0
  %3295 = vmatprep.subr.bf16.mxu0 0
  %3296 = vmatpush1.bf16.msra.mxu0 0
  %3297 = vmatprep.subr.bf16.mxu0 0
  %3298 = vmatpush1.bf16.msra.mxu0 0
  %3299 = vmatprep.subr.bf16.mxu0 0
  %3300 = vmatpush1.bf16.msra.mxu0 0
  %3301 = vmatprep.mubr.bf16.mxu0 0
  %3302 = vmatmul.mubr.bf16.gmra.mrb[0].mxu0 %v3014
  %v3303 = vpop.f32.mrb[0].mxu0
  %v3304 = vadd.f32 0.0, %v3303
  %v3305 = vpop.f32.mrb[0].mxu0
  %v3306 = vpop.f32.mrb[0].mxu0
  %v3307 = vadd.f32 0.0, %v3306
  %v3308 = vpop.f32.mrb[0].mxu0
  %3309 = vdwg.mxu0
  %v3310 = vpack.c.bf16 %v2981, %v2981
  %v3312 = vshrl.u32 %v3310, 16
  %v3314 = vrot.slane %v3312, 1
  %v3315 = vshll.u32 %v3310, 16
  %v3317 = vrot.slane %v3315, 2
  %v3318 = vor.u32 %v3314, %v3317
  %v3320 = vand.u32 %v3318, %v3018
  %3322 = vmatprep.subr.bf16.mxu0 0
  %3323 = vmatpush1.bf16.msra.mxu0 %v3320
  %3324 = vmatprep.subr.bf16.mxu0 0
  %3325 = vmatpush1.bf16.msra.mxu0 0
  %3326 = vmatprep.subr.bf16.mxu0 0
  %3327 = vmatpush1.bf16.msra.mxu0 0
  %3328 = vmatprep.subr.bf16.mxu0 0
  %3329 = vmatpush1.bf16.msra.mxu0 0
  %3330 = vmatprep.subr.bf16.mxu0 0
  %3331 = vmatpush1.bf16.msra.mxu0 0
  %3332 = vmatprep.subr.bf16.mxu0 0
  %3333 = vmatpush1.bf16.msra.mxu0 0
  %3334 = vmatprep.subr.bf16.mxu0 0
  %3335 = vmatpush1.bf16.msra.mxu0 0
  %3336 = vmatprep.subr.bf16.mxu0 0
  %3337 = vmatpush1.bf16.msra.mxu0 0
  %3338 = vmatprep.subr.bf16.mxu0 0
  %3339 = vmatpush1.bf16.msra.mxu0 0
  %3340 = vmatprep.subr.bf16.mxu0 0
  %3341 = vmatpush1.bf16.msra.mxu0 0
  %3342 = vmatprep.subr.bf16.mxu0 0
  %3343 = vmatpush1.bf16.msra.mxu0 0
  %3344 = vmatprep.subr.bf16.mxu0 0
  %3345 = vmatpush1.bf16.msra.mxu0 0
  %3346 = vmatprep.subr.bf16.mxu0 0
  %3347 = vmatpush1.bf16.msra.mxu0 0
  %3348 = vmatprep.subr.bf16.mxu0 0
  %3349 = vmatpush1.bf16.msra.mxu0 0
  %3350 = vmatprep.subr.bf16.mxu0 0
  %3351 = vmatpush1.bf16.msra.mxu0 0
  %3352 = vmatprep.subr.bf16.mxu0 0
  %3353 = vmatpush1.bf16.msra.mxu0 0
  %3354 = vmatprep.mubr.bf16.mxu0 0
  %3355 = vmatmul.mubr.bf16.gmra.mrb[0].mxu0 %v3014
  %v3356 = vpop.f32.mrb[0].mxu0
  %v3357 = vadd.f32 0.0, %v3356
  %v3358 = vpop.f32.mrb[0].mxu0
  %v3359 = vpop.f32.mrb[0].mxu0
  %v3360 = vadd.f32 0.0, %v3359
  %v3361 = vpop.f32.mrb[0].mxu0
  %3362 = vdwg.mxu0
  %v3363 = vpack.c.bf16 %v2983, %v2982
  %v3365 = vrot.slane %v3363, 3
  %v3367 = vand.u32 %v3365, %v3018
  %3369 = vmatprep.subr.bf16.mxu0 0
  %3370 = vmatpush1.bf16.msra.mxu0 %v3367
  %3371 = vmatprep.subr.bf16.mxu0 0
  %3372 = vmatpush1.bf16.msra.mxu0 0
  %3373 = vmatprep.subr.bf16.mxu0 0
  %3374 = vmatpush1.bf16.msra.mxu0 0
  %3375 = vmatprep.subr.bf16.mxu0 0
  %3376 = vmatpush1.bf16.msra.mxu0 0
  %3377 = vmatprep.subr.bf16.mxu0 0
  %3378 = vmatpush1.bf16.msra.mxu0 0
  %3379 = vmatprep.subr.bf16.mxu0 0
  %3380 = vmatpush1.bf16.msra.mxu0 0
  %3381 = vmatprep.subr.bf16.mxu0 0
  %3382 = vmatpush1.bf16.msra.mxu0 0
  %3383 = vmatprep.subr.bf16.mxu0 0
  %3384 = vmatpush1.bf16.msra.mxu0 0
  %3385 = vmatprep.subr.bf16.mxu0 0
  %3386 = vmatpush1.bf16.msra.mxu0 0
  %3387 = vmatprep.subr.bf16.mxu0 0
  %3388 = vmatpush1.bf16.msra.mxu0 0
  %3389 = vmatprep.subr.bf16.mxu0 0
  %3390 = vmatpush1.bf16.msra.mxu0 0
  %3391 = vmatprep.subr.bf16.mxu0 0
  %3392 = vmatpush1.bf16.msra.mxu0 0
  %3393 = vmatprep.subr.bf16.mxu0 0
  %3394 = vmatpush1.bf16.msra.mxu0 0
  %3395 = vmatprep.subr.bf16.mxu0 0
  %3396 = vmatpush1.bf16.msra.mxu0 0
  %3397 = vmatprep.subr.bf16.mxu0 0
  %3398 = vmatpush1.bf16.msra.mxu0 0
  %3399 = vmatprep.subr.bf16.mxu0 0
  %3400 = vmatpush1.bf16.msra.mxu0 0
  %3401 = vmatprep.mubr.bf16.mxu0 0
  %3402 = vmatmul.mubr.bf16.gmra.mrb[0].mxu0 %v3014
  %v3403 = vpop.f32.mrb[0].mxu0
  %v3404 = vadd.f32 0.0, %v3403
  %v3405 = vpop.f32.mrb[0].mxu0
  %v3406 = vpop.f32.mrb[0].mxu0
  %v3407 = vadd.f32 0.0, %v3406
  %v3408 = vpop.f32.mrb[0].mxu0
  %3409 = vdwg.mxu0
  %v3410 = vpack.c.bf16 %v2984, %v2984
  %v3412 = vshrl.u32 %v3410, 16
  %v3414 = vrot.slane %v3412, 1
  %v3415 = vshll.u32 %v3410, 16
  %v3417 = vrot.slane %v3415, 2
  %v3418 = vor.u32 %v3414, %v3417
  %v3420 = vand.u32 %v3418, %v3018
  %3422 = vmatprep.subr.bf16.mxu0 0
  %3423 = vmatpush1.bf16.msra.mxu0 %v3420
  %3424 = vmatprep.subr.bf16.mxu0 0
  %3425 = vmatpush1.bf16.msra.mxu0 0
  %3426 = vmatprep.subr.bf16.mxu0 0
  %3427 = vmatpush1.bf16.msra.mxu0 0
  %3428 = vmatprep.subr.bf16.mxu0 0
  %3429 = vmatpush1.bf16.msra.mxu0 0
  %3430 = vmatprep.subr.bf16.mxu0 0
  %3431 = vmatpush1.bf16.msra.mxu0 0
  %3432 = vmatprep.subr.bf16.mxu0 0
  %3433 = vmatpush1.bf16.msra.mxu0 0
  %3434 = vmatprep.subr.bf16.mxu0 0
  %3435 = vmatpush1.bf16.msra.mxu0 0
  %3436 = vmatprep.subr.bf16.mxu0 0
  %3437 = vmatpush1.bf16.msra.mxu0 0
  %3438 = vmatprep.subr.bf16.mxu0 0
  %3439 = vmatpush1.bf16.msra.mxu0 0
  %3440 = vmatprep.subr.bf16.mxu0 0
  %3441 = vmatpush1.bf16.msra.mxu0 0
  %3442 = vmatprep.subr.bf16.mxu0 0
  %3443 = vmatpush1.bf16.msra.mxu0 0
  %3444 = vmatprep.subr.bf16.mxu0 0
  %3445 = vmatpush1.bf16.msra.mxu0 0
  %3446 = vmatprep.subr.bf16.mxu0 0
  %3447 = vmatpush1.bf16.msra.mxu0 0
  %3448 = vmatprep.subr.bf16.mxu0 0
  %3449 = vmatpush1.bf16.msra.mxu0 0
  %3450 = vmatprep.subr.bf16.mxu0 0
  %3451 = vmatpush1.bf16.msra.mxu0 0
  %3452 = vmatprep.subr.bf16.mxu0 0
  %3453 = vmatpush1.bf16.msra.mxu0 0
  %3454 = vmatprep.mubr.bf16.mxu0 0
  %3455 = vmatmul.mubr.bf16.gmra.mrb[0].mxu0 %v3014
  %v3456 = vpop.f32.mrb[0].mxu0
  %v3457 = vadd.f32 0.0, %v3456
  %v3458 = vpop.f32.mrb[0].mxu0
  %v3459 = vpop.f32.mrb[0].mxu0
  %v3460 = vadd.f32 0.0, %v3459
  %v3461 = vpop.f32.mrb[0].mxu0
  %3462 = vdwg.mxu0
  %v3463 = vpack.c.bf16 %v2986, %v2985
  %v3465 = vrot.slane %v3463, 3
  %v3467 = vand.u32 %v3465, %v3018
  %3469 = vmatprep.subr.bf16.mxu0 0
  %3470 = vmatpush1.bf16.msra.mxu0 %v3467
  %3471 = vmatprep.subr.bf16.mxu0 0
  %3472 = vmatpush1.bf16.msra.mxu0 0
  %3473 = vmatprep.subr.bf16.mxu0 0
  %3474 = vmatpush1.bf16.msra.mxu0 0
  %3475 = vmatprep.subr.bf16.mxu0 0
  %3476 = vmatpush1.bf16.msra.mxu0 0
  %3477 = vmatprep.subr.bf16.mxu0 0
  %3478 = vmatpush1.bf16.msra.mxu0 0
  %3479 = vmatprep.subr.bf16.mxu0 0
  %3480 = vmatpush1.bf16.msra.mxu0 0
  %3481 = vmatprep.subr.bf16.mxu0 0
  %3482 = vmatpush1.bf16.msra.mxu0 0
  %3483 = vmatprep.subr.bf16.mxu0 0
  %3484 = vmatpush1.bf16.msra.mxu0 0
  %3485 = vmatprep.subr.bf16.mxu0 0
  %3486 = vmatpush1.bf16.msra.mxu0 0
  %3487 = vmatprep.subr.bf16.mxu0 0
  %3488 = vmatpush1.bf16.msra.mxu0 0
  %3489 = vmatprep.subr.bf16.mxu0 0
  %3490 = vmatpush1.bf16.msra.mxu0 0
  %3491 = vmatprep.subr.bf16.mxu0 0
  %3492 = vmatpush1.bf16.msra.mxu0 0
  %3493 = vmatprep.subr.bf16.mxu0 0
  %3494 = vmatpush1.bf16.msra.mxu0 0
  %3495 = vmatprep.subr.bf16.mxu0 0
  %3496 = vmatpush1.bf16.msra.mxu0 0
  %3497 = vmatprep.subr.bf16.mxu0 0
  %3498 = vmatpush1.bf16.msra.mxu0 0
  %3499 = vmatprep.subr.bf16.mxu0 0
  %3500 = vmatpush1.bf16.msra.mxu0 0
  %3501 = vmatprep.mubr.bf16.mxu0 0
  %3502 = vmatmul.mubr.bf16.gmra.mrb[0].mxu0 %v3014
  %v3503 = vpop.f32.mrb[0].mxu0
  %v3504 = vadd.f32 0.0, %v3503
  %v3505 = vpop.f32.mrb[0].mxu0
  %v3506 = vpop.f32.mrb[0].mxu0
  %v3507 = vadd.f32 0.0, %v3506
  %v3508 = vpop.f32.mrb[0].mxu0
  %3509 = vdwg.mxu0
  %v3510 = vpack.c.bf16 %v2987, %v2987
  %v3512 = vshrl.u32 %v3510, 16
  %v3514 = vrot.slane %v3512, 1
  %v3515 = vshll.u32 %v3510, 16
  %v3517 = vrot.slane %v3515, 2
  %v3518 = vor.u32 %v3514, %v3517
  %v3520 = vand.u32 %v3518, %v3018
  %3522 = vmatprep.subr.bf16.mxu0 0
  %3523 = vmatpush1.bf16.msra.mxu0 %v3520
  %3524 = vmatprep.subr.bf16.mxu0 0
  %3525 = vmatpush1.bf16.msra.mxu0 0
  %3526 = vmatprep.subr.bf16.mxu0 0
  %3527 = vmatpush1.bf16.msra.mxu0 0
  %3528 = vmatprep.subr.bf16.mxu0 0
  %3529 = vmatpush1.bf16.msra.mxu0 0
  %3530 = vmatprep.subr.bf16.mxu0 0
  %3531 = vmatpush1.bf16.msra.mxu0 0
  %3532 = vmatprep.subr.bf16.mxu0 0
  %3533 = vmatpush1.bf16.msra.mxu0 0
  %3534 = vmatprep.subr.bf16.mxu0 0
  %3535 = vmatpush1.bf16.msra.mxu0 0
  %3536 = vmatprep.subr.bf16.mxu0 0
  %3537 = vmatpush1.bf16.msra.mxu0 0
  %3538 = vmatprep.subr.bf16.mxu0 0
  %3539 = vmatpush1.bf16.msra.mxu0 0
  %3540 = vmatprep.subr.bf16.mxu0 0
  %3541 = vmatpush1.bf16.msra.mxu0 0
  %3542 = vmatprep.subr.bf16.mxu0 0
  %3543 = vmatpush1.bf16.msra.mxu0 0
  %3544 = vmatprep.subr.bf16.mxu0 0
  %3545 = vmatpush1.bf16.msra.mxu0 0
  %3546 = vmatprep.subr.bf16.mxu0 0
  %3547 = vmatpush1.bf16.msra.mxu0 0
  %3548 = vmatprep.subr.bf16.mxu0 0
  %3549 = vmatpush1.bf16.msra.mxu0 0
  %3550 = vmatprep.subr.bf16.mxu0 0
  %3551 = vmatpush1.bf16.msra.mxu0 0
  %3552 = vmatprep.subr.bf16.mxu0 0
  %3553 = vmatpush1.bf16.msra.mxu0 0
  %3554 = vmatprep.mubr.bf16.mxu0 0
  %3555 = vmatmul.mubr.bf16.gmra.mrb[0].mxu0 %v3014
  %v3556 = vpop.f32.mrb[0].mxu0
  %v3557 = vadd.f32 0.0, %v3556
  %v3558 = vpop.f32.mrb[0].mxu0
  %v3559 = vpop.f32.mrb[0].mxu0
  %v3560 = vadd.f32 0.0, %v3559
  %v3561 = vpop.f32.mrb[0].mxu0
  %3562 = vdwg.mxu0
  %v3563 = vpack.c.bf16 %v2989, %v2988
  %v3565 = vrot.slane %v3563, 3
  %v3567 = vand.u32 %v3565, %v3018
  %3569 = vmatprep.subr.bf16.mxu0 0
  %3570 = vmatpush1.bf16.msra.mxu0 %v3567
  %3571 = vmatprep.subr.bf16.mxu0 0
  %3572 = vmatpush1.bf16.msra.mxu0 0
  %3573 = vmatprep.subr.bf16.mxu0 0
  %3574 = vmatpush1.bf16.msra.mxu0 0
  %3575 = vmatprep.subr.bf16.mxu0 0
  %3576 = vmatpush1.bf16.msra.mxu0 0
  %3577 = vmatprep.subr.bf16.mxu0 0
  %3578 = vmatpush1.bf16.msra.mxu0 0
  %3579 = vmatprep.subr.bf16.mxu0 0
  %3580 = vmatpush1.bf16.msra.mxu0 0
  %3581 = vmatprep.subr.bf16.mxu0 0
  %3582 = vmatpush1.bf16.msra.mxu0 0
  %3583 = vmatprep.subr.bf16.mxu0 0
  %3584 = vmatpush1.bf16.msra.mxu0 0
  %3585 = vmatprep.subr.bf16.mxu0 0
  %3586 = vmatpush1.bf16.msra.mxu0 0
  %3587 = vmatprep.subr.bf16.mxu0 0
  %3588 = vmatpush1.bf16.msra.mxu0 0
  %3589 = vmatprep.subr.bf16.mxu0 0
  %3590 = vmatpush1.bf16.msra.mxu0 0
  %3591 = vmatprep.subr.bf16.mxu0 0
  %3592 = vmatpush1.bf16.msra.mxu0 0
  %3593 = vmatprep.subr.bf16.mxu0 0
  %3594 = vmatpush1.bf16.msra.mxu0 0
  %3595 = vmatprep.subr.bf16.mxu0 0
  %3596 = vmatpush1.bf16.msra.mxu0 0
  %3597 = vmatprep.subr.bf16.mxu0 0
  %3598 = vmatpush1.bf16.msra.mxu0 0
  %3599 = vmatprep.subr.bf16.mxu0 0
  %3600 = vmatpush1.bf16.msra.mxu0 0
  %3601 = vmatprep.mubr.bf16.mxu0 0
  %3602 = vmatmul.mubr.bf16.gmra.mrb[0].mxu0 %v3014
  %v3603 = vpop.f32.mrb[0].mxu0
  %v3604 = vadd.f32 0.0, %v3603
  %v3605 = vpop.f32.mrb[0].mxu0
  %v3606 = vpop.f32.mrb[0].mxu0
  %v3607 = vadd.f32 0.0, %v3606
  %v3608 = vpop.f32.mrb[0].mxu0
  %3609 = vdwg.mxu0
  %v3610 = vpack.c.bf16 %v2990, %v2990
  %v3612 = vshrl.u32 %v3610, 16
  %v3614 = vrot.slane %v3612, 1
  %v3615 = vshll.u32 %v3610, 16
  %v3617 = vrot.slane %v3615, 2
  %v3618 = vor.u32 %v3614, %v3617
  %v3620 = vand.u32 %v3618, %v3018
  %3622 = vmatprep.subr.bf16.mxu0 0
  %3623 = vmatpush1.bf16.msra.mxu0 %v3620
  %3624 = vmatprep.subr.bf16.mxu0 0
  %3625 = vmatpush1.bf16.msra.mxu0 0
  %3626 = vmatprep.subr.bf16.mxu0 0
  %3627 = vmatpush1.bf16.msra.mxu0 0
  %3628 = vmatprep.subr.bf16.mxu0 0
  %3629 = vmatpush1.bf16.msra.mxu0 0
  %3630 = vmatprep.subr.bf16.mxu0 0
  %3631 = vmatpush1.bf16.msra.mxu0 0
  %3632 = vmatprep.subr.bf16.mxu0 0
  %3633 = vmatpush1.bf16.msra.mxu0 0
  %3634 = vmatprep.subr.bf16.mxu0 0
  %3635 = vmatpush1.bf16.msra.mxu0 0
  %3636 = vmatprep.subr.bf16.mxu0 0
  %3637 = vmatpush1.bf16.msra.mxu0 0
  %3638 = vmatprep.subr.bf16.mxu0 0
  %3639 = vmatpush1.bf16.msra.mxu0 0
  %3640 = vmatprep.subr.bf16.mxu0 0
  %3641 = vmatpush1.bf16.msra.mxu0 0
  %3642 = vmatprep.subr.bf16.mxu0 0
  %3643 = vmatpush1.bf16.msra.mxu0 0
  %3644 = vmatprep.subr.bf16.mxu0 0
  %3645 = vmatpush1.bf16.msra.mxu0 0
  %3646 = vmatprep.subr.bf16.mxu0 0
  %3647 = vmatpush1.bf16.msra.mxu0 0
  %3648 = vmatprep.subr.bf16.mxu0 0
  %3649 = vmatpush1.bf16.msra.mxu0 0
  %3650 = vmatprep.subr.bf16.mxu0 0
  %3651 = vmatpush1.bf16.msra.mxu0 0
  %3652 = vmatprep.subr.bf16.mxu0 0
  %3653 = vmatpush1.bf16.msra.mxu0 0
  %3654 = vmatprep.mubr.bf16.mxu0 0
  %3655 = vmatmul.mubr.bf16.gmra.mrb[0].mxu0 %v3014
  %v3656 = vpop.f32.mrb[0].mxu0
  %v3657 = vadd.f32 0.0, %v3656
  %v3658 = vpop.f32.mrb[0].mxu0
  %v3659 = vpop.f32.mrb[0].mxu0
  %v3660 = vadd.f32 0.0, %v3659
  %v3661 = vpop.f32.mrb[0].mxu0
  %3662 = vdwg.mxu0
  %v3663 = vpack.c.bf16 %v2992, %v2991
  %v3665 = vrot.slane %v3663, 3
  %v3667 = vand.u32 %v3665, %v3018
  %3669 = vmatprep.subr.bf16.mxu0 0
  %3670 = vmatpush1.bf16.msra.mxu0 %v3667
  %3671 = vmatprep.subr.bf16.mxu0 0
  %3672 = vmatpush1.bf16.msra.mxu0 0
  %3673 = vmatprep.subr.bf16.mxu0 0
  %3674 = vmatpush1.bf16.msra.mxu0 0
  %3675 = vmatprep.subr.bf16.mxu0 0
  %3676 = vmatpush1.bf16.msra.mxu0 0
  %3677 = vmatprep.subr.bf16.mxu0 0
  %3678 = vmatpush1.bf16.msra.mxu0 0
  %3679 = vmatprep.subr.bf16.mxu0 0
  %3680 = vmatpush1.bf16.msra.mxu0 0
  %3681 = vmatprep.subr.bf16.mxu0 0
  %3682 = vmatpush1.bf16.msra.mxu0 0
  %3683 = vmatprep.subr.bf16.mxu0 0
  %3684 = vmatpush1.bf16.msra.mxu0 0
  %3685 = vmatprep.subr.bf16.mxu0 0
  %3686 = vmatpush1.bf16.msra.mxu0 0
  %3687 = vmatprep.subr.bf16.mxu0 0
  %3688 = vmatpush1.bf16.msra.mxu0 0
  %3689 = vmatprep.subr.bf16.mxu0 0
  %3690 = vmatpush1.bf16.msra.mxu0 0
  %3691 = vmatprep.subr.bf16.mxu0 0
  %3692 = vmatpush1.bf16.msra.mxu0 0
  %3693 = vmatprep.subr.bf16.mxu0 0
  %3694 = vmatpush1.bf16.msra.mxu0 0
  %3695 = vmatprep.subr.bf16.mxu0 0
  %3696 = vmatpush1.bf16.msra.mxu0 0
  %3697 = vmatprep.subr.bf16.mxu0 0
  %3698 = vmatpush1.bf16.msra.mxu0 0
  %3699 = vmatprep.subr.bf16.mxu0 0
  %3700 = vmatpush1.bf16.msra.mxu0 0
  %3701 = vmatprep.mubr.bf16.mxu0 0
  %3702 = vmatmul.mubr.bf16.gmra.mrb[0].mxu0 %v3014
  %v3703 = vpop.f32.mrb[0].mxu0
  %v3704 = vadd.f32 0.0, %v3703
  %v3705 = vpop.f32.mrb[0].mxu0
  %v3706 = vpop.f32.mrb[0].mxu0
  %v3707 = vadd.f32 0.0, %v3706
  %v3708 = vpop.f32.mrb[0].mxu0
  %3709 = vdwg.mxu0
  %v3710 = vpack.c.bf16 %v2993, %v2993
  %v3712 = vshrl.u32 %v3710, 16
  %v3714 = vrot.slane %v3712, 1
  %v3715 = vshll.u32 %v3710, 16
  %v3717 = vrot.slane %v3715, 2
  %v3718 = vor.u32 %v3714, %v3717
  %v3720 = vand.u32 %v3718, %v3018
  %3722 = vmatprep.subr.bf16.mxu0 0
  %3723 = vmatpush1.bf16.msra.mxu0 %v3720
  %3724 = vmatprep.subr.bf16.mxu0 0
  %3725 = vmatpush1.bf16.msra.mxu0 0
  %3726 = vmatprep.subr.bf16.mxu0 0
  %3727 = vmatpush1.bf16.msra.mxu0 0
  %3728 = vmatprep.subr.bf16.mxu0 0
  %3729 = vmatpush1.bf16.msra.mxu0 0
  %3730 = vmatprep.subr.bf16.mxu0 0
  %3731 = vmatpush1.bf16.msra.mxu0 0
  %3732 = vmatprep.subr.bf16.mxu0 0
  %3733 = vmatpush1.bf16.msra.mxu0 0
  %3734 = vmatprep.subr.bf16.mxu0 0
  %3735 = vmatpush1.bf16.msra.mxu0 0
  %3736 = vmatprep.subr.bf16.mxu0 0
  %3737 = vmatpush1.bf16.msra.mxu0 0
  %3738 = vmatprep.subr.bf16.mxu0 0
  %3739 = vmatpush1.bf16.msra.mxu0 0
  %3740 = vmatprep.subr.bf16.mxu0 0
  %3741 = vmatpush1.bf16.msra.mxu0 0
  %3742 = vmatprep.subr.bf16.mxu0 0
  %3743 = vmatpush1.bf16.msra.mxu0 0
  %3744 = vmatprep.subr.bf16.mxu0 0
  %3745 = vmatpush1.bf16.msra.mxu0 0
  %3746 = vmatprep.subr.bf16.mxu0 0
  %3747 = vmatpush1.bf16.msra.mxu0 0
  %3748 = vmatprep.subr.bf16.mxu0 0
  %3749 = vmatpush1.bf16.msra.mxu0 0
  %3750 = vmatprep.subr.bf16.mxu0 0
  %3751 = vmatpush1.bf16.msra.mxu0 0
  %3752 = vmatprep.subr.bf16.mxu0 0
  %3753 = vmatpush1.bf16.msra.mxu0 0
  %3754 = vmatprep.mubr.bf16.mxu0 0
  %3755 = vmatmul.mubr.bf16.gmra.mrb[0].mxu0 %v3014
  %v3756 = vpop.f32.mrb[0].mxu0
  %v3757 = vadd.f32 0.0, %v3756
  %v3758 = vpop.f32.mrb[0].mxu0
  %v3759 = vpop.f32.mrb[0].mxu0
  %v3760 = vadd.f32 0.0, %v3759
  %v3761 = vpop.f32.mrb[0].mxu0
  %3762 = vdwg.mxu0
  %v3763 = vpack.c.bf16 %v2995, %v2994
  %v3765 = vrot.slane %v3763, 3
  %v3767 = vand.u32 %v3765, %v3018
  %3769 = vmatprep.subr.bf16.mxu0 0
  %3770 = vmatpush1.bf16.msra.mxu0 %v3767
  %3771 = vmatprep.subr.bf16.mxu0 0
  %3772 = vmatpush1.bf16.msra.mxu0 0
  %3773 = vmatprep.subr.bf16.mxu0 0
  %3774 = vmatpush1.bf16.msra.mxu0 0
  %3775 = vmatprep.subr.bf16.mxu0 0
  %3776 = vmatpush1.bf16.msra.mxu0 0
  %3777 = vmatprep.subr.bf16.mxu0 0
  %3778 = vmatpush1.bf16.msra.mxu0 0
  %3779 = vmatprep.subr.bf16.mxu0 0
  %3780 = vmatpush1.bf16.msra.mxu0 0
  %3781 = vmatprep.subr.bf16.mxu0 0
  %3782 = vmatpush1.bf16.msra.mxu0 0
  %3783 = vmatprep.subr.bf16.mxu0 0
  %3784 = vmatpush1.bf16.msra.mxu0 0
  %3785 = vmatprep.subr.bf16.mxu0 0
  %3786 = vmatpush1.bf16.msra.mxu0 0
  %3787 = vmatprep.subr.bf16.mxu0 0
  %3788 = vmatpush1.bf16.msra.mxu0 0
  %3789 = vmatprep.subr.bf16.mxu0 0
  %3790 = vmatpush1.bf16.msra.mxu0 0
  %3791 = vmatprep.subr.bf16.mxu0 0
  %3792 = vmatpush1.bf16.msra.mxu0 0
  %3793 = vmatprep.subr.bf16.mxu0 0
  %3794 = vmatpush1.bf16.msra.mxu0 0
  %3795 = vmatprep.subr.bf16.mxu0 0
  %3796 = vmatpush1.bf16.msra.mxu0 0
  %3797 = vmatprep.subr.bf16.mxu0 0
  %3798 = vmatpush1.bf16.msra.mxu0 0
  %3799 = vmatprep.subr.bf16.mxu0 0
  %3800 = vmatpush1.bf16.msra.mxu0 0
  %3801 = vmatprep.mubr.bf16.mxu0 0
  %3802 = vmatmul.mubr.bf16.gmra.mrb[0].mxu0 %v3014
  %v3803 = vpop.f32.mrb[0].mxu0
  %v3804 = vadd.f32 0.0, %v3803
  %v3805 = vpop.f32.mrb[0].mxu0
  %v3806 = vpop.f32.mrb[0].mxu0
  %v3807 = vadd.f32 0.0, %v3806
  %v3808 = vpop.f32.mrb[0].mxu0
  %3809 = vdwg.mxu0
  %3811 = vrot.lane.b32.xlu0 %v3804, 1
  %v3812 = vpop.permute.xlu0 %3811
  %v3814 = vsel %vm256, 0.0, %v3812
  %v3815 = vsel %vm262, %v3814, 0.0
  %v3817 = vrot.slane %v3057, 3
  %v3819 = vadd.f32 %v3815, %v3817
  %v3822 = vrot.slane %v3104, 6
  %v3823 = vrot.slane %v3107, 6
  %v3824 = vsel %vm3016, %v3822, %v3823
  %v3826 = vadd.f32 %v3819, %v3824
  %v3827 = vrot.slane %v3104, 3
  %v3829 = vadd.f32 %v3057, %v3827
  %v3832 = vrot.slane %v3157, 6
  %v3833 = vrot.slane %v3160, 6
  %v3834 = vsel %vm3016, %v3832, %v3833
  %v3836 = vadd.f32 %v3829, %v3834
  %v3837 = vrot.slane %v3157, 3
  %v3839 = vadd.f32 %v3104, %v3837
  %v3842 = vrot.slane %v3204, 6
  %v3843 = vrot.slane %v3207, 6
  %v3844 = vsel %vm3016, %v3842, %v3843
  %v3846 = vadd.f32 %v3839, %v3844
  %v3847 = vrot.slane %v3204, 3
  %v3849 = vadd.f32 %v3157, %v3847
  %v3852 = vrot.slane %v3257, 6
  %v3853 = vrot.slane %v3260, 6
  %v3854 = vsel %vm3016, %v3852, %v3853
  %v3856 = vadd.f32 %v3849, %v3854
  %v3857 = vrot.slane %v3257, 3
  %v3859 = vadd.f32 %v3204, %v3857
  %v3862 = vrot.slane %v3304, 6
  %v3863 = vrot.slane %v3307, 6
  %v3864 = vsel %vm3016, %v3862, %v3863
  %v3866 = vadd.f32 %v3859, %v3864
  %v3867 = vrot.slane %v3304, 3
  %v3869 = vadd.f32 %v3257, %v3867
  %v3872 = vrot.slane %v3357, 6
  %v3873 = vrot.slane %v3360, 6
  %v3874 = vsel %vm3016, %v3872, %v3873
  %v3876 = vadd.f32 %v3869, %v3874
  %v3877 = vrot.slane %v3357, 3
  %v3879 = vadd.f32 %v3304, %v3877
  %v3882 = vrot.slane %v3404, 6
  %v3883 = vrot.slane %v3407, 6
  %v3884 = vsel %vm3016, %v3882, %v3883
  %v3886 = vadd.f32 %v3879, %v3884
  %v3887 = vrot.slane %v3404, 3
  %v3889 = vadd.f32 %v3357, %v3887
  %v3892 = vrot.slane %v3457, 6
  %v3893 = vrot.slane %v3460, 6
  %v3894 = vsel %vm3016, %v3892, %v3893
  %v3896 = vadd.f32 %v3889, %v3894
  %v3897 = vrot.slane %v3457, 3
  %v3899 = vadd.f32 %v3404, %v3897
  %v3902 = vrot.slane %v3504, 6
  %v3903 = vrot.slane %v3507, 6
  %v3904 = vsel %vm3016, %v3902, %v3903
  %v3906 = vadd.f32 %v3899, %v3904
  %v3907 = vrot.slane %v3504, 3
  %v3909 = vadd.f32 %v3457, %v3907
  %v3912 = vrot.slane %v3557, 6
  %v3913 = vrot.slane %v3560, 6
  %v3914 = vsel %vm3016, %v3912, %v3913
  %v3916 = vadd.f32 %v3909, %v3914
  %v3917 = vrot.slane %v3557, 3
  %v3919 = vadd.f32 %v3504, %v3917
  %v3922 = vrot.slane %v3604, 6
  %v3923 = vrot.slane %v3607, 6
  %v3924 = vsel %vm3016, %v3922, %v3923
  %v3926 = vadd.f32 %v3919, %v3924
  %v3927 = vrot.slane %v3604, 3
  %v3929 = vadd.f32 %v3557, %v3927
  %v3932 = vrot.slane %v3657, 6
  %v3933 = vrot.slane %v3660, 6
  %v3934 = vsel %vm3016, %v3932, %v3933
  %v3936 = vadd.f32 %v3929, %v3934
  %v3937 = vrot.slane %v3657, 3
  %v3939 = vadd.f32 %v3604, %v3937
  %v3942 = vrot.slane %v3704, 6
  %v3943 = vrot.slane %v3707, 6
  %v3944 = vsel %vm3016, %v3942, %v3943
  %v3946 = vadd.f32 %v3939, %v3944
  %v3947 = vrot.slane %v3704, 3
  %v3949 = vadd.f32 %v3657, %v3947
  %v3952 = vrot.slane %v3757, 6
  %v3953 = vrot.slane %v3760, 6
  %v3954 = vsel %vm3016, %v3952, %v3953
  %v3956 = vadd.f32 %v3949, %v3954
  %v3957 = vrot.slane %v3757, 3
  %v3959 = vadd.f32 %v3704, %v3957
  %v3961 = vrot.slane %v3804, 6
  %v3962 = vrot.slane %v3807, 6
  %v3963 = vsel %vm3016, %v3961, %v3962
  %v3965 = vadd.f32 %v3959, %v3963
  %3967 = vrot.lane.b32.xlu0 %v3057, 127
  %v3968 = vpop.permute.xlu0 %3967
  %3969 = vrot.lane.b32.xlu0 %v3060, 127
  %v3970 = vpop.permute.xlu0 %3969
  %v3973 = vsel %vm283, %v3968, 0.0
  %v3974 = vsel %vm283, %v3970, 0.0
  %v3975 = vsel %vm289, %v3973, 0.0
  %v3976 = vsel %vm289, %v3974, 0.0
  %v3977 = vrot.slane %v3804, 3
  %v3979 = vadd.f32 %v3757, %v3977
  %v3982 = vrot.slane %v3975, 6
  %v3983 = vrot.slane %v3976, 6
  %v3984 = vsel %vm3016, %v3982, %v3983
  %v3986 = vadd.f32 %v3979, %v3984
  %v3987 = vmul.f32 %v3826, %v3826
  %v3988 = vadd.f32 %v3826, %v3836
  %v3989 = vmul.f32 %v3836, %v3836
  %v3990 = vadd.f32 %v3987, %v3989
  %v3991 = vadd.f32 %v3988, %v3846
  %v3992 = vmul.f32 %v3846, %v3846
  %v3993 = vadd.f32 %v3990, %v3992
  %v3994 = vadd.f32 %v3991, %v3856
  %v3995 = vmul.f32 %v3856, %v3856
  %v3996 = vadd.f32 %v3993, %v3995
  %v3997 = vadd.f32 %v3994, %v3866
  %v3998 = vmul.f32 %v3866, %v3866
  %v3999 = vadd.f32 %v3996, %v3998
  %v4000 = vadd.f32 %v3997, %v3876
  %v4001 = vmul.f32 %v3876, %v3876
  %v4002 = vadd.f32 %v3999, %v4001
  %v4003 = vadd.f32 %v4000, %v3886
  %v4004 = vmul.f32 %v3886, %v3886
  %v4005 = vadd.f32 %v4002, %v4004
  %v4006 = vadd.f32 %v4003, %v3896
  %v4007 = vmul.f32 %v3896, %v3896
  %v4008 = vadd.f32 %v4005, %v4007
  %v4009 = vadd.f32 %v4006, %v3906
  %v4010 = vmul.f32 %v3906, %v3906
  %v4011 = vadd.f32 %v4008, %v4010
  %v4012 = vadd.f32 %v4009, %v3916
  %v4013 = vmul.f32 %v3916, %v3916
  %v4014 = vadd.f32 %v4011, %v4013
  %v4015 = vadd.f32 %v4012, %v3926
  %v4016 = vmul.f32 %v3926, %v3926
  %v4017 = vadd.f32 %v4014, %v4016
  %v4018 = vadd.f32 %v4015, %v3936
  %v4019 = vmul.f32 %v3936, %v3936
  %v4020 = vadd.f32 %v4017, %v4019
  %v4021 = vadd.f32 %v4018, %v3946
  %v4022 = vmul.f32 %v3946, %v3946
  %v4023 = vadd.f32 %v4020, %v4022
  %v4024 = vadd.f32 %v4021, %v3956
  %v4025 = vmul.f32 %v3956, %v3956
  %v4026 = vadd.f32 %v4023, %v4025
  %v4027 = vadd.f32 %v4024, %v3965
  %v4028 = vmul.f32 %v3965, %v3965
  %v4029 = vadd.f32 %v4026, %v4028
  %v4030 = vadd.f32 %v4027, %v3986
  %v4031 = vmul.f32 %v3986, %v3986
  %v4032 = vadd.f32 %v4029, %v4031
  %vm4033 = vcmask 124928
  %v4034 = vsel %vm4033, %v4030, 0.0
  %4035 = vadd.xlane.f32.xlu0 %v4034
  %v4036 = vpop.xlane.xlu0 %4035
  %v4037 = vmul.f32 %v4036, 0.00390625
  %v4038 = vsel %vm4033, %v4032, 0.0
  %4039 = vadd.xlane.f32.xlu0 %v4038
  %v4040 = vpop.xlane.xlu0 %4039
  %v4041 = vmul.f32 %v4040, 0.00390625
  %v4042 = vmul.f32 %v4037, %v4037
  %v4043 = vsub.f32 %v4041, %v4042
  %v4044 = vmax.f32 %v4043, 0.0
  %v4045 = vadd.f32 %v4044, 1e-05
  %v4046 = vrsqrt.pop %v4045
  %v4047 = vmul.f32 %v4046, %v36
  %v4048 = vmul.f32 %v4037, %v4047
  %4050 = vrot.lane.b32.xlu0 %v4048, 1
  %v4051 = vpop.permute.xlu0 %4050
  %v4053 = vsub.f32 %v36, %v4051
  %4055 = vset.pattern.permute.xlu0 13
  %4056 = vperm.xlu0 %4055, %v4047
  %v4057 = vpop.permute.xlu0 %4056
  %v4059 = vmul.f32 %v3826, %v4057
  %4061 = vset.pattern.permute.xlu0 14
  %4062 = vperm.xlu0 %4061, %v4053
  %v4063 = vpop.permute.xlu0 %4062
  %v4065 = vadd.f32 %v4059, %v4063
  %v4066 = vmax.f32 %v4065, 0.0
  %v4068 = vrot.slane %v4066, 5
  %v4070 = vadd.f32 %v2970, %v4068
  %v4071 = vmul.f32 %v3836, %v4057
  %v4072 = vadd.f32 %v4071, %v4063
  %v4073 = vmax.f32 %v4072, 0.0
  %v4075 = vrot.slane %v4073, 2
  %v4077 = vadd.f32 %v2973, %v4075
  %v4078 = vadd.f32 %v2974, %v4075
  %v4079 = vmul.f32 %v3846, %v4057
  %v4080 = vadd.f32 %v4079, %v4063
  %v4081 = vmax.f32 %v4080, 0.0
  %v4083 = vrot.slane %v4081, 5
  %v4085 = vadd.f32 %v2975, %v4083
  %v4086 = vmul.f32 %v3856, %v4057
  %v4087 = vadd.f32 %v4086, %v4063
  %v4088 = vmax.f32 %v4087, 0.0
  %v4090 = vrot.slane %v4088, 2
  %v4092 = vadd.f32 %v2976, %v4090
  %v4093 = vadd.f32 %v2977, %v4090
  %v4094 = vmul.f32 %v3866, %v4057
  %v4095 = vadd.f32 %v4094, %v4063
  %v4096 = vmax.f32 %v4095, 0.0
  %v4098 = vrot.slane %v4096, 5
  %v4100 = vadd.f32 %v2978, %v4098
  %v4101 = vmul.f32 %v3876, %v4057
  %v4102 = vadd.f32 %v4101, %v4063
  %v4103 = vmax.f32 %v4102, 0.0
  %v4105 = vrot.slane %v4103, 2
  %v4107 = vadd.f32 %v2979, %v4105
  %v4108 = vadd.f32 %v2980, %v4105
  %v4109 = vmul.f32 %v3886, %v4057
  %v4110 = vadd.f32 %v4109, %v4063
  %v4111 = vmax.f32 %v4110, 0.0
  %v4113 = vrot.slane %v4111, 5
  %v4115 = vadd.f32 %v2981, %v4113
  %v4116 = vmul.f32 %v3896, %v4057
  %v4117 = vadd.f32 %v4116, %v4063
  %v4118 = vmax.f32 %v4117, 0.0
  %v4120 = vrot.slane %v4118, 2
  %v4122 = vadd.f32 %v2982, %v4120
  %v4123 = vadd.f32 %v2983, %v4120
  %v4124 = vmul.f32 %v3906, %v4057
  %v4125 = vadd.f32 %v4124, %v4063
  %v4126 = vmax.f32 %v4125, 0.0
  %v4128 = vrot.slane %v4126, 5
  %v4130 = vadd.f32 %v2984, %v4128
  %v4131 = vmul.f32 %v3916, %v4057
  %v4132 = vadd.f32 %v4131, %v4063
  %v4133 = vmax.f32 %v4132, 0.0
  %v4135 = vrot.slane %v4133, 2
  %v4137 = vadd.f32 %v2985, %v4135
  %v4138 = vadd.f32 %v2986, %v4135
  %v4139 = vmul.f32 %v3926, %v4057
  %v4140 = vadd.f32 %v4139, %v4063
  %v4141 = vmax.f32 %v4140, 0.0
  %v4143 = vrot.slane %v4141, 5
  %v4145 = vadd.f32 %v2987, %v4143
  %v4146 = vmul.f32 %v3936, %v4057
  %v4147 = vadd.f32 %v4146, %v4063
  %v4148 = vmax.f32 %v4147, 0.0
  %v4150 = vrot.slane %v4148, 2
  %v4152 = vadd.f32 %v2988, %v4150
  %v4153 = vadd.f32 %v2989, %v4150
  %v4154 = vmul.f32 %v3946, %v4057
  %v4155 = vadd.f32 %v4154, %v4063
  %v4156 = vmax.f32 %v4155, 0.0
  %v4158 = vrot.slane %v4156, 5
  %v4160 = vadd.f32 %v2990, %v4158
  %v4161 = vmul.f32 %v3956, %v4057
  %v4162 = vadd.f32 %v4161, %v4063
  %v4163 = vmax.f32 %v4162, 0.0
  %v4165 = vrot.slane %v4163, 2
  %v4167 = vadd.f32 %v2991, %v4165
  %v4168 = vadd.f32 %v2992, %v4165
  %v4169 = vmul.f32 %v3965, %v4057
  %v4170 = vadd.f32 %v4169, %v4063
  %v4171 = vmax.f32 %v4170, 0.0
  %v4173 = vrot.slane %v4171, 5
  %v4175 = vadd.f32 %v2993, %v4173
  %v4176 = vmul.f32 %v3986, %v4057
  %v4177 = vadd.f32 %v4176, %v4063
  %v4178 = vmax.f32 %v4177, 0.0
  %v4180 = vrot.slane %v4178, 2
  %v4182 = vadd.f32 %v2994, %v4180
  %v4183 = vadd.f32 %v2995, %v4180
  %vm4186 = vcmask 1044480
  %v4187 = vrot.slane %v4077, 3
  %v4188 = vrot.slane %v4078, 3
  %v4189 = vsel %vm4186, %v4187, %v4188
  %4190 = vrot.lane.b32.xlu0 %v4189, 16
  %v4191 = vpop.permute.xlu0 %4190
  %4194 = vrot.lane.b32.xlu0 %v4085, 32
  %v4195 = vpop.permute.xlu0 %4194
  %v4199 = vrot.slane %v4092, 3
  %v4200 = vrot.slane %v4093, 3
  %v4201 = vsel %vm4186, %v4199, %v4200
  %4202 = vrot.lane.b32.xlu0 %v4201, 48
  %v4203 = vpop.permute.xlu0 %4202
  %4206 = vrot.lane.b32.xlu0 %v4100, 64
  %v4207 = vpop.permute.xlu0 %4206
  %v4211 = vrot.slane %v4107, 3
  %v4212 = vrot.slane %v4108, 3
  %v4213 = vsel %vm4186, %v4211, %v4212
  %4214 = vrot.lane.b32.xlu0 %v4213, 80
  %v4215 = vpop.permute.xlu0 %4214
  %4218 = vrot.lane.b32.xlu0 %v4115, 96
  %v4219 = vpop.permute.xlu0 %4218
  %v4223 = vrot.slane %v4122, 3
  %v4224 = vrot.slane %v4123, 3
  %v4225 = vsel %vm4186, %v4223, %v4224
  %4226 = vrot.lane.b32.xlu0 %v4225, 112
  %v4227 = vpop.permute.xlu0 %4226
  %v4231 = vrot.slane %v4137, 3
  %v4232 = vrot.slane %v4138, 3
  %v4233 = vsel %vm4186, %v4231, %v4232
  %4234 = vrot.lane.b32.xlu0 %v4233, 16
  %v4235 = vpop.permute.xlu0 %4234
  %4238 = vrot.lane.b32.xlu0 %v4145, 32
  %v4239 = vpop.permute.xlu0 %4238
  %v4243 = vrot.slane %v4152, 3
  %v4244 = vrot.slane %v4153, 3
  %v4245 = vsel %vm4186, %v4243, %v4244
  %4246 = vrot.lane.b32.xlu0 %v4245, 48
  %v4247 = vpop.permute.xlu0 %4246
  %4250 = vrot.lane.b32.xlu0 %v4160, 64
  %v4251 = vpop.permute.xlu0 %4250
  %v4255 = vrot.slane %v4167, 3
  %v4256 = vrot.slane %v4168, 3
  %v4257 = vsel %vm4186, %v4255, %v4256
  %4258 = vrot.lane.b32.xlu0 %v4257, 80
  %v4259 = vpop.permute.xlu0 %4258
  %4262 = vrot.lane.b32.xlu0 %v4175, 96
  %v4263 = vpop.permute.xlu0 %4262
  %v4267 = vrot.slane %v4182, 3
  %v4268 = vrot.slane %v4183, 3
  %v4269 = vsel %vm4186, %v4267, %v4268
  %4270 = vrot.lane.b32.xlu0 %v4269, 112
  %v4271 = vpop.permute.xlu0 %4270
  %v4273 = vsel %vm318, %v4070, %v4191
  %v4274 = vsel %vm507, %v4273, %v4195
  %vm4275 = vcmask 392192
  %v4276 = vsel %vm4275, %v4274, %v4203
  %vm4277 = vcmask 523264
  %v4278 = vsel %vm4277, %v4276, %v4207
  %vm4279 = vcmask 654336
  %v4280 = vsel %vm4279, %v4278, %v4215
  %vm4281 = vcmask 785408
  %v4282 = vsel %vm4281, %v4280, %v4219
  %vm4283 = vcmask 916480
  %v4284 = vsel %vm4283, %v4282, %v4227
  %v4285 = vsel %vm318, %v4130, %v4235
  %v4286 = vsel %vm507, %v4285, %v4239
  %v4287 = vsel %vm4275, %v4286, %v4247
  %v4288 = vsel %vm4277, %v4287, %v4251
  %v4289 = vsel %vm4279, %v4288, %v4259
  %v4290 = vsel %vm4281, %v4289, %v4263
  %v4291 = vsel %vm4283, %v4290, %v4271
  %v4294 = vcombine.low %v4284, %v4291
  %v4295 = vcombine.high %v4284, %v4291
  %vm4296 = vcmask 1044484
  %vm4297 = vmor %vm139, %vm4296
  %v4298 = vrot.slane %v4294, 7
  %v4299 = vrot.slane %v4298, 4
  %v4300 = vrot.slane %v4295, 7
  %v4301 = vsel %vm4297, %v4299, %v4300
  %4303 = vst [vmem:[%s10] sm:$0x77] %v4301
  // Predicated region
  $region42: #{decoder_forward.1} parent=0 // pred_check
    _
  $region43: #{decoder_forward.1} parent=0 // pred_check_branch
    %4305 = sbr.rel (0) target = $region45
  $region44: #{decoder_forward.1} parent=0 // pred_region
    _
  $region45: #{decoder_forward.1} parent=0 // pred_fallthru
    _
  // Predicated region
  $region46: #{decoder_forward.1} parent=0 // pred_check
    _
  $region47: #{decoder_forward.1} parent=0 // pred_check_branch
    %4307 = sbr.rel (0) target = $region49
  $region48: #{decoder_forward.1} parent=0 // pred_region
    _
  $region49: #{decoder_forward.1} parent=0 // pred_fallthru
    _

</llo_original>
